<compile_context>
chip_gen: v6e
topology: v6e:2x2x1
jax: 0.10.0
libtpu: 0.0.40
codegen_flags: <defaults>
</compile_context>

<pallas_src>
import functools

import jax
import jax.numpy as jnp
import numpy as np
from jax.experimental import pallas as pl
from jax.experimental.pallas import tpu as pltpu

MAX_TB = 32                       # max images per grid step (cap; adaptive below)
K1, C1, O1 = 5, 3, 6              # conv1 kernel / in / out channels
K2, C2, O2 = 5, 6, 16             # conv2 kernel / in / out channels
H_IN = 32
CONV1_OUT = H_IN - K1 + 1         # 28
POOL1_OUT = CONV1_OUT // 2        # 14
CONV2_OUT = POOL1_OUT - K2 + 1    # 10
POOL2_OUT = CONV2_OUT // 2        # 5
KK1 = C1 * K1 * K1                # 75
KK2 = C2 * K2 * K2                # 150
NSPAT2 = POOL2_OUT * POOL2_OUT    # 25
O1P = 8                           # conv1 out channels padded 6 -> 8 (one sublane group)
NC_PAD = 128                      # fc3 output padded to one full lane group


def _pick_tb(batch):
    """Adaptive batch tile: full 32 for large batches, round_up(B, 8) for small."""
    return min(MAX_TB, ((batch + 7) // 8) * 8)


# ------------------------------ Pallas kernels ------------------------------

def _conv1_pool_kernel(p_ref, w_ref, b_ref, o_ref, *, m1):
    """conv1 + 2x2 max-pool + bias + sigmoid for one batch tile (one MXU launch).

    p: (1, 4*KK1, m1)   phase-stacked, transposed im2col patches
                        row = phase*75 + (c,kh,kw), lane = (h2, w2, tb)
    w: (4*O1P, 4*KK1)   block-diagonal conv1 weights (one (8,75) block per phase)
    b: (O1P, 1)
    o: (1, O1P, m1)     pooled feature map, lane-dense store
    """
    acc = jnp.dot(w_ref[...], p_ref[0], preferred_element_type=jnp.float32)
    # 2x2 max-pool == max over the four phase sublane-groups (8-aligned slices).
    m = jnp.maximum(jnp.maximum(acc[0:O1P], acc[O1P:2 * O1P]),
                    jnp.maximum(acc[2 * O1P:3 * O1P], acc[3 * O1P:4 * O1P]))
    # per-channel bias commutes with the max; sigmoid is monotonic -> exact.
    o_ref[0] = jax.nn.sigmoid(m + b_ref[...])


def _conv2_fc_kernel(p_ref, w2_ref, b2_ref, w1p_ref, b1f_ref,
                     w2f_ref, b2f_ref, w3f_ref, b3f_ref, o_ref, *, tb):
    """conv2 + pool + sigmoid + fc1 + fc2 + fc3 for one batch tile.

    p: (1, 4*m2, KK2)  phase-stacked im2col patches of the pooled conv1 map,
                       row = phase*m2 + (h4,w4)*tb + tb_idx, col = (c,kh,kw).
    """
    m2 = NSPAT2 * tb
    acc = jnp.dot(p_ref[0], w2_ref[...], preferred_element_type=jnp.float32)  # (4*m2,16)
    m = jnp.maximum(jnp.maximum(acc[0:m2], acc[m2:2 * m2]),
                    jnp.maximum(acc[2 * m2:3 * m2], acc[3 * m2:4 * m2]))
    p2 = jax.nn.sigmoid(m + b2_ref[...])              # (m2, 16), rows (s, tb)

    # fc1 over the (c,h,w) flatten without an in-kernel (m2,16)->(tb,400)
    # relayout: 25 sublane-aligned chunk dots (fc1 weight rows pre-permuted to
    # the matching (spatial-major, channel-minor) order), combined with a
    # balanced tree so the MXU launches are independent (no serial pop->add).
    parts = [jnp.dot(p2[s * tb:(s + 1) * tb, :],
                     w1p_ref[s * O2:(s + 1) * O2, :],
                     preferred_element_type=jnp.float32)
             for s in range(NSPAT2)]
    while len(parts) > 1:
        nxt = [parts[i] + parts[i + 1] for i in range(0, len(parts) - 1, 2)]
        if len(parts) % 2:
            nxt.append(parts[-1])
        parts = nxt
    a1 = jax.nn.sigmoid(parts[0] + b1f_ref[...])
    a2 = jax.nn.sigmoid(
        jnp.dot(a1, w2f_ref[...], preferred_element_type=jnp.float32)
        + b2f_ref[...])
    o_ref[0] = (jnp.dot(a2, w3f_ref[...], preferred_element_type=jnp.float32)
                + b3f_ref[...])


# ----------------------------- pallas_call wrappers --------------------------

def _conv1_stage(patches, w1bd, b1, tb):
    nt = patches.shape[0]
    m1 = POOL1_OUT * POOL1_OUT * tb
    kernel = functools.partial(_conv1_pool_kernel, m1=m1)
    return pl.pallas_call(
        kernel,
        out_shape=jax.ShapeDtypeStruct((nt, O1P, m1), jnp.float32),
        grid=(nt,),
        in_specs=[
            pl.BlockSpec((1, 4 * KK1, m1), lambda i: (i, 0, 0)),
            pl.BlockSpec((4 * O1P, 4 * KK1), lambda i: (0, 0)),  # resident weights
            pl.BlockSpec((O1P, 1), lambda i: (0, 0)),
        ],
        out_specs=pl.BlockSpec((1, O1P, m1), lambda i: (i, 0, 0)),
        compiler_params=pltpu.CompilerParams(
            dimension_semantics=("parallel",),
            vmem_limit_bytes=40 * 1024 * 1024),   # TB=32 needs ~17 MiB (> v5e 16 MiB default)
    )(patches, w1bd, b1)


def _conv2_fc_stage(patches, prep, tb):
    nt = patches.shape[0]
    m2 = NSPAT2 * tb
    kernel = functools.partial(_conv2_fc_kernel, tb=tb)

    def full(shape):
        return pl.BlockSpec(shape, lambda i, _n=len(shape): (0,) * _n)

    return pl.pallas_call(
        kernel,
        out_shape=jax.ShapeDtypeStruct((nt, tb, NC_PAD), jnp.float32),
        grid=(nt,),
        in_specs=[
            pl.BlockSpec((1, 4 * m2, KK2), lambda i: (i, 0, 0)),
            full((KK2, O2)), full((1, O2)),
            full((NSPAT2 * O2, 120)), full((1, 120)),
            full((120, 84)), full((1, 84)),
            full((84, NC_PAD)), full((1, NC_PAD)),
        ],
        out_specs=pl.BlockSpec((1, tb, NC_PAD), lambda i: (i, 0, 0)),
        compiler_params=pltpu.CompilerParams(
            dimension_semantics=("parallel",)),
    )(patches, prep["w2t"], prep["b2"], prep["w1p"], prep["b1f"],
      prep["w2f"], prep["b2f"], prep["w3f"], prep["b3f"])


# -------------------------------- XLA-side glue -------------------------------
# TODO(synk): im2col patch extraction stays XLA-side glue; these relayouts touch
# more HBM bytes than the kernels and should be profiled together with them.

def _conv1_patches(x, tb):
    """(Bp,3,32,32) -> (Bp//tb, 4*KK1, m1) phase-stacked, transposed im2col.

    row = phase*75 + (c,kh,kw); lane = (h2, w2, tb_idx);
    value = x[b, c, 2*h2+pi+kh, 2*w2+pj+kw].
    """
    bp = x.shape[0]
    nt = bp // tb
    oh = CONV1_OUT
    m1 = POOL1_OUT * POOL1_OUT * tb
    cols = jnp.stack([x[:, :, i:i + oh, j:j + oh]
                      for i in range(K1) for j in range(K1)], axis=0)
    cols = cols.reshape(K1, K1, nt, tb, C1, POOL1_OUT, 2, POOL1_OUT, 2)
    # (kh,kw,nt,tb,c,h2,pi,w2,pj) -> (nt,pi,pj,c,kh,kw,h2,w2,tb)
    cols = cols.transpose(2, 6, 8, 4, 0, 1, 5, 7, 3)
    return cols.reshape(nt, 4 * KK1, m1)


def _conv2_patches(o1, tb):
    """(nt,8,m1) pooled conv1 maps -> (nt, 4*m2, KK2) phase-stacked im2col.

    row = phase*m2 + (h4,w4)*tb + tb_idx; col = (c,kh,kw).
    """
    nt = o1.shape[0]
    m2 = NSPAT2 * tb
    f = o1.reshape(nt, O1P, POOL1_OUT, POOL1_OUT, tb)[:, :O1]  # drop pad channels
    oh = CONV2_OUT
    cols = jnp.stack([f[:, :, i:i + oh, j:j + oh, :]
                      for i in range(K2) for j in range(K2)], axis=0)
    cols = cols.reshape(K2, K2, nt, C2, POOL2_OUT, 2, POOL2_OUT, 2, tb)
    # (kh,kw,nt,c,h4,pi,w4,pj,tb) -> (nt,pi,pj,h4,w4,tb,c,kh,kw)
    cols = cols.transpose(2, 5, 7, 4, 6, 8, 3, 0, 1)
    return cols.reshape(nt, 4 * m2, KK2)


# ------------------------------ params & forward ------------------------------

def init_params(key, num_classes):
    """PyTorch-style uniform(-1/sqrt(fan_in), 1/sqrt(fan_in)) init."""
    def uniform(k, shape, fan_in):
        bound = 1.0 / np.sqrt(fan_in)
        return jax.random.uniform(k, shape, jnp.float32, -bound, bound)

    ks = jax.random.split(key, 10)
    return {
        "conv1_w": uniform(ks[0], (6, 3, 5, 5), 3 * 25),
        "conv1_b": uniform(ks[1], (6,), 3 * 25),
        "conv2_w": uniform(ks[2], (16, 6, 5, 5), 6 * 25),
        "conv2_b": uniform(ks[3], (16,), 6 * 25),
        "fc1_w": uniform(ks[4], (120, 400), 400),
        "fc1_b": uniform(ks[5], (120,), 400),
        "fc2_w": uniform(ks[6], (84, 120), 120),
        "fc2_b": uniform(ks[7], (84,), 120),
        "fc3_w": uniform(ks[8], (num_classes, 84), 84),
        "fc3_b": uniform(ks[9], (num_classes,), 84),
    }


def prepare_params(params):
    """One-time layout prep (hoisted out of forward): transpose/pad/permute."""
    nc = params["fc3_w"].shape[0]
    assert nc <= NC_PAD
    w1 = jnp.pad(params["conv1_w"].reshape(O1, KK1), ((0, O1P - O1), (0, 0)))
    # block-diagonal over the four pool phases -> single fused MXU launch.
    w1bd = jnp.kron(jnp.eye(4, dtype=jnp.float32), w1)          # (32, 300)
    b1 = jnp.pad(params["conv1_b"], (0, O1P - O1)).reshape(O1P, 1)
    w2t = params["conv2_w"].reshape(O2, KK2).T
    b2 = params["conv2_b"].reshape(1, O2)
    # fc1 expects (c, h, w) flatten order; our pooled conv2 tile is chunked
    # (spatial-major, channel-minor) -> permute the 400 weight rows once.
    w1p = params["fc1_w"].reshape(120, O2, NSPAT2).transpose(2, 1, 0).reshape(
        NSPAT2 * O2, 120)
    b1f = params["fc1_b"].reshape(1, 120)
    w2f = params["fc2_w"].T
    b2f = params["fc2_b"].reshape(1, 84)
    w3f = jnp.pad(params["fc3_w"].T, ((0, 0), (0, NC_PAD - nc)))
    b3f = jnp.pad(params["fc3_b"], (0, NC_PAD - nc)).reshape(1, NC_PAD)
    return {"w1bd": w1bd, "b1": b1, "w2t": w2t, "b2": b2, "w1p": w1p,
            "b1f": b1f, "w2f": w2f, "b2f": b2f, "w3f": w3f, "b3f": b3f}


def grnn_lenet_forward(prep, x, num_classes):
    b = x.shape[0]
    tb = _pick_tb(b)
    bp = ((b + tb - 1) // tb) * tb
    if bp != b:                                  # pad batch to a full tile
        x = jnp.pad(x, ((0, bp - b), (0, 0), (0, 0), (0, 0)))
    p1 = _conv1_patches(x.astype(jnp.float32), tb)   # (nt, 300, 196*tb)
    o1 = _conv1_stage(p1, prep["w1bd"], prep["b1"], tb)  # (nt, 8, 196*tb)
    p2 = _conv2_patches(o1, tb)                      # (nt, 100*tb, 150)
    out = _conv2_fc_stage(p2, prep, tb)              # (nt, tb, 128)
    return out.reshape(bp, NC_PAD)[:b, :num_classes]


# ------------------------------ pure-JAX reference ----------------------------

def reference_forward(params, x):
    def conv(x, w, b):
        y = jax.lax.conv_general_dilated(
            x, w, (1, 1), "VALID",
            dimension_numbers=("NCHW", "OIHW", "NCHW"))
        return jax.nn.sigmoid(y + b[None, :, None, None])

    def pool(x):
        b_, c, h, w = x.shape
        return x.reshape(b_, c, h // 2, 2, w // 2, 2).max(axis=(3, 5))

    x = pool(conv(x, params["conv1_w"], params["conv1_b"]))
    x = pool(conv(x, params["conv2_w"], params["conv2_b"]))
    x = x.reshape(x.shape[0], -1)
    x = jax.nn.sigmoid(x @ params["fc1_w"].T + params["fc1_b"])
    x = jax.nn.sigmoid(x @ params["fc2_w"].T + params["fc2_b"])
    return x @ params["fc3_w"].T + params["fc3_b"]


if __name__ == "__main__":
    key = jax.random.PRNGKey(0)
    pkey, xkey, xkey2 = jax.random.split(key, 3)
    num_classes = 10
    params = init_params(pkey, num_classes)
    prep = prepare_params(params)

    fwd = jax.jit(grnn_lenet_forward, static_argnames=("num_classes",))

    # Small-batch path (TB=8, single grid tile).  LeNet input geometry: 3x32x32.
    x = jax.random.normal(xkey, (2, 3, 32, 32), jnp.float32)
    out = jax.block_until_ready(fwd(prep, x, num_classes=num_classes))
    assert out.shape == (2, num_classes), out.shape
    ref = jax.block_until_ready(reference_forward(params, x))
    np.testing.assert_allclose(np.asarray(out), np.asarray(ref),
                               rtol=2e-4, atol=2e-4)

    # Larger batch exercises TB=32 (128-aligned lanes), multi-tile grid and
    # batch padding (40 -> 64).
    x2 = jax.random.normal(xkey2, (40, 3, 32, 32), jnp.float32)
    out2 = jax.block_until_ready(fwd(prep, x2, num_classes=num_classes))
    assert out2.shape == (40, num_classes), out2.shape
    ref2 = jax.block_until_ready(reference_forward(params, x2))
    np.testing.assert_allclose(np.asarray(out2), np.asarray(ref2),
                               rtol=2e-4, atol=2e-4)

    print("KERNEL_OK")
</pallas_src>

<mosaic_0001>
module attributes {stable_mosaic.version = 11 : i64} {
  func.func @_conv1_pool_kernel(%arg0: i32, %arg1: memref<1x300x1568xf32, #tpu.memory_space<vmem>>, %arg2: memref<32x300xf32, #tpu.memory_space<vmem>>, %arg3: memref<8x1xf32, #tpu.memory_space<vmem>>, %arg4: memref<1x8x1568xf32, #tpu.memory_space<vmem>>) attributes {dimension_semantics = [#tpu.dimension_semantics<parallel>], iteration_bounds = array<i64: 1>, scalar_prefetch = 0 : i64, scratch_operands = 0 : i64, tpu.core_type = #tpu.core_type<tc>, window_params = [{transform_indices = @transform_0, window_bounds = array<i64: 1, 300, 1568>}, {pipeline_mode = #tpu.pipeline_mode<synchronous>, transform_indices = @transform_1, window_bounds = array<i64: 32, 300>}, {pipeline_mode = #tpu.pipeline_mode<synchronous>, transform_indices = @transform_2, window_bounds = array<i64: 8, 1>}, {transform_indices = @transform_3, window_bounds = array<i64: 1, 8, 1568>}]} {
    %c0 = arith.constant 0 : index
    %c0_0 = arith.constant 0 : index
    %0 = vector.load %arg2[%c0, %c0_0] : memref<32x300xf32, #tpu.memory_space<vmem>>, vector<32x300xf32>
    %c0_1 = arith.constant 0 : index
    %c0_2 = arith.constant 0 : index
    %c0_3 = arith.constant 0 : index
    %1 = vector.load %arg1[%c0_1, %c0_2, %c0_3] : memref<1x300x1568xf32, #tpu.memory_space<vmem>>, vector<1x300x1568xf32>
    %2 = vector.shape_cast %1 : vector<1x300x1568xf32> to vector<300x1568xf32>
    %cst = arith.constant dense<0.000000e+00> : vector<32x1568xf32>
    %3 = tpu.matmul %0, %2, %cst {dimension_numbers = #tpu.dot_dimension_numbers<[1], [0], [0], [1], [0, 0, 1, 1], [], []>} : vector<32x300xf32>, vector<300x1568xf32>, vector<32x1568xf32> -> vector<32x1568xf32>
    %4 = vector.extract_strided_slice %3 {offsets = [0, 0], sizes = [8, 1568], strides = [1, 1]} : vector<32x1568xf32> to vector<8x1568xf32>
    %5 = vector.extract_strided_slice %3 {offsets = [8, 0], sizes = [8, 1568], strides = [1, 1]} : vector<32x1568xf32> to vector<8x1568xf32>
    %6 = arith.maximumf %4, %5 : vector<8x1568xf32>
    %7 = vector.extract_strided_slice %3 {offsets = [16, 0], sizes = [8, 1568], strides = [1, 1]} : vector<32x1568xf32> to vector<8x1568xf32>
    %8 = vector.extract_strided_slice %3 {offsets = [24, 0], sizes = [8, 1568], strides = [1, 1]} : vector<32x1568xf32> to vector<8x1568xf32>
    %9 = arith.maximumf %7, %8 : vector<8x1568xf32>
    %10 = arith.maximumf %6, %9 : vector<8x1568xf32>
    %c0_4 = arith.constant 0 : index
    %c0_5 = arith.constant 0 : index
    %11 = vector.load %arg3[%c0_4, %c0_5] : memref<8x1xf32, #tpu.memory_space<vmem>>, vector<8x1xf32>
    %12 = vector.broadcast %11 : vector<8x1xf32> to vector<8x1568xf32>
    %13 = arith.addf %10, %12 : vector<8x1568xf32>
    %14 = arith.negf %13 : vector<8x1568xf32>
    %15 = math.exp %14 : vector<8x1568xf32>
    %cst_6 = arith.constant 1.000000e+00 : f32
    %16 = vector.broadcast %cst_6 : f32 to vector<8x1568xf32>
    %17 = arith.addf %16, %15 : vector<8x1568xf32>
    %18 = arith.divf %16, %17 : vector<8x1568xf32>
    %c0_7 = arith.constant 0 : index
    %c0_8 = arith.constant 0 : index
    %c0_9 = arith.constant 0 : index
    %19 = vector.load %arg4[%c0_7, %c0_8, %c0_9] : memref<1x8x1568xf32, #tpu.memory_space<vmem>>, vector<1x8x1568xf32>
    %20 = vector.shape_cast %19 : vector<1x8x1568xf32> to vector<8x1568xf32>
    %21 = vector.shape_cast %18 : vector<8x1568xf32> to vector<1x8x1568xf32>
    tpu.vector_store %arg4[%c0_7, %c0_8, %c0_9], %21 {strides = array<i32>} : memref<1x8x1568xf32, #tpu.memory_space<vmem>>, vector<1x8x1568xf32>,
    return
  }
  func.func @transform_0(%arg0: i32) -> (i32, i32, i32) {
    %c0_i32 = arith.constant 0 : i32
    %c0_i32_0 = arith.constant 0 : i32
    %c0_i32_1 = arith.constant 0 : i32
    return %arg0, %c0_i32, %c0_i32_0 : i32, i32, i32
  }
  func.func @transform_1(%arg0: i32) -> (i32, i32) {
    %c0_i32 = arith.constant 0 : i32
    %c0_i32_0 = arith.constant 0 : i32
    %c0_i32_1 = arith.constant 0 : i32
    return %c0_i32, %c0_i32_0 : i32, i32
  }
  func.func @transform_2(%arg0: i32) -> (i32, i32) {
    %c0_i32 = arith.constant 0 : i32
    %c0_i32_0 = arith.constant 0 : i32
    %c0_i32_1 = arith.constant 0 : i32
    return %c0_i32, %c0_i32_0 : i32, i32
  }
  func.func @transform_3(%arg0: i32) -> (i32, i32, i32) {
    %c0_i32 = arith.constant 0 : i32
    %c0_i32_0 = arith.constant 0 : i32
    %c0_i32_1 = arith.constant 0 : i32
    return %arg0, %c0_i32, %c0_i32_0 : i32, i32, i32
  }
}

module attributes {stable_mosaic.version = 11 : i64} {
  func.func @_conv2_fc_kernel(%arg0: i32, %arg1: memref<1x800x150xf32, #tpu.memory_space<vmem>>, %arg2: memref<150x16xf32, #tpu.memory_space<vmem>>, %arg3: memref<1x16xf32, #tpu.memory_space<vmem>>, %arg4: memref<400x120xf32, #tpu.memory_space<vmem>>, %arg5: memref<1x120xf32, #tpu.memory_space<vmem>>, %arg6: memref<120x84xf32, #tpu.memory_space<vmem>>, %arg7: memref<1x84xf32, #tpu.memory_space<vmem>>, %arg8: memref<84x128xf32, #tpu.memory_space<vmem>>, %arg9: memref<1x128xf32, #tpu.memory_space<vmem>>, %arg10: memref<1x8x128xf32, #tpu.memory_space<vmem>>) attributes {dimension_semantics = [#tpu.dimension_semantics<parallel>], iteration_bounds = array<i64: 1>, scalar_prefetch = 0 : i64, scratch_operands = 0 : i64, tpu.core_type = #tpu.core_type<tc>, window_params = [{transform_indices = @transform_0, window_bounds = array<i64: 1, 800, 150>}, {pipeline_mode = #tpu.pipeline_mode<synchronous>, transform_indices = @transform_1, window_bounds = array<i64: 150, 16>}, {pipeline_mode = #tpu.pipeline_mode<synchronous>, transform_indices = @transform_2, window_bounds = array<i64: 1, 16>}, {pipeline_mode = #tpu.pipeline_mode<synchronous>, transform_indices = @transform_3, window_bounds = array<i64: 400, 120>}, {pipeline_mode = #tpu.pipeline_mode<synchronous>, transform_indices = @transform_4, window_bounds = array<i64: 1, 120>}, {pipeline_mode = #tpu.pipeline_mode<synchronous>, transform_indices = @transform_5, window_bounds = array<i64: 120, 84>}, {pipeline_mode = #tpu.pipeline_mode<synchronous>, transform_indices = @transform_6, window_bounds = array<i64: 1, 84>}, {pipeline_mode = #tpu.pipeline_mode<synchronous>, transform_indices = @transform_7, window_bounds = array<i64: 84, 128>}, {pipeline_mode = #tpu.pipeline_mode<synchronous>, transform_indices = @transform_8, window_bounds = array<i64: 1, 128>}, {transform_indices = @transform_9, window_bounds = array<i64: 1, 8, 128>}]} {
    %c0 = arith.constant 0 : index
    %c0_0 = arith.constant 0 : index
    %c0_1 = arith.constant 0 : index
    %0 = vector.load %arg1[%c0, %c0_0, %c0_1] : memref<1x800x150xf32, #tpu.memory_space<vmem>>, vector<1x800x150xf32>
    %1 = vector.shape_cast %0 : vector<1x800x150xf32> to vector<800x150xf32>
    %c0_2 = arith.constant 0 : index
    %c0_3 = arith.constant 0 : index
    %2 = vector.load %arg2[%c0_2, %c0_3] : memref<150x16xf32, #tpu.memory_space<vmem>>, vector<150x16xf32>
    %cst = arith.constant dense<0.000000e+00> : vector<800x16xf32>
    %3 = tpu.matmul %1, %2, %cst {dimension_numbers = #tpu.dot_dimension_numbers<[1], [0], [0], [1], [0, 0, 1, 1], [], []>} : vector<800x150xf32>, vector<150x16xf32>, vector<800x16xf32> -> vector<800x16xf32>
    %4 = vector.extract_strided_slice %3 {offsets = [0, 0], sizes = [200, 16], strides = [1, 1]} : vector<800x16xf32> to vector<200x16xf32>
    %5 = vector.extract_strided_slice %3 {offsets = [200, 0], sizes = [200, 16], strides = [1, 1]} : vector<800x16xf32> to vector<200x16xf32>
    %6 = arith.maximumf %4, %5 : vector<200x16xf32>
    %7 = vector.extract_strided_slice %3 {offsets = [400, 0], sizes = [200, 16], strides = [1, 1]} : vector<800x16xf32> to vector<200x16xf32>
    %8 = vector.extract_strided_slice %3 {offsets = [600, 0], sizes = [200, 16], strides = [1, 1]} : vector<800x16xf32> to vector<200x16xf32>
    %9 = arith.maximumf %7, %8 : vector<200x16xf32>
    %10 = arith.maximumf %6, %9 : vector<200x16xf32>
    %c0_4 = arith.constant 0 : index
    %c0_5 = arith.constant 0 : index
    %11 = vector.load %arg3[%c0_4, %c0_5] : memref<1x16xf32, #tpu.memory_space<vmem>>, vector<1x16xf32>
    %12 = vector.broadcast %11 : vector<1x16xf32> to vector<200x16xf32>
    %13 = arith.addf %10, %12 : vector<200x16xf32>
    %14 = arith.negf %13 : vector<200x16xf32>
    %15 = math.exp %14 : vector<200x16xf32>
    %cst_6 = arith.constant 1.000000e+00 : f32
    %16 = vector.broadcast %cst_6 : f32 to vector<200x16xf32>
    %17 = arith.addf %16, %15 : vector<200x16xf32>
    %18 = arith.divf %16, %17 : vector<200x16xf32>
    %19 = vector.extract_strided_slice %18 {offsets = [0, 0], sizes = [8, 16], strides = [1, 1]} : vector<200x16xf32> to vector<8x16xf32>
    %c0_7 = arith.constant 0 : index
    %c0_8 = arith.constant 0 : index
    %20 = vector.load %arg4[%c0_7, %c0_8] : memref<400x120xf32, #tpu.memory_space<vmem>>, vector<16x120xf32>
    %cst_9 = arith.constant dense<0.000000e+00> : vector<8x120xf32>
    %21 = tpu.matmul %19, %20, %cst_9 {dimension_numbers = #tpu.dot_dimension_numbers<[1], [0], [0], [1], [0, 0, 1, 1], [], []>} : vector<8x16xf32>, vector<16x120xf32>, vector<8x120xf32> -> vector<8x120xf32>
    %22 = vector.extract_strided_slice %18 {offsets = [8, 0], sizes = [8, 16], strides = [1, 1]} : vector<200x16xf32> to vector<8x16xf32>
    %c16 = arith.constant 16 : index
    %c0_10 = arith.constant 0 : index
    %23 = vector.load %arg4[%c16, %c0_10] : memref<400x120xf32, #tpu.memory_space<vmem>>, vector<16x120xf32>
    %cst_11 = arith.constant dense<0.000000e+00> : vector<8x120xf32>
    %24 = tpu.matmul %22, %23, %cst_11 {dimension_numbers = #tpu.dot_dimension_numbers<[1], [0], [0], [1], [0, 0, 1, 1], [], []>} : vector<8x16xf32>, vector<16x120xf32>, vector<8x120xf32> -> vector<8x120xf32>
    %25 = vector.extract_strided_slice %18 {offsets = [16, 0], sizes = [8, 16], strides = [1, 1]} : vector<200x16xf32> to vector<8x16xf32>
    %c32 = arith.constant 32 : index
    %c0_12 = arith.constant 0 : index
    %26 = vector.load %arg4[%c32, %c0_12] : memref<400x120xf32, #tpu.memory_space<vmem>>, vector<16x120xf32>
    %cst_13 = arith.constant dense<0.000000e+00> : vector<8x120xf32>
    %27 = tpu.matmul %25, %26, %cst_13 {dimension_numbers = #tpu.dot_dimension_numbers<[1], [0], [0], [1], [0, 0, 1, 1], [], []>} : vector<8x16xf32>, vector<16x120xf32>, vector<8x120xf32> -> vector<8x120xf32>
    %28 = vector.extract_strided_slice %18 {offsets = [24, 0], sizes = [8, 16], strides = [1, 1]} : vector<200x16xf32> to vector<8x16xf32>
    %c48 = arith.constant 48 : index
    %c0_14 = arith.constant 0 : index
    %29 = vector.load %arg4[%c48, %c0_14] : memref<400x120xf32, #tpu.memory_space<vmem>>, vector<16x120xf32>
    %cst_15 = arith.constant dense<0.000000e+00> : vector<8x120xf32>
    %30 = tpu.matmul %28, %29, %cst_15 {dimension_numbers = #tpu.dot_dimension_numbers<[1], [0], [0], [1], [0, 0, 1, 1], [], []>} : vector<8x16xf32>, vector<16x120xf32>, vector<8x120xf32> -> vector<8x120xf32>
    %31 = vector.extract_strided_slice %18 {offsets = [32, 0], sizes = [8, 16], strides = [1, 1]} : vector<200x16xf32> to vector<8x16xf32>
    %c64 = arith.constant 64 : index
    %c0_16 = arith.constant 0 : index
    %32 = vector.load %arg4[%c64, %c0_16] : memref<400x120xf32, #tpu.memory_space<vmem>>, vector<16x120xf32>
    %cst_17 = arith.constant dense<0.000000e+00> : vector<8x120xf32>
    %33 = tpu.matmul %31, %32, %cst_17 {dimension_numbers = #tpu.dot_dimension_numbers<[1], [0], [0], [1], [0, 0, 1, 1], [], []>} : vector<8x16xf32>, vector<16x120xf32>, vector<8x120xf32> -> vector<8x120xf32>
    %34 = vector.extract_strided_slice %18 {offsets = [40, 0], sizes = [8, 16], strides = [1, 1]} : vector<200x16xf32> to vector<8x16xf32>
    %c80 = arith.constant 80 : index
    %c0_18 = arith.constant 0 : index
    %35 = vector.load %arg4[%c80, %c0_18] : memref<400x120xf32, #tpu.memory_space<vmem>>, vector<16x120xf32>
    %cst_19 = arith.constant dense<0.000000e+00> : vector<8x120xf32>
    %36 = tpu.matmul %34, %35, %cst_19 {dimension_numbers = #tpu.dot_dimension_numbers<[1], [0], [0], [1], [0, 0, 1, 1], [], []>} : vector<8x16xf32>, vector<16x120xf32>, vector<8x120xf32> -> vector<8x120xf32>
    %37 = vector.extract_strided_slice %18 {offsets = [48, 0], sizes = [8, 16], strides = [1, 1]} : vector<200x16xf32> to vector<8x16xf32>
    %c96 = arith.constant 96 : index
    %c0_20 = arith.constant 0 : index
    %38 = vector.load %arg4[%c96, %c0_20] : memref<400x120xf32, #tpu.memory_space<vmem>>, vector<16x120xf32>
    %cst_21 = arith.constant dense<0.000000e+00> : vector<8x120xf32>
    %39 = tpu.matmul %37, %38, %cst_21 {dimension_numbers = #tpu.dot_dimension_numbers<[1], [0], [0], [1], [0, 0, 1, 1], [], []>} : vector<8x16xf32>, vector<16x120xf32>, vector<8x120xf32> -> vector<8x120xf32>
    %40 = vector.extract_strided_slice %18 {offsets = [56, 0], sizes = [8, 16], strides = [1, 1]} : vector<200x16xf32> to vector<8x16xf32>
    %c112 = arith.constant 112 : index
    %c0_22 = arith.constant 0 : index
    %41 = vector.load %arg4[%c112, %c0_22] : memref<400x120xf32, #tpu.memory_space<vmem>>, vector<16x120xf32>
    %cst_23 = arith.constant dense<0.000000e+00> : vector<8x120xf32>
    %42 = tpu.matmul %40, %41, %cst_23 {dimension_numbers = #tpu.dot_dimension_numbers<[1], [0], [0], [1], [0, 0, 1, 1], [], []>} : vector<8x16xf32>, vector<16x120xf32>, vector<8x120xf32> -> vector<8x120xf32>
    %43 = vector.extract_strided_slice %18 {offsets = [64, 0], sizes = [8, 16], strides = [1, 1]} : vector<200x16xf32> to vector<8x16xf32>
    %c128 = arith.constant 128 : index
    %c0_24 = arith.constant 0 : index
    %44 = vector.load %arg4[%c128, %c0_24] : memref<400x120xf32, #tpu.memory_space<vmem>>, vector<16x120xf32>
    %cst_25 = arith.constant dense<0.000000e+00> : vector<8x120xf32>
    %45 = tpu.matmul %43, %44, %cst_25 {dimension_numbers = #tpu.dot_dimension_numbers<[1], [0], [0], [1], [0, 0, 1, 1], [], []>} : vector<8x16xf32>, vector<16x120xf32>, vector<8x120xf32> -> vector<8x120xf32>
    %46 = vector.extract_strided_slice %18 {offsets = [72, 0], sizes = [8, 16], strides = [1, 1]} : vector<200x16xf32> to vector<8x16xf32>
    %c144 = arith.constant 144 : index
    %c0_26 = arith.constant 0 : index
    %47 = vector.load %arg4[%c144, %c0_26] : memref<400x120xf32, #tpu.memory_space<vmem>>, vector<16x120xf32>
    %cst_27 = arith.constant dense<0.000000e+00> : vector<8x120xf32>
    %48 = tpu.matmul %46, %47, %cst_27 {dimension_numbers = #tpu.dot_dimension_numbers<[1], [0], [0], [1], [0, 0, 1, 1], [], []>} : vector<8x16xf32>, vector<16x120xf32>, vector<8x120xf32> -> vector<8x120xf32>
    %49 = vector.extract_strided_slice %18 {offsets = [80, 0], sizes = [8, 16], strides = [1, 1]} : vector<200x16xf32> to vector<8x16xf32>
    %c160 = arith.constant 160 : index
    %c0_28 = arith.constant 0 : index
    %50 = vector.load %arg4[%c160, %c0_28] : memref<400x120xf32, #tpu.memory_space<vmem>>, vector<16x120xf32>
    %cst_29 = arith.constant dense<0.000000e+00> : vector<8x120xf32>
    %51 = tpu.matmul %49, %50, %cst_29 {dimension_numbers = #tpu.dot_dimension_numbers<[1], [0], [0], [1], [0, 0, 1, 1], [], []>} : vector<8x16xf32>, vector<16x120xf32>, vector<8x120xf32> -> vector<8x120xf32>
    %52 = vector.extract_strided_slice %18 {offsets = [88, 0], sizes = [8, 16], strides = [1, 1]} : vector<200x16xf32> to vector<8x16xf32>
    %c176 = arith.constant 176 : index
    %c0_30 = arith.constant 0 : index
    %53 = vector.load %arg4[%c176, %c0_30] : memref<400x120xf32, #tpu.memory_space<vmem>>, vector<16x120xf32>
    %cst_31 = arith.constant dense<0.000000e+00> : vector<8x120xf32>
    %54 = tpu.matmul %52, %53, %cst_31 {dimension_numbers = #tpu.dot_dimension_numbers<[1], [0], [0], [1], [0, 0, 1, 1], [], []>} : vector<8x16xf32>, vector<16x120xf32>, vector<8x120xf32> -> vector<8x120xf32>
    %55 = vector.extract_strided_slice %18 {offsets = [96, 0], sizes = [8, 16], strides = [1, 1]} : vector<200x16xf32> to vector<8x16xf32>
    %c192 = arith.constant 192 : index
    %c0_32 = arith.constant 0 : index
    %56 = vector.load %arg4[%c192, %c0_32] : memref<400x120xf32, #tpu.memory_space<vmem>>, vector<16x120xf32>
    %cst_33 = arith.constant dense<0.000000e+00> : vector<8x120xf32>
    %57 = tpu.matmul %55, %56, %cst_33 {dimension_numbers = #tpu.dot_dimension_numbers<[1], [0], [0], [1], [0, 0, 1, 1], [], []>} : vector<8x16xf32>, vector<16x120xf32>, vector<8x120xf32> -> vector<8x120xf32>
    %58 = vector.extract_strided_slice %18 {offsets = [104, 0], sizes = [8, 16], strides = [1, 1]} : vector<200x16xf32> to vector<8x16xf32>
    %c208 = arith.constant 208 : index
    %c0_34 = arith.constant 0 : index
    %59 = vector.load %arg4[%c208, %c0_34] : memref<400x120xf32, #tpu.memory_space<vmem>>, vector<16x120xf32>
    %cst_35 = arith.constant dense<0.000000e+00> : vector<8x120xf32>
    %60 = tpu.matmul %58, %59, %cst_35 {dimension_numbers = #tpu.dot_dimension_numbers<[1], [0], [0], [1], [0, 0, 1, 1], [], []>} : vector<8x16xf32>, vector<16x120xf32>, vector<8x120xf32> -> vector<8x120xf32>
    %61 = vector.extract_strided_slice %18 {offsets = [112, 0], sizes = [8, 16], strides = [1, 1]} : vector<200x16xf32> to vector<8x16xf32>
    %c224 = arith.constant 224 : index
    %c0_36 = arith.constant 0 : index
    %62 = vector.load %arg4[%c224, %c0_36] : memref<400x120xf32, #tpu.memory_space<vmem>>, vector<16x120xf32>
    %cst_37 = arith.constant dense<0.000000e+00> : vector<8x120xf32>
    %63 = tpu.matmul %61, %62, %cst_37 {dimension_numbers = #tpu.dot_dimension_numbers<[1], [0], [0], [1], [0, 0, 1, 1], [], []>} : vector<8x16xf32>, vector<16x120xf32>, vector<8x120xf32> -> vector<8x120xf32>
    %64 = vector.extract_strided_slice %18 {offsets = [120, 0], sizes = [8, 16], strides = [1, 1]} : vector<200x16xf32> to vector<8x16xf32>
    %c240 = arith.constant 240 : index
    %c0_38 = arith.constant 0 : index
    %65 = vector.load %arg4[%c240, %c0_38] : memref<400x120xf32, #tpu.memory_space<vmem>>, vector<16x120xf32>
    %cst_39 = arith.constant dense<0.000000e+00> : vector<8x120xf32>
    %66 = tpu.matmul %64, %65, %cst_39 {dimension_numbers = #tpu.dot_dimension_numbers<[1], [0], [0], [1], [0, 0, 1, 1], [], []>} : vector<8x16xf32>, vector<16x120xf32>, vector<8x120xf32> -> vector<8x120xf32>
    %67 = vector.extract_strided_slice %18 {offsets = [128, 0], sizes = [8, 16], strides = [1, 1]} : vector<200x16xf32> to vector<8x16xf32>
    %c256 = arith.constant 256 : index
    %c0_40 = arith.constant 0 : index
    %68 = vector.load %arg4[%c256, %c0_40] : memref<400x120xf32, #tpu.memory_space<vmem>>, vector<16x120xf32>
    %cst_41 = arith.constant dense<0.000000e+00> : vector<8x120xf32>
    %69 = tpu.matmul %67, %68, %cst_41 {dimension_numbers = #tpu.dot_dimension_numbers<[1], [0], [0], [1], [0, 0, 1, 1], [], []>} : vector<8x16xf32>, vector<16x120xf32>, vector<8x120xf32> -> vector<8x120xf32>
    %70 = vector.extract_strided_slice %18 {offsets = [136, 0], sizes = [8, 16], strides = [1, 1]} : vector<200x16xf32> to vector<8x16xf32>
    %c272 = arith.constant 272 : index
    %c0_42 = arith.constant 0 : index
    %71 = vector.load %arg4[%c272, %c0_42] : memref<400x120xf32, #tpu.memory_space<vmem>>, vector<16x120xf32>
    %cst_43 = arith.constant dense<0.000000e+00> : vector<8x120xf32>
    %72 = tpu.matmul %70, %71, %cst_43 {dimension_numbers = #tpu.dot_dimension_numbers<[1], [0], [0], [1], [0, 0, 1, 1], [], []>} : vector<8x16xf32>, vector<16x120xf32>, vector<8x120xf32> -> vector<8x120xf32>
    %73 = vector.extract_strided_slice %18 {offsets = [144, 0], sizes = [8, 16], strides = [1, 1]} : vector<200x16xf32> to vector<8x16xf32>
    %c288 = arith.constant 288 : index
    %c0_44 = arith.constant 0 : index
    %74 = vector.load %arg4[%c288, %c0_44] : memref<400x120xf32, #tpu.memory_space<vmem>>, vector<16x120xf32>
    %cst_45 = arith.constant dense<0.000000e+00> : vector<8x120xf32>
    %75 = tpu.matmul %73, %74, %cst_45 {dimension_numbers = #tpu.dot_dimension_numbers<[1], [0], [0], [1], [0, 0, 1, 1], [], []>} : vector<8x16xf32>, vector<16x120xf32>, vector<8x120xf32> -> vector<8x120xf32>
    %76 = vector.extract_strided_slice %18 {offsets = [152, 0], sizes = [8, 16], strides = [1, 1]} : vector<200x16xf32> to vector<8x16xf32>
    %c304 = arith.constant 304 : index
    %c0_46 = arith.constant 0 : index
    %77 = vector.load %arg4[%c304, %c0_46] : memref<400x120xf32, #tpu.memory_space<vmem>>, vector<16x120xf32>
    %cst_47 = arith.constant dense<0.000000e+00> : vector<8x120xf32>
    %78 = tpu.matmul %76, %77, %cst_47 {dimension_numbers = #tpu.dot_dimension_numbers<[1], [0], [0], [1], [0, 0, 1, 1], [], []>} : vector<8x16xf32>, vector<16x120xf32>, vector<8x120xf32> -> vector<8x120xf32>
    %79 = vector.extract_strided_slice %18 {offsets = [160, 0], sizes = [8, 16], strides = [1, 1]} : vector<200x16xf32> to vector<8x16xf32>
    %c320 = arith.constant 320 : index
    %c0_48 = arith.constant 0 : index
    %80 = vector.load %arg4[%c320, %c0_48] : memref<400x120xf32, #tpu.memory_space<vmem>>, vector<16x120xf32>
    %cst_49 = arith.constant dense<0.000000e+00> : vector<8x120xf32>
    %81 = tpu.matmul %79, %80, %cst_49 {dimension_numbers = #tpu.dot_dimension_numbers<[1], [0], [0], [1], [0, 0, 1, 1], [], []>} : vector<8x16xf32>, vector<16x120xf32>, vector<8x120xf32> -> vector<8x120xf32>
    %82 = vector.extract_strided_slice %18 {offsets = [168, 0], sizes = [8, 16], strides = [1, 1]} : vector<200x16xf32> to vector<8x16xf32>
    %c336 = arith.constant 336 : index
    %c0_50 = arith.constant 0 : index
    %83 = vector.load %arg4[%c336, %c0_50] : memref<400x120xf32, #tpu.memory_space<vmem>>, vector<16x120xf32>
    %cst_51 = arith.constant dense<0.000000e+00> : vector<8x120xf32>
    %84 = tpu.matmul %82, %83, %cst_51 {dimension_numbers = #tpu.dot_dimension_numbers<[1], [0], [0], [1], [0, 0, 1, 1], [], []>} : vector<8x16xf32>, vector<16x120xf32>, vector<8x120xf32> -> vector<8x120xf32>
    %85 = vector.extract_strided_slice %18 {offsets = [176, 0], sizes = [8, 16], strides = [1, 1]} : vector<200x16xf32> to vector<8x16xf32>
    %c352 = arith.constant 352 : index
    %c0_52 = arith.constant 0 : index
    %86 = vector.load %arg4[%c352, %c0_52] : memref<400x120xf32, #tpu.memory_space<vmem>>, vector<16x120xf32>
    %cst_53 = arith.constant dense<0.000000e+00> : vector<8x120xf32>
    %87 = tpu.matmul %85, %86, %cst_53 {dimension_numbers = #tpu.dot_dimension_numbers<[1], [0], [0], [1], [0, 0, 1, 1], [], []>} : vector<8x16xf32>, vector<16x120xf32>, vector<8x120xf32> -> vector<8x120xf32>
    %88 = vector.extract_strided_slice %18 {offsets = [184, 0], sizes = [8, 16], strides = [1, 1]} : vector<200x16xf32> to vector<8x16xf32>
    %c368 = arith.constant 368 : index
    %c0_54 = arith.constant 0 : index
    %89 = vector.load %arg4[%c368, %c0_54] : memref<400x120xf32, #tpu.memory_space<vmem>>, vector<16x120xf32>
    %cst_55 = arith.constant dense<0.000000e+00> : vector<8x120xf32>
    %90 = tpu.matmul %88, %89, %cst_55 {dimension_numbers = #tpu.dot_dimension_numbers<[1], [0], [0], [1], [0, 0, 1, 1], [], []>} : vector<8x16xf32>, vector<16x120xf32>, vector<8x120xf32> -> vector<8x120xf32>
    %91 = vector.extract_strided_slice %18 {offsets = [192, 0], sizes = [8, 16], strides = [1, 1]} : vector<200x16xf32> to vector<8x16xf32>
    %c384 = arith.constant 384 : index
    %c0_56 = arith.constant 0 : index
    %92 = vector.load %arg4[%c384, %c0_56] : memref<400x120xf32, #tpu.memory_space<vmem>>, vector<16x120xf32>
    %cst_57 = arith.constant dense<0.000000e+00> : vector<8x120xf32>
    %93 = tpu.matmul %91, %92, %cst_57 {dimension_numbers = #tpu.dot_dimension_numbers<[1], [0], [0], [1], [0, 0, 1, 1], [], []>} : vector<8x16xf32>, vector<16x120xf32>, vector<8x120xf32> -> vector<8x120xf32>
    %94 = arith.addf %21, %24 : vector<8x120xf32>
    %95 = arith.addf %27, %30 : vector<8x120xf32>
    %96 = arith.addf %33, %36 : vector<8x120xf32>
    %97 = arith.addf %39, %42 : vector<8x120xf32>
    %98 = arith.addf %45, %48 : vector<8x120xf32>
    %99 = arith.addf %51, %54 : vector<8x120xf32>
    %100 = arith.addf %57, %60 : vector<8x120xf32>
    %101 = arith.addf %63, %66 : vector<8x120xf32>
    %102 = arith.addf %69, %72 : vector<8x120xf32>
    %103 = arith.addf %75, %78 : vector<8x120xf32>
    %104 = arith.addf %81, %84 : vector<8x120xf32>
    %105 = arith.addf %87, %90 : vector<8x120xf32>
    %106 = arith.addf %94, %95 : vector<8x120xf32>
    %107 = arith.addf %96, %97 : vector<8x120xf32>
    %108 = arith.addf %98, %99 : vector<8x120xf32>
    %109 = arith.addf %100, %101 : vector<8x120xf32>
    %110 = arith.addf %102, %103 : vector<8x120xf32>
    %111 = arith.addf %104, %105 : vector<8x120xf32>
    %112 = arith.addf %106, %107 : vector<8x120xf32>
    %113 = arith.addf %108, %109 : vector<8x120xf32>
    %114 = arith.addf %110, %111 : vector<8x120xf32>
    %115 = arith.addf %112, %113 : vector<8x120xf32>
    %116 = arith.addf %114, %93 : vector<8x120xf32>
    %117 = arith.addf %115, %116 : vector<8x120xf32>
    %c0_58 = arith.constant 0 : index
    %c0_59 = arith.constant 0 : index
    %118 = vector.load %arg5[%c0_58, %c0_59] : memref<1x120xf32, #tpu.memory_space<vmem>>, vector<1x120xf32>
    %119 = vector.broadcast %118 : vector<1x120xf32> to vector<8x120xf32>
    %120 = arith.addf %117, %119 : vector<8x120xf32>
    %121 = arith.negf %120 : vector<8x120xf32>
    %122 = math.exp %121 : vector<8x120xf32>
    %cst_60 = arith.constant 1.000000e+00 : f32
    %123 = vector.broadcast %cst_60 : f32 to vector<8x120xf32>
    %124 = arith.addf %123, %122 : vector<8x120xf32>
    %125 = arith.divf %123, %124 : vector<8x120xf32>
    %c0_61 = arith.constant 0 : index
    %c0_62 = arith.constant 0 : index
    %126 = vector.load %arg6[%c0_61, %c0_62] : memref<120x84xf32, #tpu.memory_space<vmem>>, vector<120x84xf32>
    %cst_63 = arith.constant dense<0.000000e+00> : vector<8x84xf32>
    %127 = tpu.matmul %125, %126, %cst_63 {dimension_numbers = #tpu.dot_dimension_numbers<[1], [0], [0], [1], [0, 0, 1, 1], [], []>} : vector<8x120xf32>, vector<120x84xf32>, vector<8x84xf32> -> vector<8x84xf32>
    %c0_64 = arith.constant 0 : index
    %c0_65 = arith.constant 0 : index
    %128 = vector.load %arg7[%c0_64, %c0_65] : memref<1x84xf32, #tpu.memory_space<vmem>>, vector<1x84xf32>
    %129 = vector.broadcast %128 : vector<1x84xf32> to vector<8x84xf32>
    %130 = arith.addf %127, %129 : vector<8x84xf32>
    %131 = arith.negf %130 : vector<8x84xf32>
    %132 = math.exp %131 : vector<8x84xf32>
    %cst_66 = arith.constant 1.000000e+00 : f32
    %133 = vector.broadcast %cst_66 : f32 to vector<8x84xf32>
    %134 = arith.addf %133, %132 : vector<8x84xf32>
    %135 = arith.divf %133, %134 : vector<8x84xf32>
    %c0_67 = arith.constant 0 : index
    %c0_68 = arith.constant 0 : index
    %136 = vector.load %arg8[%c0_67, %c0_68] : memref<84x128xf32, #tpu.memory_space<vmem>>, vector<84x128xf32>
    %cst_69 = arith.constant dense<0.000000e+00> : vector<8x128xf32>
    %137 = tpu.matmul %135, %136, %cst_69 {dimension_numbers = #tpu.dot_dimension_numbers<[1], [0], [0], [1], [0, 0, 1, 1], [], []>} : vector<8x84xf32>, vector<84x128xf32>, vector<8x128xf32> -> vector<8x128xf32>
    %c0_70 = arith.constant 0 : index
    %c0_71 = arith.constant 0 : index
    %138 = vector.load %arg9[%c0_70, %c0_71] : memref<1x128xf32, #tpu.memory_space<vmem>>, vector<1x128xf32>
    %139 = vector.broadcast %138 : vector<1x128xf32> to vector<8x128xf32>
    %140 = arith.addf %137, %139 : vector<8x128xf32>
    %c0_72 = arith.constant 0 : index
    %c0_73 = arith.constant 0 : index
    %c0_74 = arith.constant 0 : index
    %141 = vector.load %arg10[%c0_72, %c0_73, %c0_74] : memref<1x8x128xf32, #tpu.memory_space<vmem>>, vector<1x8x128xf32>
    %142 = vector.shape_cast %141 : vector<1x8x128xf32> to vector<8x128xf32>
    %143 = vector.shape_cast %140 : vector<8x128xf32> to vector<1x8x128xf32>
    tpu.vector_store %arg10[%c0_72, %c0_73, %c0_74], %143 {strides = array<i32>} : memref<1x8x128xf32, #tpu.memory_space<vmem>>, vector<1x8x128xf32>,
    return
  }
  func.func @transform_0(%arg0: i32) -> (i32, i32, i32) {
    %c0_i32 = arith.constant 0 : i32
    %c0_i32_0 = arith.constant 0 : i32
    %c0_i32_1 = arith.constant 0 : i32
    return %arg0, %c0_i32, %c0_i32_0 : i32, i32, i32
  }
  func.func @transform_1(%arg0: i32) -> (i32, i32) {
    %c0_i32 = arith.constant 0 : i32
    %c0_i32_0 = arith.constant 0 : i32
    %c0_i32_1 = arith.constant 0 : i32
    return %c0_i32, %c0_i32_0 : i32, i32
  }
  func.func @transform_2(%arg0: i32) -> (i32, i32) {
    %c0_i32 = arith.constant 0 : i32
    %c0_i32_0 = arith.constant 0 : i32
    %c0_i32_1 = arith.constant 0 : i32
    return %c0_i32, %c0_i32_0 : i32, i32
  }
  func.func @transform_3(%arg0: i32) -> (i32, i32) {
    %c0_i32 = arith.constant 0 : i32
    %c0_i32_0 = arith.constant 0 : i32
    %c0_i32_1 = arith.constant 0 : i32
    return %c0_i32, %c0_i32_0 : i32, i32
  }
  func.func @transform_4(%arg0: i32) -> (i32, i32) {
    %c0_i32 = arith.constant 0 : i32
    %c0_i32_0 = arith.constant 0 : i32
    %c0_i32_1 = arith.constant 0 : i32
    return %c0_i32, %c0_i32_0 : i32, i32
  }
  func.func @transform_5(%arg0: i32) -> (i32, i32) {
    %c0_i32 = arith.constant 0 : i32
    %c0_i32_0 = arith.constant 0 : i32
    %c0_i32_1 = arith.constant 0 : i32
    return %c0_i32, %c0_i32_0 : i32, i32
  }
  func.func @transform_6(%arg0: i32) -> (i32, i32) {
    %c0_i32 = arith.constant 0 : i32
    %c0_i32_0 = arith.constant 0 : i32
    %c0_i32_1 = arith.constant 0 : i32
    return %c0_i32, %c0_i32_0 : i32, i32
  }
  func.func @transform_7(%arg0: i32) -> (i32, i32) {
    %c0_i32 = arith.constant 0 : i32
    %c0_i32_0 = arith.constant 0 : i32
    %c0_i32_1 = arith.constant 0 : i32
    return %c0_i32, %c0_i32_0 : i32, i32
  }
  func.func @transform_8(%arg0: i32) -> (i32, i32) {
    %c0_i32 = arith.constant 0 : i32
    %c0_i32_0 = arith.constant 0 : i32
    %c0_i32_1 = arith.constant 0 : i32
    return %c0_i32, %c0_i32_0 : i32, i32
  }
  func.func @transform_9(%arg0: i32) -> (i32, i32, i32) {
    %c0_i32 = arith.constant 0 : i32
    %c0_i32_0 = arith.constant 0 : i32
    %c0_i32_1 = arith.constant 0 : i32
    return %arg0, %c0_i32, %c0_i32_0 : i32, i32, i32
  }
}

</mosaic_0001>

<llo_original>
// kernel: grnn_lenet_forward.2
$region0: #{grnn_lenet_forward.2}
  #allocation0 [shape = 'u32[]', space=smem, size = 0x4, offset = 0x4, fixed_abs, tag = 'smem constant byte address 0x4 - core index']
  #allocation1 [shape = 'u32[144,128]{1,0:T(1,128)}', space=vmem, size = 0x12000, scoped, tag = 'internal scratch']
  %s0 = inlined_call_operand.vmem [shape: f32[1,300,1568], index: 0, kind: input, shape index: {}]
  %s1 = inlined_call_operand.vmem [shape: f32[32,300], index: 1, kind: input, shape index: {}]
  %s2 = inlined_call_operand.vmem [shape: f32[8,1], index: 2, kind: input, shape index: {}]
  %s3 = inlined_call_operand.vmem [shape: f32[1,8,1568], index: 3, kind: output, shape index: {}]
  %s4 = sld [smem:[#allocation0]]
  $region22: #{grnn_lenet_forward.2} parent=0
    _
  %s6 = ssub.s32 1, %s4
  %s7 = scalar_select 0, %s6, %s4
  // Predicated region
  $region2: #{grnn_lenet_forward.2} parent=0 // pred_check
    _
  $region3: #{grnn_lenet_forward.2} parent=0 // pred_check_branch
    %9 = sbr.rel (0) target = $region5
  $region4: #{grnn_lenet_forward.2} parent=0 // pred_region
    _
  $region5: #{grnn_lenet_forward.2} parent=0 // pred_fallthru
    _
  // Predicated region
  $region6: #{grnn_lenet_forward.2} parent=0 // pred_check
    _
  $region7: #{grnn_lenet_forward.2} parent=0 // pred_check_branch
    %11 = sbr.rel (0) target = $region9
  $region8: #{grnn_lenet_forward.2} parent=0 // pred_region
    _
  $region9: #{grnn_lenet_forward.2} parent=0 // pred_fallthru
    _
  // Predicated region
  $region10: #{grnn_lenet_forward.2} parent=0 // pred_check
    _
  $region11: #{grnn_lenet_forward.2} parent=0 // pred_check_branch
    %13 = sbr.rel (0) target = $region13
  $region12: #{grnn_lenet_forward.2} parent=0 // pred_region
    _
  $region13: #{grnn_lenet_forward.2} parent=0 // pred_fallthru
    _
  %v14 = vld [vmem:[%s1] sm:$0xff]
  %v15 = vld [vmem:[%s1 + $0x8] sm:$0xff]
  %v16 = vld [vmem:[%s1 + $0x10] sm:$0xff]
  %v17 = vld [vmem:[%s1 + $0x18] sm:$0xff]
  %v18 = vld [vmem:[%s1 + $0x20] sm:$0xff]
  %v19 = vld [vmem:[%s1 + $0x28] sm:$0xff]
  %v20 = vld [vmem:[%s1 + $0x30] sm:$0xff]
  %v21 = vld [vmem:[%s1 + $0x38] sm:$0xff]
  %v22 = vld [vmem:[%s1 + $0x40] sm:$0xff]
  %v23 = vld [vmem:[%s1 + $0x48] sm:$0xff]
  %v24 = vld [vmem:[%s1 + $0x50] sm:$0xff]
  %v25 = vld [vmem:[%s1 + $0x58] sm:$0xff]
  %v26 = vld [vmem:[%s0] sm:$0xff]
  %v27 = vld [vmem:[%s0 + $0x8] sm:$0xff]
  %v28 = vld [vmem:[%s0 + $0x10] sm:$0xff]
  %v29 = vld [vmem:[%s0 + $0x18] sm:$0xff]
  %v30 = vld [vmem:[%s0 + $0x20] sm:$0xff]
  %v31 = vld [vmem:[%s0 + $0x28] sm:$0xff]
  %v32 = vld [vmem:[%s0 + $0x30] sm:$0xff]
  %v33 = vld [vmem:[%s0 + $0x38] sm:$0xff]
  %v34 = vld [vmem:[%s0 + $0x40] sm:$0xff]
  %v35 = vld [vmem:[%s0 + $0x48] sm:$0xff]
  %v36 = vld [vmem:[%s0 + $0x50] sm:$0xff]
  %v37 = vld [vmem:[%s0 + $0x58] sm:$0xff]
  %v38 = vld [vmem:[%s0 + $0x60] sm:$0xff]
  %v39 = vld [vmem:[%s0 + $0x68] sm:$0xff]
  %v40 = vld [vmem:[%s0 + $0x70] sm:$0xff]
  %v41 = vld [vmem:[%s0 + $0x78] sm:$0xff]
  %v42 = vld [vmem:[%s0 + $0x80] sm:$0xff]
  %v43 = vld [vmem:[%s0 + $0x88] sm:$0xff]
  %v44 = vld [vmem:[%s0 + $0x90] sm:$0xff]
  %v45 = vld [vmem:[%s0 + $0x98] sm:$0xff]
  %v46 = vld [vmem:[%s0 + $0xa0] sm:$0xff]
  %v47 = vld [vmem:[%s0 + $0xa8] sm:$0xff]
  %v48 = vld [vmem:[%s0 + $0xb0] sm:$0xff]
  %v49 = vld [vmem:[%s0 + $0xb8] sm:$0xff]
  %v50 = vld [vmem:[%s0 + $0xc0] sm:$0xff]
  %v51 = vld [vmem:[%s0 + $0xc8] sm:$0xff]
  %v52 = vld [vmem:[%s0 + $0xd0] sm:$0xff]
  %v53 = vld [vmem:[%s0 + $0xd8] sm:$0xff]
  %v54 = vld [vmem:[%s0 + $0xe0] sm:$0xff]
  %v55 = vld [vmem:[%s0 + $0xe8] sm:$0xff]
  %v56 = vld [vmem:[%s0 + $0xf0] sm:$0xff]
  %v57 = vld [vmem:[%s0 + $0xf8] sm:$0xff]
  %v58 = vld [vmem:[%s0 + $0x100] sm:$0xff]
  %v59 = vld [vmem:[%s0 + $0x108] sm:$0xff]
  %v60 = vld [vmem:[%s0 + $0x110] sm:$0xff]
  %v61 = vld [vmem:[%s0 + $0x118] sm:$0xff]
  %v62 = vld [vmem:[%s0 + $0x120] sm:$0xff]
  %v63 = vld [vmem:[%s0 + $0x128] sm:$0xff]
  %v64 = vld [vmem:[%s0 + $0x130] sm:$0xff]
  %v65 = vld [vmem:[%s0 + $0x138] sm:$0xff]
  %v66 = vld [vmem:[%s0 + $0x140] sm:$0xff]
  %v67 = vld [vmem:[%s0 + $0x148] sm:$0xff]
  %v68 = vld [vmem:[%s0 + $0x150] sm:$0xff]
  %v69 = vld [vmem:[%s0 + $0x158] sm:$0xff]
  %v70 = vld [vmem:[%s0 + $0x160] sm:$0xff]
  %v71 = vld [vmem:[%s0 + $0x168] sm:$0xff]
  %v72 = vld [vmem:[%s0 + $0x170] sm:$0xff]
  %v73 = vld [vmem:[%s0 + $0x178] sm:$0xff]
  %v74 = vld [vmem:[%s0 + $0x180] sm:$0xff]
  %v75 = vld [vmem:[%s0 + $0x188] sm:$0xff]
  %v76 = vld [vmem:[%s0 + $0x190] sm:$0xff]
  %v77 = vld [vmem:[%s0 + $0x198] sm:$0xff]
  %v78 = vld [vmem:[%s0 + $0x1a0] sm:$0xff]
  %v79 = vld [vmem:[%s0 + $0x1a8] sm:$0xff]
  %v80 = vld [vmem:[%s0 + $0x1b0] sm:$0xff]
  %v81 = vld [vmem:[%s0 + $0x1b8] sm:$0xff]
  %v82 = vld [vmem:[%s0 + $0x1c0] sm:$0xff]
  %v83 = vld [vmem:[%s0 + $0x1c8] sm:$0xff]
  %v84 = vld [vmem:[%s0 + $0x1d0] sm:$0xff]
  %v85 = vld [vmem:[%s0 + $0x1d8] sm:$0xff]
  %v86 = vld [vmem:[%s0 + $0x1e0] sm:$0xff]
  %v87 = vld [vmem:[%s0 + $0x1e8] sm:$0xff]
  %v88 = vld [vmem:[%s0 + $0x1f0] sm:$0xff]
  %v89 = vld [vmem:[%s0 + $0x1f8] sm:$0xff]
  %v90 = vld [vmem:[%s0 + $0x200] sm:$0xff]
  %v91 = vld [vmem:[%s0 + $0x208] sm:$0xff]
  %v92 = vld [vmem:[%s0 + $0x210] sm:$0xff]
  %v93 = vld [vmem:[%s0 + $0x218] sm:$0xff]
  %v94 = vld [vmem:[%s0 + $0x220] sm:$0xff]
  %v95 = vld [vmem:[%s0 + $0x228] sm:$0xff]
  %v96 = vld [vmem:[%s0 + $0x230] sm:$0xff]
  %v97 = vld [vmem:[%s0 + $0x238] sm:$0xff]
  %v98 = vld [vmem:[%s0 + $0x240] sm:$0xff]
  %v99 = vld [vmem:[%s0 + $0x248] sm:$0xff]
  %v100 = vld [vmem:[%s0 + $0x250] sm:$0xff]
  %v101 = vld [vmem:[%s0 + $0x258] sm:$0xff]
  %v102 = vld [vmem:[%s0 + $0x260] sm:$0xff]
  %v103 = vld [vmem:[%s0 + $0x268] sm:$0xff]
  %v104 = vld [vmem:[%s0 + $0x270] sm:$0xff]
  %v105 = vld [vmem:[%s0 + $0x278] sm:$0xff]
  %v106 = vld [vmem:[%s0 + $0x280] sm:$0xff]
  %v107 = vld [vmem:[%s0 + $0x288] sm:$0xff]
  %v108 = vld [vmem:[%s0 + $0x290] sm:$0xff]
  %v109 = vld [vmem:[%s0 + $0x298] sm:$0xff]
  %v110 = vld [vmem:[%s0 + $0x2a0] sm:$0xff]
  %v111 = vld [vmem:[%s0 + $0x2a8] sm:$0xff]
  %v112 = vld [vmem:[%s0 + $0x2b0] sm:$0xff]
  %v113 = vld [vmem:[%s0 + $0x2b8] sm:$0xff]
  %v114 = vld [vmem:[%s0 + $0x2c0] sm:$0xff]
  %v115 = vld [vmem:[%s0 + $0x2c8] sm:$0xff]
  %v116 = vld [vmem:[%s0 + $0x2d0] sm:$0xff]
  %v117 = vld [vmem:[%s0 + $0x2d8] sm:$0xff]
  %v118 = vld [vmem:[%s0 + $0x2e0] sm:$0xff]
  %v119 = vld [vmem:[%s0 + $0x2e8] sm:$0xff]
  %v120 = vld [vmem:[%s0 + $0x2f0] sm:$0xff]
  %v121 = vld [vmem:[%s0 + $0x2f8] sm:$0xff]
  %v122 = vld [vmem:[%s0 + $0x300] sm:$0xff]
  %v123 = vld [vmem:[%s0 + $0x308] sm:$0xff]
  %v124 = vld [vmem:[%s0 + $0x310] sm:$0xff]
  %v125 = vld [vmem:[%s0 + $0x318] sm:$0xff]
  %v126 = vld [vmem:[%s0 + $0x320] sm:$0xff]
  %v127 = vld [vmem:[%s0 + $0x328] sm:$0xff]
  %v128 = vld [vmem:[%s0 + $0x330] sm:$0xff]
  %v129 = vld [vmem:[%s0 + $0x338] sm:$0xff]
  %v130 = vld [vmem:[%s0 + $0x340] sm:$0xff]
  %v131 = vld [vmem:[%s0 + $0x348] sm:$0xff]
  %v132 = vld [vmem:[%s0 + $0x350] sm:$0xff]
  %v133 = vld [vmem:[%s0 + $0x358] sm:$0xff]
  %v134 = vld [vmem:[%s0 + $0x360] sm:$0xff]
  %v135 = vld [vmem:[%s0 + $0x368] sm:$0xff]
  %v136 = vld [vmem:[%s0 + $0x370] sm:$0xff]
  %v137 = vld [vmem:[%s0 + $0x378] sm:$0xff]
  %v138 = vld [vmem:[%s0 + $0x380] sm:$0xff]
  %v139 = vld [vmem:[%s0 + $0x388] sm:$0xff]
  %v140 = vld [vmem:[%s0 + $0x390] sm:$0xff]
  %v141 = vld [vmem:[%s0 + $0x398] sm:$0xff]
  %v142 = vld [vmem:[%s0 + $0x3a0] sm:$0xff]
  %v143 = vld [vmem:[%s0 + $0x3a8] sm:$0xff]
  %v144 = vld [vmem:[%s0 + $0x3b0] sm:$0xff]
  %v145 = vld [vmem:[%s0 + $0x3b8] sm:$0xff]
  %v146 = vld [vmem:[%s0 + $0x3c0] sm:$0xff]
  %v147 = vld [vmem:[%s0 + $0x3c8] sm:$0xff]
  %v148 = vld [vmem:[%s0 + $0x3d0] sm:$0xff]
  %v149 = vld [vmem:[%s0 + $0x3d8] sm:$0xff]
  %v150 = vld [vmem:[%s0 + $0x3e0] sm:$0xff]
  %v151 = vld [vmem:[%s0 + $0x3e8] sm:$0xff]
  %v152 = vld [vmem:[%s0 + $0x3f0] sm:$0xff]
  %v153 = vld [vmem:[%s0 + $0x3f8] sm:$0xff]
  %v154 = vld [vmem:[%s0 + $0x400] sm:$0xff]
  %v155 = vld [vmem:[%s0 + $0x408] sm:$0xff]
  %v156 = vld [vmem:[%s0 + $0x410] sm:$0xff]
  %v157 = vld [vmem:[%s0 + $0x418] sm:$0xff]
  %v158 = vld [vmem:[%s0 + $0x420] sm:$0xff]
  %v159 = vld [vmem:[%s0 + $0x428] sm:$0xff]
  %v160 = vld [vmem:[%s0 + $0x430] sm:$0xff]
  %v161 = vld [vmem:[%s0 + $0x438] sm:$0xff]
  %v162 = vld [vmem:[%s0 + $0x440] sm:$0xff]
  %v163 = vld [vmem:[%s0 + $0x448] sm:$0xff]
  %v164 = vld [vmem:[%s0 + $0x450] sm:$0xff]
  %v165 = vld [vmem:[%s0 + $0x458] sm:$0xff]
  %v166 = vld [vmem:[%s0 + $0x460] sm:$0xff]
  %v167 = vld [vmem:[%s0 + $0x468] sm:$0xff]
  %v168 = vld [vmem:[%s0 + $0x470] sm:$0xff]
  %v169 = vld [vmem:[%s0 + $0x478] sm:$0xff]
  %v170 = vld [vmem:[%s0 + $0x480] sm:$0xff]
  %v171 = vld [vmem:[%s0 + $0x488] sm:$0xff]
  %v172 = vld [vmem:[%s0 + $0x490] sm:$0xff]
  %v173 = vld [vmem:[%s0 + $0x498] sm:$0xff]
  %v174 = vld [vmem:[%s0 + $0x4a0] sm:$0xff]
  %v175 = vld [vmem:[%s0 + $0x4a8] sm:$0xff]
  %v176 = vld [vmem:[%s0 + $0x4b0] sm:$0xff]
  %v177 = vld [vmem:[%s0 + $0x4b8] sm:$0xff]
  %v178 = vld [vmem:[%s0 + $0x4c0] sm:$0xff]
  %v179 = vld [vmem:[%s0 + $0x4c8] sm:$0xff]
  %v180 = vld [vmem:[%s0 + $0x4d0] sm:$0xff]
  %v181 = vld [vmem:[%s0 + $0x4d8] sm:$0xff]
  %v182 = vld [vmem:[%s0 + $0x4e0] sm:$0xff]
  %v183 = vld [vmem:[%s0 + $0x4e8] sm:$0xff]
  %v184 = vld [vmem:[%s0 + $0x4f0] sm:$0xff]
  %v185 = vld [vmem:[%s0 + $0x4f8] sm:$0xff]
  %v186 = vld [vmem:[%s0 + $0x500] sm:$0xff]
  %v187 = vld [vmem:[%s0 + $0x508] sm:$0xff]
  %v188 = vld [vmem:[%s0 + $0x510] sm:$0xff]
  %v189 = vld [vmem:[%s0 + $0x518] sm:$0xff]
  %v190 = vld [vmem:[%s0 + $0x520] sm:$0xff]
  %v191 = vld [vmem:[%s0 + $0x528] sm:$0xff]
  %v192 = vld [vmem:[%s0 + $0x530] sm:$0xff]
  %v193 = vld [vmem:[%s0 + $0x538] sm:$0xff]
  %v194 = vld [vmem:[%s0 + $0x540] sm:$0xff]
  %v195 = vld [vmem:[%s0 + $0x548] sm:$0xff]
  %v196 = vld [vmem:[%s0 + $0x550] sm:$0xff]
  %v197 = vld [vmem:[%s0 + $0x558] sm:$0xff]
  %v198 = vld [vmem:[%s0 + $0x560] sm:$0xff]
  %v199 = vld [vmem:[%s0 + $0x568] sm:$0xff]
  %v200 = vld [vmem:[%s0 + $0x570] sm:$0xff]
  %v201 = vld [vmem:[%s0 + $0x578] sm:$0xff]
  %v202 = vld [vmem:[%s0 + $0x580] sm:$0xff]
  %v203 = vld [vmem:[%s0 + $0x588] sm:$0xff]
  %v204 = vld [vmem:[%s0 + $0x590] sm:$0xff]
  %v205 = vld [vmem:[%s0 + $0x598] sm:$0xff]
  %v206 = vld [vmem:[%s0 + $0x5a0] sm:$0xff]
  %v207 = vld [vmem:[%s0 + $0x5a8] sm:$0xff]
  %v208 = vld [vmem:[%s0 + $0x5b0] sm:$0xff]
  %v209 = vld [vmem:[%s0 + $0x5b8] sm:$0xff]
  %v210 = vld [vmem:[%s0 + $0x5c0] sm:$0xff]
  %v211 = vld [vmem:[%s0 + $0x5c8] sm:$0xff]
  %v212 = vld [vmem:[%s0 + $0x5d0] sm:$0xff]
  %v213 = vld [vmem:[%s0 + $0x5d8] sm:$0xff]
  %v214 = vld [vmem:[%s0 + $0x5e0] sm:$0xff]
  %v215 = vld [vmem:[%s0 + $0x5e8] sm:$0xff]
  %v216 = vld [vmem:[%s0 + $0x5f0] sm:$0xff]
  %v217 = vld [vmem:[%s0 + $0x5f8] sm:$0xff]
  %v218 = vld [vmem:[%s0 + $0x600] sm:$0xff]
  %v219 = vld [vmem:[%s0 + $0x608] sm:$0xff]
  %v220 = vld [vmem:[%s0 + $0x610] sm:$0xff]
  %v221 = vld [vmem:[%s0 + $0x618] sm:$0xff]
  %v222 = vld [vmem:[%s0 + $0x620] sm:$0xff]
  %v223 = vld [vmem:[%s0 + $0x628] sm:$0xff]
  %v224 = vld [vmem:[%s0 + $0x630] sm:$0xff]
  %v225 = vld [vmem:[%s0 + $0x638] sm:$0xff]
  %v226 = vld [vmem:[%s0 + $0x640] sm:$0xff]
  %v227 = vld [vmem:[%s0 + $0x648] sm:$0xff]
  %v228 = vld [vmem:[%s0 + $0x650] sm:$0xff]
  %v229 = vld [vmem:[%s0 + $0x658] sm:$0xff]
  %v230 = vld [vmem:[%s0 + $0x660] sm:$0xff]
  %v231 = vld [vmem:[%s0 + $0x668] sm:$0xff]
  %v232 = vld [vmem:[%s0 + $0x670] sm:$0xff]
  %v233 = vld [vmem:[%s0 + $0x678] sm:$0xff]
  %v234 = vld [vmem:[%s0 + $0x680] sm:$0xff]
  %v235 = vld [vmem:[%s0 + $0x688] sm:$0xff]
  %v236 = vld [vmem:[%s0 + $0x690] sm:$0xff]
  %v237 = vld [vmem:[%s0 + $0x698] sm:$0xff]
  %v238 = vld [vmem:[%s0 + $0x6a0] sm:$0xff]
  %v239 = vld [vmem:[%s0 + $0x6a8] sm:$0xff]
  %v240 = vld [vmem:[%s0 + $0x6b0] sm:$0xff]
  %v241 = vld [vmem:[%s0 + $0x6b8] sm:$0xff]
  %v242 = vld [vmem:[%s0 + $0x6c0] sm:$0xff]
  %v243 = vld [vmem:[%s0 + $0x6c8] sm:$0xff]
  %v244 = vld [vmem:[%s0 + $0x6d0] sm:$0xff]
  %v245 = vld [vmem:[%s0 + $0x6d8] sm:$0xff]
  %v246 = vld [vmem:[%s0 + $0x6e0] sm:$0xff]
  %v247 = vld [vmem:[%s0 + $0x6e8] sm:$0xff]
  %v248 = vld [vmem:[%s0 + $0x6f0] sm:$0xff]
  %v249 = vld [vmem:[%s0 + $0x6f8] sm:$0xff]
  %v250 = vld [vmem:[%s0 + $0x700] sm:$0xff]
  %v251 = vld [vmem:[%s0 + $0x708] sm:$0xff]
  %v252 = vld [vmem:[%s0 + $0x710] sm:$0xff]
  %v253 = vld [vmem:[%s0 + $0x718] sm:$0xff]
  %v254 = vld [vmem:[%s0 + $0x720] sm:$0xff]
  %v255 = vld [vmem:[%s0 + $0x728] sm:$0xff]
  %v256 = vld [vmem:[%s0 + $0x730] sm:$0xff]
  %v257 = vld [vmem:[%s0 + $0x738] sm:$0xff]
  %v258 = vld [vmem:[%s0 + $0x740] sm:$0xff]
  %v259 = vld [vmem:[%s0 + $0x748] sm:$0xff]
  %v260 = vld [vmem:[%s0 + $0x750] sm:$0xff]
  %v261 = vld [vmem:[%s0 + $0x758] sm:$0xff]
  %v262 = vld [vmem:[%s0 + $0x760] sm:$0xff]
  %v263 = vld [vmem:[%s0 + $0x768] sm:$0xff]
  %v264 = vld [vmem:[%s0 + $0x770] sm:$0xff]
  %v265 = vld [vmem:[%s0 + $0x778] sm:$0xff]
  %v266 = vld [vmem:[%s0 + $0x780] sm:$0xff]
  %v267 = vld [vmem:[%s0 + $0x788] sm:$0xff]
  %v268 = vld [vmem:[%s0 + $0x790] sm:$0xff]
  %v269 = vld [vmem:[%s0 + $0x798] sm:$0xff]
  %v270 = vld [vmem:[%s0 + $0x7a0] sm:$0xff]
  %v271 = vld [vmem:[%s0 + $0x7a8] sm:$0xff]
  %v272 = vld [vmem:[%s0 + $0x7b0] sm:$0xff]
  %v273 = vld [vmem:[%s0 + $0x7b8] sm:$0xff]
  %v274 = vld [vmem:[%s0 + $0x7c0] sm:$0xff]
  %v275 = vld [vmem:[%s0 + $0x7c8] sm:$0xff]
  %v276 = vld [vmem:[%s0 + $0x7d0] sm:$0xff]
  %v277 = vld [vmem:[%s0 + $0x7d8] sm:$0xff]
  %v278 = vld [vmem:[%s0 + $0x7e0] sm:$0xff]
  %v279 = vld [vmem:[%s0 + $0x7e8] sm:$0xff]
  %v280 = vld [vmem:[%s0 + $0x7f0] sm:$0xff]
  %v281 = vld [vmem:[%s0 + $0x7f8] sm:$0xff]
  %v282 = vld [vmem:[%s0 + $0x800] sm:$0xff]
  %v283 = vld [vmem:[%s0 + $0x808] sm:$0xff]
  %v284 = vld [vmem:[%s0 + $0x810] sm:$0xff]
  %v285 = vld [vmem:[%s0 + $0x818] sm:$0xff]
  %v286 = vld [vmem:[%s0 + $0x820] sm:$0xff]
  %v287 = vld [vmem:[%s0 + $0x828] sm:$0xff]
  %v288 = vld [vmem:[%s0 + $0x830] sm:$0xff]
  %v289 = vld [vmem:[%s0 + $0x838] sm:$0xff]
  %v290 = vld [vmem:[%s0 + $0x840] sm:$0xff]
  %v291 = vld [vmem:[%s0 + $0x848] sm:$0xff]
  %v292 = vld [vmem:[%s0 + $0x850] sm:$0xff]
  %v293 = vld [vmem:[%s0 + $0x858] sm:$0xff]
  %v294 = vld [vmem:[%s0 + $0x860] sm:$0xff]
  %v295 = vld [vmem:[%s0 + $0x868] sm:$0xff]
  %v296 = vld [vmem:[%s0 + $0x870] sm:$0xff]
  %v297 = vld [vmem:[%s0 + $0x878] sm:$0xff]
  %v298 = vld [vmem:[%s0 + $0x880] sm:$0xff]
  %v299 = vld [vmem:[%s0 + $0x888] sm:$0xff]
  %v300 = vld [vmem:[%s0 + $0x890] sm:$0xff]
  %v301 = vld [vmem:[%s0 + $0x898] sm:$0xff]
  %v302 = vld [vmem:[%s0 + $0x8a0] sm:$0xff]
  %v303 = vld [vmem:[%s0 + $0x8a8] sm:$0xff]
  %v304 = vld [vmem:[%s0 + $0x8b0] sm:$0xff]
  %v305 = vld [vmem:[%s0 + $0x8b8] sm:$0xff]
  %v306 = vld [vmem:[%s0 + $0x8c0] sm:$0xff]
  %v307 = vld [vmem:[%s0 + $0x8c8] sm:$0xff]
  %v308 = vld [vmem:[%s0 + $0x8d0] sm:$0xff]
  %v309 = vld [vmem:[%s0 + $0x8d8] sm:$0xff]
  %v310 = vld [vmem:[%s0 + $0x8e0] sm:$0xff]
  %v311 = vld [vmem:[%s0 + $0x8e8] sm:$0xff]
  %v312 = vld [vmem:[%s0 + $0x8f0] sm:$0xff]
  %v313 = vld [vmem:[%s0 + $0x8f8] sm:$0xff]
  %v314 = vld [vmem:[%s0 + $0x900] sm:$0xff]
  %v315 = vld [vmem:[%s0 + $0x908] sm:$0xff]
  %v316 = vld [vmem:[%s0 + $0x910] sm:$0xff]
  %v317 = vld [vmem:[%s0 + $0x918] sm:$0xff]
  %v318 = vld [vmem:[%s0 + $0x920] sm:$0xff]
  %v319 = vld [vmem:[%s0 + $0x928] sm:$0xff]
  %v320 = vld [vmem:[%s0 + $0x930] sm:$0xff]
  %v321 = vld [vmem:[%s0 + $0x938] sm:$0xff]
  %v322 = vld [vmem:[%s0 + $0x940] sm:$0xff]
  %v323 = vld [vmem:[%s0 + $0x948] sm:$0xff]
  %v324 = vld [vmem:[%s0 + $0x950] sm:$0xff]
  %v325 = vld [vmem:[%s0 + $0x958] sm:$0xff]
  %v326 = vld [vmem:[%s0 + $0x960] sm:$0xff]
  %v327 = vld [vmem:[%s0 + $0x968] sm:$0xff]
  %v328 = vld [vmem:[%s0 + $0x970] sm:$0xff]
  %v329 = vld [vmem:[%s0 + $0x978] sm:$0xff]
  %v330 = vld [vmem:[%s0 + $0x980] sm:$0xff]
  %v331 = vld [vmem:[%s0 + $0x988] sm:$0xff]
  %v332 = vld [vmem:[%s0 + $0x990] sm:$0xff]
  %v333 = vld [vmem:[%s0 + $0x998] sm:$0xff]
  %v334 = vld [vmem:[%s0 + $0x9a0] sm:$0xff]
  %v335 = vld [vmem:[%s0 + $0x9a8] sm:$0xff]
  %v336 = vld [vmem:[%s0 + $0x9b0] sm:$0xff]
  %v337 = vld [vmem:[%s0 + $0x9b8] sm:$0xff]
  %v338 = vld [vmem:[%s0 + $0x9c0] sm:$0xff]
  %v339 = vld [vmem:[%s0 + $0x9c8] sm:$0xff]
  %v340 = vld [vmem:[%s0 + $0x9d0] sm:$0xff]
  %v341 = vld [vmem:[%s0 + $0x9d8] sm:$0xff]
  %v342 = vld [vmem:[%s0 + $0x9e0] sm:$0xff]
  %v343 = vld [vmem:[%s0 + $0x9e8] sm:$0xff]
  %v344 = vld [vmem:[%s0 + $0x9f0] sm:$0xff]
  %v345 = vld [vmem:[%s0 + $0x9f8] sm:$0xff]
  %v346 = vld [vmem:[%s0 + $0xa00] sm:$0xff]
  %v347 = vld [vmem:[%s0 + $0xa08] sm:$0xff]
  %v348 = vld [vmem:[%s0 + $0xa10] sm:$0xff]
  %v349 = vld [vmem:[%s0 + $0xa18] sm:$0xff]
  %v350 = vld [vmem:[%s0 + $0xa20] sm:$0xff]
  %v351 = vld [vmem:[%s0 + $0xa28] sm:$0xff]
  %v352 = vld [vmem:[%s0 + $0xa30] sm:$0xff]
  %v353 = vld [vmem:[%s0 + $0xa38] sm:$0xff]
  %v354 = vld [vmem:[%s0 + $0xa40] sm:$0xff]
  %v355 = vld [vmem:[%s0 + $0xa48] sm:$0xff]
  %v356 = vld [vmem:[%s0 + $0xa50] sm:$0xff]
  %v357 = vld [vmem:[%s0 + $0xa58] sm:$0xff]
  %v358 = vld [vmem:[%s0 + $0xa60] sm:$0xff]
  %v359 = vld [vmem:[%s0 + $0xa68] sm:$0xff]
  %v360 = vld [vmem:[%s0 + $0xa70] sm:$0xff]
  %v361 = vld [vmem:[%s0 + $0xa78] sm:$0xff]
  %v362 = vld [vmem:[%s0 + $0xa80] sm:$0xff]
  %v363 = vld [vmem:[%s0 + $0xa88] sm:$0xff]
  %v364 = vld [vmem:[%s0 + $0xa90] sm:$0xff]
  %v365 = vld [vmem:[%s0 + $0xa98] sm:$0xff]
  %v366 = vld [vmem:[%s0 + $0xaa0] sm:$0xff]
  %v367 = vld [vmem:[%s0 + $0xaa8] sm:$0xff]
  %v368 = vld [vmem:[%s0 + $0xab0] sm:$0xff]
  %v369 = vld [vmem:[%s0 + $0xab8] sm:$0xff]
  %v370 = vld [vmem:[%s0 + $0xac0] sm:$0xff]
  %v371 = vld [vmem:[%s0 + $0xac8] sm:$0xff]
  %v372 = vld [vmem:[%s0 + $0xad0] sm:$0xff]
  %v373 = vld [vmem:[%s0 + $0xad8] sm:$0xff]
  %v374 = vld [vmem:[%s0 + $0xae0] sm:$0xff]
  %v375 = vld [vmem:[%s0 + $0xae8] sm:$0xff]
  %v376 = vld [vmem:[%s0 + $0xaf0] sm:$0xff]
  %v377 = vld [vmem:[%s0 + $0xaf8] sm:$0xff]
  %v378 = vld [vmem:[%s0 + $0xb00] sm:$0xff]
  %v379 = vld [vmem:[%s0 + $0xb08] sm:$0xff]
  %v380 = vld [vmem:[%s0 + $0xb10] sm:$0xff]
  %v381 = vld [vmem:[%s0 + $0xb18] sm:$0xff]
  %v382 = vld [vmem:[%s0 + $0xb20] sm:$0xff]
  %v383 = vld [vmem:[%s0 + $0xb28] sm:$0xff]
  %v384 = vld [vmem:[%s0 + $0xb30] sm:$0xff]
  %v385 = vld [vmem:[%s0 + $0xb38] sm:$0xff]
  %v386 = vld [vmem:[%s0 + $0xb40] sm:$0xff]
  %v387 = vld [vmem:[%s0 + $0xb48] sm:$0xff]
  %v388 = vld [vmem:[%s0 + $0xb50] sm:$0xff]
  %v389 = vld [vmem:[%s0 + $0xb58] sm:$0xff]
  %v390 = vld [vmem:[%s0 + $0xb60] sm:$0xff]
  %v391 = vld [vmem:[%s0 + $0xb68] sm:$0xff]
  %v392 = vld [vmem:[%s0 + $0xb70] sm:$0xff]
  %v393 = vld [vmem:[%s0 + $0xb78] sm:$0xff]
  %v394 = vld [vmem:[%s0 + $0xb80] sm:$0xff]
  %v395 = vld [vmem:[%s0 + $0xb88] sm:$0xff]
  %v396 = vld [vmem:[%s0 + $0xb90] sm:$0xff]
  %v397 = vld [vmem:[%s0 + $0xb98] sm:$0xff]
  %v398 = vld [vmem:[%s0 + $0xba0] sm:$0xff]
  %v399 = vld [vmem:[%s0 + $0xba8] sm:$0xff]
  %v400 = vld [vmem:[%s0 + $0xbb0] sm:$0xff]
  %v401 = vld [vmem:[%s0 + $0xbb8] sm:$0xff]
  %v402 = vld [vmem:[%s0 + $0xbc0] sm:$0xff]
  %v403 = vld [vmem:[%s0 + $0xbc8] sm:$0xff]
  %v404 = vld [vmem:[%s0 + $0xbd0] sm:$0xff]
  %v405 = vld [vmem:[%s0 + $0xbd8] sm:$0xff]
  %v406 = vld [vmem:[%s0 + $0xbe0] sm:$0xff]
  %v407 = vld [vmem:[%s0 + $0xbe8] sm:$0xff]
  %v408 = vld [vmem:[%s0 + $0xbf0] sm:$0xff]
  %v409 = vld [vmem:[%s0 + $0xbf8] sm:$0xff]
  %v410 = vld [vmem:[%s0 + $0xc00] sm:$0xff]
  %v411 = vld [vmem:[%s0 + $0xc08] sm:$0xff]
  %v412 = vld [vmem:[%s0 + $0xc10] sm:$0xff]
  %v413 = vld [vmem:[%s0 + $0xc18] sm:$0xff]
  %v414 = vld [vmem:[%s0 + $0xc20] sm:$0xff]
  %v415 = vld [vmem:[%s0 + $0xc28] sm:$0xff]
  %v416 = vld [vmem:[%s0 + $0xc30] sm:$0xff]
  %v417 = vld [vmem:[%s0 + $0xc38] sm:$0xff]
  %v418 = vld [vmem:[%s0 + $0xc40] sm:$0xff]
  %v419 = vld [vmem:[%s0 + $0xc48] sm:$0xff]
  %v420 = vld [vmem:[%s0 + $0xc50] sm:$0xff]
  %v421 = vld [vmem:[%s0 + $0xc58] sm:$0xff]
  %v422 = vld [vmem:[%s0 + $0xc60] sm:$0xff]
  %v423 = vld [vmem:[%s0 + $0xc68] sm:$0xff]
  %v424 = vld [vmem:[%s0 + $0xc70] sm:$0xff]
  %v425 = vld [vmem:[%s0 + $0xc78] sm:$0xff]
  %v426 = vld [vmem:[%s0 + $0xc80] sm:$0xff]
  %v427 = vld [vmem:[%s0 + $0xc88] sm:$0xff]
  %v428 = vld [vmem:[%s0 + $0xc90] sm:$0xff]
  %v429 = vld [vmem:[%s0 + $0xc98] sm:$0xff]
  %v430 = vld [vmem:[%s0 + $0xca0] sm:$0xff]
  %v431 = vld [vmem:[%s0 + $0xca8] sm:$0xff]
  %v432 = vld [vmem:[%s0 + $0xcb0] sm:$0xff]
  %v433 = vld [vmem:[%s0 + $0xcb8] sm:$0xff]
  %v434 = vld [vmem:[%s0 + $0xcc0] sm:$0xff]
  %v435 = vld [vmem:[%s0 + $0xcc8] sm:$0xff]
  %v436 = vld [vmem:[%s0 + $0xcd0] sm:$0xff]
  %v437 = vld [vmem:[%s0 + $0xcd8] sm:$0xff]
  %v438 = vld [vmem:[%s0 + $0xce0] sm:$0xff]
  %v439 = vld [vmem:[%s0 + $0xce8] sm:$0xff]
  %v440 = vld [vmem:[%s0 + $0xcf0] sm:$0xff]
  %v441 = vld [vmem:[%s0 + $0xcf8] sm:$0xff]
  %v442 = vld [vmem:[%s0 + $0xd00] sm:$0xff]
  %v443 = vld [vmem:[%s0 + $0xd08] sm:$0xff]
  %v444 = vld [vmem:[%s0 + $0xd10] sm:$0xff]
  %v445 = vld [vmem:[%s0 + $0xd18] sm:$0xff]
  %v446 = vld [vmem:[%s0 + $0xd20] sm:$0xff]
  %v447 = vld [vmem:[%s0 + $0xd28] sm:$0xff]
  %v448 = vld [vmem:[%s0 + $0xd30] sm:$0xff]
  %v449 = vld [vmem:[%s0 + $0xd38] sm:$0xff]
  %v450 = vld [vmem:[%s0 + $0xd40] sm:$0xff]
  %v451 = vld [vmem:[%s0 + $0xd48] sm:$0xff]
  %v452 = vld [vmem:[%s0 + $0xd50] sm:$0xff]
  %v453 = vld [vmem:[%s0 + $0xd58] sm:$0xff]
  %v454 = vld [vmem:[%s0 + $0xd60] sm:$0xff]
  %v455 = vld [vmem:[%s0 + $0xd68] sm:$0xff]
  %v456 = vld [vmem:[%s0 + $0xd70] sm:$0xff]
  %v457 = vld [vmem:[%s0 + $0xd78] sm:$0xff]
  %v458 = vld [vmem:[%s0 + $0xd80] sm:$0xff]
  %v459 = vld [vmem:[%s0 + $0xd88] sm:$0xff]
  %v460 = vld [vmem:[%s0 + $0xd90] sm:$0xff]
  %v461 = vld [vmem:[%s0 + $0xd98] sm:$0xff]
  %v462 = vld [vmem:[%s0 + $0xda0] sm:$0xff]
  %v463 = vld [vmem:[%s0 + $0xda8] sm:$0xff]
  %v464 = vld [vmem:[%s0 + $0xdb0] sm:$0xff]
  %v465 = vld [vmem:[%s0 + $0xdb8] sm:$0xff]
  %v466 = vld [vmem:[%s0 + $0xdc0] sm:$0xff]
  %v467 = vld [vmem:[%s0 + $0xdc8] sm:$0xff]
  %v468 = vld [vmem:[%s0 + $0xdd0] sm:$0xff]
  %v469 = vld [vmem:[%s0 + $0xdd8] sm:$0xff]
  %v470 = vld [vmem:[%s0 + $0xde0] sm:$0xff]
  %v471 = vld [vmem:[%s0 + $0xde8] sm:$0xff]
  %v472 = vld [vmem:[%s0 + $0xdf0] sm:$0xff]
  %v473 = vld [vmem:[%s0 + $0xdf8] sm:$0xff]
  %v474 = vld [vmem:[%s0 + $0xe00] sm:$0xff]
  %v475 = vld [vmem:[%s0 + $0xe08] sm:$0xff]
  %v476 = vld [vmem:[%s0 + $0xe10] sm:$0xff]
  %v477 = vld [vmem:[%s0 + $0xe18] sm:$0xff]
  %v478 = vld [vmem:[%s0 + $0xe20] sm:$0xff]
  %v479 = vld [vmem:[%s0 + $0xe28] sm:$0xff]
  %v480 = vld [vmem:[%s0 + $0xe30] sm:$0xff]
  %v481 = vld [vmem:[%s0 + $0xe38] sm:$0xff]
  %v482 = vld [vmem:[%s0 + $0xe40] sm:$0xff]
  %v483 = vld [vmem:[%s0 + $0xe48] sm:$0xff]
  %v484 = vld [vmem:[%s0 + $0xe50] sm:$0xff]
  %v485 = vld [vmem:[%s0 + $0xe58] sm:$0xff]
  %v486 = vld [vmem:[%s0 + $0xe60] sm:$0xff]
  %v487 = vld [vmem:[%s0 + $0xe68] sm:$0xff]
  %v488 = vld [vmem:[%s0 + $0xe70] sm:$0xff]
  %v489 = vld [vmem:[%s0 + $0xe78] sm:$0xff]
  %v490 = vld [vmem:[%s0 + $0xe80] sm:$0xff]
  %v491 = vld [vmem:[%s0 + $0xe88] sm:$0xff]
  %v492 = vld [vmem:[%s0 + $0xe90] sm:$0xff]
  %v493 = vld [vmem:[%s0 + $0xe98] sm:$0xff]
  %v494 = vld [vmem:[%s0 + $0xea0] sm:$0xff]
  %v495 = vld [vmem:[%s0 + $0xea8] sm:$0xff]
  %v496 = vld [vmem:[%s0 + $0xeb0] sm:$0xff]
  %v497 = vld [vmem:[%s0 + $0xeb8] sm:$0xff]
  %v498 = vld [vmem:[%s0 + $0xec0] sm:$0xff]
  %v499 = vld [vmem:[%s0 + $0xec8] sm:$0xff]
  %v500 = vld [vmem:[%s0 + $0xed0] sm:$0xff]
  %v501 = vld [vmem:[%s0 + $0xed8] sm:$0xff]
  %v502 = vld [vmem:[%s0 + $0xee0] sm:$0xff]
  %v503 = vld [vmem:[%s0 + $0xee8] sm:$0xff]
  %v504 = vld [vmem:[%s0 + $0xef0] sm:$0xff]
  %v505 = vld [vmem:[%s0 + $0xef8] sm:$0xff]
  %v506 = vld [vmem:[%s0 + $0xf00] sm:$0xff]
  %v507 = vld [vmem:[%s0 + $0xf08] sm:$0xf]
  %v508 = vld [vmem:[%s0 + $0xf10] sm:$0xf]
  %v509 = vld [vmem:[%s0 + $0xf18] sm:$0xf]
  %v510 = vld [vmem:[%s0 + $0xf20] sm:$0xf]
  %v511 = vld [vmem:[%s0 + $0xf28] sm:$0xf]
  %v512 = vld [vmem:[%s0 + $0xf30] sm:$0xf]
  %v513 = vld [vmem:[%s0 + $0xf38] sm:$0xf]
  %v514 = vld [vmem:[%s0 + $0xf40] sm:$0xf]
  %v515 = vld [vmem:[%s0 + $0xf48] sm:$0xf]
  %v516 = vld [vmem:[%s0 + $0xf50] sm:$0xf]
  %v517 = vld [vmem:[%s0 + $0xf58] sm:$0xf]
  %v518 = vld [vmem:[%s0 + $0xf60] sm:$0xf]
  %v519 = vld [vmem:[%s0 + $0xf68] sm:$0xf]
  %vm520 = vcmask 359424
  %v522 = vsel %vm520, %v16, 0
  %v525 = vsel %vm520, %v19, 0
  %v528 = vsel %vm520, %v22, 0
  %v531 = vsel %vm520, %v25, 0
  %vm533 = vcmask 1043456
  %v535 = vsel %vm533, %v507, 0
  %v538 = vsel %vm533, %v508, 0
  %v541 = vsel %vm533, %v509, 0
  %v544 = vsel %vm533, %v510, 0
  %v547 = vsel %vm533, %v511, 0
  %v550 = vsel %vm533, %v512, 0
  %v553 = vsel %vm533, %v513, 0
  %v556 = vsel %vm533, %v514, 0
  %v559 = vsel %vm533, %v515, 0
  %v562 = vsel %vm533, %v516, 0
  %v565 = vsel %vm533, %v517, 0
  %v568 = vsel %vm533, %v518, 0
  %v571 = vsel %vm533, %v519, 0
  %573 = vmatprep.subr.mxu0 %v222
  %574 = vmatpush1.msra.mxu0 %v221
  %575 = vmatprep.subr.mxu0 %v209
  %576 = vmatpush1.msra.mxu0 %v208
  %577 = vmatprep.subr.mxu0 %v196
  %578 = vmatpush1.msra.mxu0 %v195
  %579 = vmatprep.subr.mxu0 %v183
  %580 = vmatpush1.msra.mxu0 %v182
  %581 = vmatprep.subr.mxu0 %v170
  %582 = vmatpush1.msra.mxu0 %v169
  %583 = vmatprep.subr.mxu0 %v157
  %584 = vmatpush1.msra.mxu0 %v156
  %585 = vmatprep.subr.mxu0 %v144
  %586 = vmatpush1.msra.mxu0 %v143
  %587 = vmatprep.subr.mxu0 %v131
  %588 = vmatpush1.msra.mxu0 %v130
  %589 = vmatprep.subr.mxu0 %v118
  %590 = vmatpush1.msra.mxu0 %v117
  %591 = vmatprep.subr.mxu0 %v105
  %592 = vmatpush1.msra.mxu0 %v104
  %593 = vmatprep.subr.mxu0 %v92
  %594 = vmatpush1.msra.mxu0 %v91
  %595 = vmatprep.subr.mxu0 %v79
  %596 = vmatpush1.msra.mxu0 %v78
  %597 = vmatprep.subr.mxu0 %v66
  %598 = vmatpush1.msra.mxu0 %v65
  %599 = vmatprep.subr.mxu0 %v53
  %600 = vmatpush1.msra.mxu0 %v52
  %601 = vmatprep.subr.mxu0 %v40
  %602 = vmatpush1.msra.mxu0 %v39
  %603 = vmatprep.subr.mxu0 %v27
  %604 = vmatpush1.msra.mxu0 %v26
  %605 = vmatprep.subr.mxu0 %v430
  %606 = vmatpush2.msra.mxu0 %v429
  %607 = vmatprep.subr.mxu0 %v417
  %608 = vmatpush2.msra.mxu0 %v416
  %609 = vmatprep.subr.mxu0 %v404
  %610 = vmatpush2.msra.mxu0 %v403
  %611 = vmatprep.subr.mxu0 %v391
  %612 = vmatpush2.msra.mxu0 %v390
  %613 = vmatprep.subr.mxu0 %v378
  %614 = vmatpush2.msra.mxu0 %v377
  %615 = vmatprep.subr.mxu0 %v365
  %616 = vmatpush2.msra.mxu0 %v364
  %617 = vmatprep.subr.mxu0 %v352
  %618 = vmatpush2.msra.mxu0 %v351
  %619 = vmatprep.subr.mxu0 %v339
  %620 = vmatpush2.msra.mxu0 %v338
  %621 = vmatprep.subr.mxu0 %v326
  %622 = vmatpush2.msra.mxu0 %v325
  %623 = vmatprep.subr.mxu0 %v313
  %624 = vmatpush2.msra.mxu0 %v312
  %625 = vmatprep.subr.mxu0 %v300
  %626 = vmatpush2.msra.mxu0 %v299
  %627 = vmatprep.subr.mxu0 %v287
  %628 = vmatpush2.msra.mxu0 %v286
  %629 = vmatprep.subr.mxu0 %v274
  %630 = vmatpush2.msra.mxu0 %v273
  %631 = vmatprep.subr.mxu0 %v261
  %632 = vmatpush2.msra.mxu0 %v260
  %633 = vmatprep.subr.mxu0 %v248
  %634 = vmatpush2.msra.mxu0 %v247
  %635 = vmatprep.subr.mxu0 %v235
  %636 = vmatpush2.msra.mxu0 %v234
  %637 = vmatprep.mubr.f32.mxu0 %v15
  %638 = vmatmul.mubr.f32.gmra.mxu0 %v14
  %v639 = vpop.f32.mrf.mxu0
  %v640 = vadd.f32 0.0, %v639
  %v641 = vpop.f32.mrf.mxu0
  %v642 = vadd.f32 0.0, %v641
  %643 = vmatprep.mubr.f32.mxu0 %v18
  %644 = vmatmul.mubr.f32.gmra.mxu0 %v17
  %v645 = vpop.f32.mrf.mxu0
  %v646 = vadd.f32 0.0, %v645
  %v647 = vpop.f32.mrf.mxu0
  %v648 = vadd.f32 0.0, %v647
  %649 = vmatprep.mubr.f32.mxu0 %v21
  %650 = vmatmul.mubr.f32.gmra.mxu0 %v20
  %v651 = vpop.f32.mrf.mxu0
  %v652 = vadd.f32 0.0, %v651
  %v653 = vpop.f32.mrf.mxu0
  %v654 = vadd.f32 0.0, %v653
  %655 = vmatprep.mubr.f32.mxu0 %v24
  %656 = vmatmul.mubr.f32.gmra.mxu0 %v23
  %v657 = vpop.f32.mrf.mxu0
  %v658 = vadd.f32 0.0, %v657
  %v659 = vpop.f32.mrf.mxu0
  %v660 = vadd.f32 0.0, %v659
  %661 = vdwg.mxu0
  %662 = vmatprep.subr.mxu0 0.0
  %663 = vmatpush1.msra.mxu0 0.0
  %664 = vmatprep.subr.mxu0 0.0
  %665 = vmatpush1.msra.mxu0 0.0
  %666 = vmatprep.subr.mxu0 0.0
  %667 = vmatpush1.msra.mxu0 0.0
  %668 = vmatprep.subr.mxu0 0.0
  %669 = vmatpush1.msra.mxu0 0.0
  %670 = vmatprep.subr.mxu0 0.0
  %671 = vmatpush1.msra.mxu0 0.0
  %672 = vmatprep.subr.mxu0 0.0
  %673 = vmatpush1.msra.mxu0 0.0
  %674 = vmatprep.subr.mxu0 0.0
  %675 = vmatpush1.msra.mxu0 0.0
  %676 = vmatprep.subr.mxu0 0.0
  %677 = vmatpush1.msra.mxu0 0.0
  %678 = vmatprep.subr.mxu0 0.0
  %679 = vmatpush1.msra.mxu0 0.0
  %680 = vmatprep.subr.mxu0 0.0
  %681 = vmatpush1.msra.mxu0 0.0
  %682 = vmatprep.subr.mxu0 %v538
  %683 = vmatpush1.msra.mxu0 %v535
  %684 = vmatprep.subr.mxu0 %v495
  %685 = vmatpush1.msra.mxu0 %v494
  %686 = vmatprep.subr.mxu0 %v482
  %687 = vmatpush1.msra.mxu0 %v481
  %688 = vmatprep.subr.mxu0 %v469
  %689 = vmatpush1.msra.mxu0 %v468
  %690 = vmatprep.subr.mxu0 %v456
  %691 = vmatpush1.msra.mxu0 %v455
  %692 = vmatprep.subr.mxu0 %v443
  %693 = vmatpush1.msra.mxu0 %v442
  %694 = vmatprep.subr.mxu0 0.0
  %695 = vmatpush2.msra.mxu0 0.0
  %696 = vmatprep.subr.mxu0 0.0
  %697 = vmatpush2.msra.mxu0 0.0
  %698 = vmatprep.subr.mxu0 0.0
  %699 = vmatpush2.msra.mxu0 0.0
  %700 = vmatprep.subr.mxu0 0.0
  %701 = vmatpush2.msra.mxu0 0.0
  %702 = vmatprep.subr.mxu0 0.0
  %703 = vmatpush2.msra.mxu0 0.0
  %704 = vmatprep.subr.mxu0 0.0
  %705 = vmatpush2.msra.mxu0 0.0
  %706 = vmatprep.subr.mxu0 0.0
  %707 = vmatpush2.msra.mxu0 0.0
  %708 = vmatprep.subr.mxu0 0.0
  %709 = vmatpush2.msra.mxu0 0.0
  %710 = vmatprep.subr.mxu0 0.0
  %711 = vmatpush2.msra.mxu0 0.0
  %712 = vmatprep.subr.mxu0 0.0
  %713 = vmatpush2.msra.mxu0 0.0
  %714 = vmatprep.subr.mxu0 0.0
  %715 = vmatpush2.msra.mxu0 0.0
  %716 = vmatprep.subr.mxu0 0.0
  %717 = vmatpush2.msra.mxu0 0.0
  %718 = vmatprep.subr.mxu0 0.0
  %719 = vmatpush2.msra.mxu0 0.0
  %720 = vmatprep.subr.mxu0 0.0
  %721 = vmatpush2.msra.mxu0 0.0
  %722 = vmatprep.subr.mxu0 0.0
  %723 = vmatpush2.msra.mxu0 0.0
  %724 = vmatprep.subr.mxu0 0.0
  %725 = vmatpush2.msra.mxu0 0.0
  %726 = vmatprep.mubr.f32.mxu0 0.0
  %727 = vmatmul.mubr.f32.gmra.mxu0 %v522
  %v728 = vpop.f32.mrf.mxu0
  %v729 = vadd.f32 %v640, %v728
  %v730 = vpop.f32.mrf.mxu0
  %v731 = vadd.f32 %v642, %v730
  %732 = vmatprep.mubr.f32.mxu0 0.0
  %733 = vmatmul.mubr.f32.gmra.mxu0 %v525
  %v734 = vpop.f32.mrf.mxu0
  %v735 = vadd.f32 %v646, %v734
  %v736 = vpop.f32.mrf.mxu0
  %v737 = vadd.f32 %v648, %v736
  %738 = vmatprep.mubr.f32.mxu0 0.0
  %739 = vmatmul.mubr.f32.gmra.mxu0 %v528
  %v740 = vpop.f32.mrf.mxu0
  %v741 = vadd.f32 %v652, %v740
  %v742 = vpop.f32.mrf.mxu0
  %v743 = vadd.f32 %v654, %v742
  %744 = vmatprep.mubr.f32.mxu0 0.0
  %745 = vmatmul.mubr.f32.gmra.mxu0 %v531
  %v746 = vpop.f32.mrf.mxu0
  %v747 = vadd.f32 %v658, %v746
  %v748 = vpop.f32.mrf.mxu0
  %v749 = vadd.f32 %v660, %v748
  %750 = vdwg.mxu0
  %751 = vmatprep.subr.mxu0 %v224
  %752 = vmatpush1.msra.mxu0 %v223
  %753 = vmatprep.subr.mxu0 %v211
  %754 = vmatpush1.msra.mxu0 %v210
  %755 = vmatprep.subr.mxu0 %v198
  %756 = vmatpush1.msra.mxu0 %v197
  %757 = vmatprep.subr.mxu0 %v185
  %758 = vmatpush1.msra.mxu0 %v184
  %759 = vmatprep.subr.mxu0 %v172
  %760 = vmatpush1.msra.mxu0 %v171
  %761 = vmatprep.subr.mxu0 %v159
  %762 = vmatpush1.msra.mxu0 %v158
  %763 = vmatprep.subr.mxu0 %v146
  %764 = vmatpush1.msra.mxu0 %v145
  %765 = vmatprep.subr.mxu0 %v133
  %766 = vmatpush1.msra.mxu0 %v132
  %767 = vmatprep.subr.mxu0 %v120
  %768 = vmatpush1.msra.mxu0 %v119
  %769 = vmatprep.subr.mxu0 %v107
  %770 = vmatpush1.msra.mxu0 %v106
  %771 = vmatprep.subr.mxu0 %v94
  %772 = vmatpush1.msra.mxu0 %v93
  %773 = vmatprep.subr.mxu0 %v81
  %774 = vmatpush1.msra.mxu0 %v80
  %775 = vmatprep.subr.mxu0 %v68
  %776 = vmatpush1.msra.mxu0 %v67
  %777 = vmatprep.subr.mxu0 %v55
  %778 = vmatpush1.msra.mxu0 %v54
  %779 = vmatprep.subr.mxu0 %v42
  %780 = vmatpush1.msra.mxu0 %v41
  %781 = vmatprep.subr.mxu0 %v29
  %782 = vmatpush1.msra.mxu0 %v28
  %783 = vmatprep.subr.mxu0 %v432
  %784 = vmatpush2.msra.mxu0 %v431
  %785 = vmatprep.subr.mxu0 %v419
  %786 = vmatpush2.msra.mxu0 %v418
  %787 = vmatprep.subr.mxu0 %v406
  %788 = vmatpush2.msra.mxu0 %v405
  %789 = vmatprep.subr.mxu0 %v393
  %790 = vmatpush2.msra.mxu0 %v392
  %791 = vmatprep.subr.mxu0 %v380
  %792 = vmatpush2.msra.mxu0 %v379
  %793 = vmatprep.subr.mxu0 %v367
  %794 = vmatpush2.msra.mxu0 %v366
  %795 = vmatprep.subr.mxu0 %v354
  %796 = vmatpush2.msra.mxu0 %v353
  %797 = vmatprep.subr.mxu0 %v341
  %798 = vmatpush2.msra.mxu0 %v340
  %799 = vmatprep.subr.mxu0 %v328
  %800 = vmatpush2.msra.mxu0 %v327
  %801 = vmatprep.subr.mxu0 %v315
  %802 = vmatpush2.msra.mxu0 %v314
  %803 = vmatprep.subr.mxu0 %v302
  %804 = vmatpush2.msra.mxu0 %v301
  %805 = vmatprep.subr.mxu0 %v289
  %806 = vmatpush2.msra.mxu0 %v288
  %807 = vmatprep.subr.mxu0 %v276
  %808 = vmatpush2.msra.mxu0 %v275
  %809 = vmatprep.subr.mxu0 %v263
  %810 = vmatpush2.msra.mxu0 %v262
  %811 = vmatprep.subr.mxu0 %v250
  %812 = vmatpush2.msra.mxu0 %v249
  %813 = vmatprep.subr.mxu0 %v237
  %814 = vmatpush2.msra.mxu0 %v236
  %815 = vmatprep.mubr.f32.mxu0 %v15
  %816 = vmatmul.mubr.f32.gmra.mxu0 %v14
  %v817 = vpop.f32.mrf.mxu0
  %v818 = vadd.f32 0.0, %v817
  %v819 = vpop.f32.mrf.mxu0
  %v820 = vadd.f32 0.0, %v819
  %821 = vmatprep.mubr.f32.mxu0 %v18
  %822 = vmatmul.mubr.f32.gmra.mxu0 %v17
  %v823 = vpop.f32.mrf.mxu0
  %v824 = vadd.f32 0.0, %v823
  %v825 = vpop.f32.mrf.mxu0
  %v826 = vadd.f32 0.0, %v825
  %827 = vmatprep.mubr.f32.mxu0 %v21
  %828 = vmatmul.mubr.f32.gmra.mxu0 %v20
  %v829 = vpop.f32.mrf.mxu0
  %v830 = vadd.f32 0.0, %v829
  %v831 = vpop.f32.mrf.mxu0
  %v832 = vadd.f32 0.0, %v831
  %833 = vmatprep.mubr.f32.mxu0 %v24
  %834 = vmatmul.mubr.f32.gmra.mxu0 %v23
  %v835 = vpop.f32.mrf.mxu0
  %v836 = vadd.f32 0.0, %v835
  %v837 = vpop.f32.mrf.mxu0
  %v838 = vadd.f32 0.0, %v837
  %839 = vdwg.mxu0
  %840 = vmatprep.subr.mxu0 0.0
  %841 = vmatpush1.msra.mxu0 0.0
  %842 = vmatprep.subr.mxu0 0.0
  %843 = vmatpush1.msra.mxu0 0.0
  %844 = vmatprep.subr.mxu0 0.0
  %845 = vmatpush1.msra.mxu0 0.0
  %846 = vmatprep.subr.mxu0 0.0
  %847 = vmatpush1.msra.mxu0 0.0
  %848 = vmatprep.subr.mxu0 0.0
  %849 = vmatpush1.msra.mxu0 0.0
  %850 = vmatprep.subr.mxu0 0.0
  %851 = vmatpush1.msra.mxu0 0.0
  %852 = vmatprep.subr.mxu0 0.0
  %853 = vmatpush1.msra.mxu0 0.0
  %854 = vmatprep.subr.mxu0 0.0
  %855 = vmatpush1.msra.mxu0 0.0
  %856 = vmatprep.subr.mxu0 0.0
  %857 = vmatpush1.msra.mxu0 0.0
  %858 = vmatprep.subr.mxu0 0.0
  %859 = vmatpush1.msra.mxu0 0.0
  %860 = vmatprep.subr.mxu0 %v544
  %861 = vmatpush1.msra.mxu0 %v541
  %862 = vmatprep.subr.mxu0 %v497
  %863 = vmatpush1.msra.mxu0 %v496
  %864 = vmatprep.subr.mxu0 %v484
  %865 = vmatpush1.msra.mxu0 %v483
  %866 = vmatprep.subr.mxu0 %v471
  %867 = vmatpush1.msra.mxu0 %v470
  %868 = vmatprep.subr.mxu0 %v458
  %869 = vmatpush1.msra.mxu0 %v457
  %870 = vmatprep.subr.mxu0 %v445
  %871 = vmatpush1.msra.mxu0 %v444
  %872 = vmatprep.subr.mxu0 0.0
  %873 = vmatpush2.msra.mxu0 0.0
  %874 = vmatprep.subr.mxu0 0.0
  %875 = vmatpush2.msra.mxu0 0.0
  %876 = vmatprep.subr.mxu0 0.0
  %877 = vmatpush2.msra.mxu0 0.0
  %878 = vmatprep.subr.mxu0 0.0
  %879 = vmatpush2.msra.mxu0 0.0
  %880 = vmatprep.subr.mxu0 0.0
  %881 = vmatpush2.msra.mxu0 0.0
  %882 = vmatprep.subr.mxu0 0.0
  %883 = vmatpush2.msra.mxu0 0.0
  %884 = vmatprep.subr.mxu0 0.0
  %885 = vmatpush2.msra.mxu0 0.0
  %886 = vmatprep.subr.mxu0 0.0
  %887 = vmatpush2.msra.mxu0 0.0
  %888 = vmatprep.subr.mxu0 0.0
  %889 = vmatpush2.msra.mxu0 0.0
  %890 = vmatprep.subr.mxu0 0.0
  %891 = vmatpush2.msra.mxu0 0.0
  %892 = vmatprep.subr.mxu0 0.0
  %893 = vmatpush2.msra.mxu0 0.0
  %894 = vmatprep.subr.mxu0 0.0
  %895 = vmatpush2.msra.mxu0 0.0
  %896 = vmatprep.subr.mxu0 0.0
  %897 = vmatpush2.msra.mxu0 0.0
  %898 = vmatprep.subr.mxu0 0.0
  %899 = vmatpush2.msra.mxu0 0.0
  %900 = vmatprep.subr.mxu0 0.0
  %901 = vmatpush2.msra.mxu0 0.0
  %902 = vmatprep.subr.mxu0 0.0
  %903 = vmatpush2.msra.mxu0 0.0
  %904 = vmatprep.mubr.f32.mxu0 0.0
  %905 = vmatmul.mubr.f32.gmra.mxu0 %v522
  %v906 = vpop.f32.mrf.mxu0
  %v907 = vadd.f32 %v818, %v906
  %v908 = vpop.f32.mrf.mxu0
  %v909 = vadd.f32 %v820, %v908
  %910 = vmatprep.mubr.f32.mxu0 0.0
  %911 = vmatmul.mubr.f32.gmra.mxu0 %v525
  %v912 = vpop.f32.mrf.mxu0
  %v913 = vadd.f32 %v824, %v912
  %v914 = vpop.f32.mrf.mxu0
  %v915 = vadd.f32 %v826, %v914
  %916 = vmatprep.mubr.f32.mxu0 0.0
  %917 = vmatmul.mubr.f32.gmra.mxu0 %v528
  %v918 = vpop.f32.mrf.mxu0
  %v919 = vadd.f32 %v830, %v918
  %v920 = vpop.f32.mrf.mxu0
  %v921 = vadd.f32 %v832, %v920
  %922 = vmatprep.mubr.f32.mxu0 0.0
  %923 = vmatmul.mubr.f32.gmra.mxu0 %v531
  %v924 = vpop.f32.mrf.mxu0
  %v925 = vadd.f32 %v836, %v924
  %v926 = vpop.f32.mrf.mxu0
  %v927 = vadd.f32 %v838, %v926
  %928 = vdwg.mxu0
  %929 = vmatprep.subr.mxu0 %v226
  %930 = vmatpush1.msra.mxu0 %v225
  %931 = vmatprep.subr.mxu0 %v213
  %932 = vmatpush1.msra.mxu0 %v212
  %933 = vmatprep.subr.mxu0 %v200
  %934 = vmatpush1.msra.mxu0 %v199
  %935 = vmatprep.subr.mxu0 %v187
  %936 = vmatpush1.msra.mxu0 %v186
  %937 = vmatprep.subr.mxu0 %v174
  %938 = vmatpush1.msra.mxu0 %v173
  %939 = vmatprep.subr.mxu0 %v161
  %940 = vmatpush1.msra.mxu0 %v160
  %941 = vmatprep.subr.mxu0 %v148
  %942 = vmatpush1.msra.mxu0 %v147
  %943 = vmatprep.subr.mxu0 %v135
  %944 = vmatpush1.msra.mxu0 %v134
  %945 = vmatprep.subr.mxu0 %v122
  %946 = vmatpush1.msra.mxu0 %v121
  %947 = vmatprep.subr.mxu0 %v109
  %948 = vmatpush1.msra.mxu0 %v108
  %949 = vmatprep.subr.mxu0 %v96
  %950 = vmatpush1.msra.mxu0 %v95
  %951 = vmatprep.subr.mxu0 %v83
  %952 = vmatpush1.msra.mxu0 %v82
  %953 = vmatprep.subr.mxu0 %v70
  %954 = vmatpush1.msra.mxu0 %v69
  %955 = vmatprep.subr.mxu0 %v57
  %956 = vmatpush1.msra.mxu0 %v56
  %957 = vmatprep.subr.mxu0 %v44
  %958 = vmatpush1.msra.mxu0 %v43
  %959 = vmatprep.subr.mxu0 %v31
  %960 = vmatpush1.msra.mxu0 %v30
  %961 = vmatprep.subr.mxu0 %v434
  %962 = vmatpush2.msra.mxu0 %v433
  %963 = vmatprep.subr.mxu0 %v421
  %964 = vmatpush2.msra.mxu0 %v420
  %965 = vmatprep.subr.mxu0 %v408
  %966 = vmatpush2.msra.mxu0 %v407
  %967 = vmatprep.subr.mxu0 %v395
  %968 = vmatpush2.msra.mxu0 %v394
  %969 = vmatprep.subr.mxu0 %v382
  %970 = vmatpush2.msra.mxu0 %v381
  %971 = vmatprep.subr.mxu0 %v369
  %972 = vmatpush2.msra.mxu0 %v368
  %973 = vmatprep.subr.mxu0 %v356
  %974 = vmatpush2.msra.mxu0 %v355
  %975 = vmatprep.subr.mxu0 %v343
  %976 = vmatpush2.msra.mxu0 %v342
  %977 = vmatprep.subr.mxu0 %v330
  %978 = vmatpush2.msra.mxu0 %v329
  %979 = vmatprep.subr.mxu0 %v317
  %980 = vmatpush2.msra.mxu0 %v316
  %981 = vmatprep.subr.mxu0 %v304
  %982 = vmatpush2.msra.mxu0 %v303
  %983 = vmatprep.subr.mxu0 %v291
  %984 = vmatpush2.msra.mxu0 %v290
  %985 = vmatprep.subr.mxu0 %v278
  %986 = vmatpush2.msra.mxu0 %v277
  %987 = vmatprep.subr.mxu0 %v265
  %988 = vmatpush2.msra.mxu0 %v264
  %989 = vmatprep.subr.mxu0 %v252
  %990 = vmatpush2.msra.mxu0 %v251
  %991 = vmatprep.subr.mxu0 %v239
  %992 = vmatpush2.msra.mxu0 %v238
  %993 = vmatprep.mubr.f32.mxu0 %v15
  %994 = vmatmul.mubr.f32.gmra.mxu0 %v14
  %v995 = vpop.f32.mrf.mxu0
  %v996 = vadd.f32 0.0, %v995
  %v997 = vpop.f32.mrf.mxu0
  %v998 = vadd.f32 0.0, %v997
  %999 = vmatprep.mubr.f32.mxu0 %v18
  %1000 = vmatmul.mubr.f32.gmra.mxu0 %v17
  %v1001 = vpop.f32.mrf.mxu0
  %v1002 = vadd.f32 0.0, %v1001
  %v1003 = vpop.f32.mrf.mxu0
  %v1004 = vadd.f32 0.0, %v1003
  %1005 = vmatprep.mubr.f32.mxu0 %v21
  %1006 = vmatmul.mubr.f32.gmra.mxu0 %v20
  %v1007 = vpop.f32.mrf.mxu0
  %v1008 = vadd.f32 0.0, %v1007
  %v1009 = vpop.f32.mrf.mxu0
  %v1010 = vadd.f32 0.0, %v1009
  %1011 = vmatprep.mubr.f32.mxu0 %v24
  %1012 = vmatmul.mubr.f32.gmra.mxu0 %v23
  %v1013 = vpop.f32.mrf.mxu0
  %v1014 = vadd.f32 0.0, %v1013
  %v1015 = vpop.f32.mrf.mxu0
  %v1016 = vadd.f32 0.0, %v1015
  %1017 = vdwg.mxu0
  %1018 = vmatprep.subr.mxu0 0.0
  %1019 = vmatpush1.msra.mxu0 0.0
  %1020 = vmatprep.subr.mxu0 0.0
  %1021 = vmatpush1.msra.mxu0 0.0
  %1022 = vmatprep.subr.mxu0 0.0
  %1023 = vmatpush1.msra.mxu0 0.0
  %1024 = vmatprep.subr.mxu0 0.0
  %1025 = vmatpush1.msra.mxu0 0.0
  %1026 = vmatprep.subr.mxu0 0.0
  %1027 = vmatpush1.msra.mxu0 0.0
  %1028 = vmatprep.subr.mxu0 0.0
  %1029 = vmatpush1.msra.mxu0 0.0
  %1030 = vmatprep.subr.mxu0 0.0
  %1031 = vmatpush1.msra.mxu0 0.0
  %1032 = vmatprep.subr.mxu0 0.0
  %1033 = vmatpush1.msra.mxu0 0.0
  %1034 = vmatprep.subr.mxu0 0.0
  %1035 = vmatpush1.msra.mxu0 0.0
  %1036 = vmatprep.subr.mxu0 0.0
  %1037 = vmatpush1.msra.mxu0 0.0
  %1038 = vmatprep.subr.mxu0 %v550
  %1039 = vmatpush1.msra.mxu0 %v547
  %1040 = vmatprep.subr.mxu0 %v499
  %1041 = vmatpush1.msra.mxu0 %v498
  %1042 = vmatprep.subr.mxu0 %v486
  %1043 = vmatpush1.msra.mxu0 %v485
  %1044 = vmatprep.subr.mxu0 %v473
  %1045 = vmatpush1.msra.mxu0 %v472
  %1046 = vmatprep.subr.mxu0 %v460
  %1047 = vmatpush1.msra.mxu0 %v459
  %1048 = vmatprep.subr.mxu0 %v447
  %1049 = vmatpush1.msra.mxu0 %v446
  %1050 = vmatprep.subr.mxu0 0.0
  %1051 = vmatpush2.msra.mxu0 0.0
  %1052 = vmatprep.subr.mxu0 0.0
  %1053 = vmatpush2.msra.mxu0 0.0
  %1054 = vmatprep.subr.mxu0 0.0
  %1055 = vmatpush2.msra.mxu0 0.0
  %1056 = vmatprep.subr.mxu0 0.0
  %1057 = vmatpush2.msra.mxu0 0.0
  %1058 = vmatprep.subr.mxu0 0.0
  %1059 = vmatpush2.msra.mxu0 0.0
  %1060 = vmatprep.subr.mxu0 0.0
  %1061 = vmatpush2.msra.mxu0 0.0
  %1062 = vmatprep.subr.mxu0 0.0
  %1063 = vmatpush2.msra.mxu0 0.0
  %1064 = vmatprep.subr.mxu0 0.0
  %1065 = vmatpush2.msra.mxu0 0.0
  %1066 = vmatprep.subr.mxu0 0.0
  %1067 = vmatpush2.msra.mxu0 0.0
  %1068 = vmatprep.subr.mxu0 0.0
  %1069 = vmatpush2.msra.mxu0 0.0
  %1070 = vmatprep.subr.mxu0 0.0
  %1071 = vmatpush2.msra.mxu0 0.0
  %1072 = vmatprep.subr.mxu0 0.0
  %1073 = vmatpush2.msra.mxu0 0.0
  %1074 = vmatprep.subr.mxu0 0.0
  %1075 = vmatpush2.msra.mxu0 0.0
  %1076 = vmatprep.subr.mxu0 0.0
  %1077 = vmatpush2.msra.mxu0 0.0
  %1078 = vmatprep.subr.mxu0 0.0
  %1079 = vmatpush2.msra.mxu0 0.0
  %1080 = vmatprep.subr.mxu0 0.0
  %1081 = vmatpush2.msra.mxu0 0.0
  %1082 = vmatprep.mubr.f32.mxu0 0.0
  %1083 = vmatmul.mubr.f32.gmra.mxu0 %v522
  %v1084 = vpop.f32.mrf.mxu0
  %v1085 = vadd.f32 %v996, %v1084
  %v1086 = vpop.f32.mrf.mxu0
  %v1087 = vadd.f32 %v998, %v1086
  %1088 = vmatprep.mubr.f32.mxu0 0.0
  %1089 = vmatmul.mubr.f32.gmra.mxu0 %v525
  %v1090 = vpop.f32.mrf.mxu0
  %v1091 = vadd.f32 %v1002, %v1090
  %v1092 = vpop.f32.mrf.mxu0
  %v1093 = vadd.f32 %v1004, %v1092
  %1094 = vmatprep.mubr.f32.mxu0 0.0
  %1095 = vmatmul.mubr.f32.gmra.mxu0 %v528
  %v1096 = vpop.f32.mrf.mxu0
  %v1097 = vadd.f32 %v1008, %v1096
  %v1098 = vpop.f32.mrf.mxu0
  %v1099 = vadd.f32 %v1010, %v1098
  %1100 = vmatprep.mubr.f32.mxu0 0.0
  %1101 = vmatmul.mubr.f32.gmra.mxu0 %v531
  %v1102 = vpop.f32.mrf.mxu0
  %v1103 = vadd.f32 %v1014, %v1102
  %v1104 = vpop.f32.mrf.mxu0
  %v1105 = vadd.f32 %v1016, %v1104
  %1106 = vdwg.mxu0
  %1107 = vmatprep.subr.mxu0 %v228
  %1108 = vmatpush1.msra.mxu0 %v227
  %1109 = vmatprep.subr.mxu0 %v215
  %1110 = vmatpush1.msra.mxu0 %v214
  %1111 = vmatprep.subr.mxu0 %v202
  %1112 = vmatpush1.msra.mxu0 %v201
  %1113 = vmatprep.subr.mxu0 %v189
  %1114 = vmatpush1.msra.mxu0 %v188
  %1115 = vmatprep.subr.mxu0 %v176
  %1116 = vmatpush1.msra.mxu0 %v175
  %1117 = vmatprep.subr.mxu0 %v163
  %1118 = vmatpush1.msra.mxu0 %v162
  %1119 = vmatprep.subr.mxu0 %v150
  %1120 = vmatpush1.msra.mxu0 %v149
  %1121 = vmatprep.subr.mxu0 %v137
  %1122 = vmatpush1.msra.mxu0 %v136
  %1123 = vmatprep.subr.mxu0 %v124
  %1124 = vmatpush1.msra.mxu0 %v123
  %1125 = vmatprep.subr.mxu0 %v111
  %1126 = vmatpush1.msra.mxu0 %v110
  %1127 = vmatprep.subr.mxu0 %v98
  %1128 = vmatpush1.msra.mxu0 %v97
  %1129 = vmatprep.subr.mxu0 %v85
  %1130 = vmatpush1.msra.mxu0 %v84
  %1131 = vmatprep.subr.mxu0 %v72
  %1132 = vmatpush1.msra.mxu0 %v71
  %1133 = vmatprep.subr.mxu0 %v59
  %1134 = vmatpush1.msra.mxu0 %v58
  %1135 = vmatprep.subr.mxu0 %v46
  %1136 = vmatpush1.msra.mxu0 %v45
  %1137 = vmatprep.subr.mxu0 %v33
  %1138 = vmatpush1.msra.mxu0 %v32
  %1139 = vmatprep.subr.mxu0 %v436
  %1140 = vmatpush2.msra.mxu0 %v435
  %1141 = vmatprep.subr.mxu0 %v423
  %1142 = vmatpush2.msra.mxu0 %v422
  %1143 = vmatprep.subr.mxu0 %v410
  %1144 = vmatpush2.msra.mxu0 %v409
  %1145 = vmatprep.subr.mxu0 %v397
  %1146 = vmatpush2.msra.mxu0 %v396
  %1147 = vmatprep.subr.mxu0 %v384
  %1148 = vmatpush2.msra.mxu0 %v383
  %1149 = vmatprep.subr.mxu0 %v371
  %1150 = vmatpush2.msra.mxu0 %v370
  %1151 = vmatprep.subr.mxu0 %v358
  %1152 = vmatpush2.msra.mxu0 %v357
  %1153 = vmatprep.subr.mxu0 %v345
  %1154 = vmatpush2.msra.mxu0 %v344
  %1155 = vmatprep.subr.mxu0 %v332
  %1156 = vmatpush2.msra.mxu0 %v331
  %1157 = vmatprep.subr.mxu0 %v319
  %1158 = vmatpush2.msra.mxu0 %v318
  %1159 = vmatprep.subr.mxu0 %v306
  %1160 = vmatpush2.msra.mxu0 %v305
  %1161 = vmatprep.subr.mxu0 %v293
  %1162 = vmatpush2.msra.mxu0 %v292
  %1163 = vmatprep.subr.mxu0 %v280
  %1164 = vmatpush2.msra.mxu0 %v279
  %1165 = vmatprep.subr.mxu0 %v267
  %1166 = vmatpush2.msra.mxu0 %v266
  %1167 = vmatprep.subr.mxu0 %v254
  %1168 = vmatpush2.msra.mxu0 %v253
  %1169 = vmatprep.subr.mxu0 %v241
  %1170 = vmatpush2.msra.mxu0 %v240
  %1171 = vmatprep.mubr.f32.mxu0 %v15
  %1172 = vmatmul.mubr.f32.gmra.mxu0 %v14
  %v1173 = vpop.f32.mrf.mxu0
  %v1174 = vadd.f32 0.0, %v1173
  %v1175 = vpop.f32.mrf.mxu0
  %v1176 = vadd.f32 0.0, %v1175
  %1177 = vmatprep.mubr.f32.mxu0 %v18
  %1178 = vmatmul.mubr.f32.gmra.mxu0 %v17
  %v1179 = vpop.f32.mrf.mxu0
  %v1180 = vadd.f32 0.0, %v1179
  %v1181 = vpop.f32.mrf.mxu0
  %v1182 = vadd.f32 0.0, %v1181
  %1183 = vmatprep.mubr.f32.mxu0 %v21
  %1184 = vmatmul.mubr.f32.gmra.mxu0 %v20
  %v1185 = vpop.f32.mrf.mxu0
  %v1186 = vadd.f32 0.0, %v1185
  %v1187 = vpop.f32.mrf.mxu0
  %v1188 = vadd.f32 0.0, %v1187
  %1189 = vmatprep.mubr.f32.mxu0 %v24
  %1190 = vmatmul.mubr.f32.gmra.mxu0 %v23
  %v1191 = vpop.f32.mrf.mxu0
  %v1192 = vadd.f32 0.0, %v1191
  %v1193 = vpop.f32.mrf.mxu0
  %v1194 = vadd.f32 0.0, %v1193
  %1195 = vdwg.mxu0
  %1196 = vmatprep.subr.mxu0 0.0
  %1197 = vmatpush1.msra.mxu0 0.0
  %1198 = vmatprep.subr.mxu0 0.0
  %1199 = vmatpush1.msra.mxu0 0.0
  %1200 = vmatprep.subr.mxu0 0.0
  %1201 = vmatpush1.msra.mxu0 0.0
  %1202 = vmatprep.subr.mxu0 0.0
  %1203 = vmatpush1.msra.mxu0 0.0
  %1204 = vmatprep.subr.mxu0 0.0
  %1205 = vmatpush1.msra.mxu0 0.0
  %1206 = vmatprep.subr.mxu0 0.0
  %1207 = vmatpush1.msra.mxu0 0.0
  %1208 = vmatprep.subr.mxu0 0.0
  %1209 = vmatpush1.msra.mxu0 0.0
  %1210 = vmatprep.subr.mxu0 0.0
  %1211 = vmatpush1.msra.mxu0 0.0
  %1212 = vmatprep.subr.mxu0 0.0
  %1213 = vmatpush1.msra.mxu0 0.0
  %1214 = vmatprep.subr.mxu0 0.0
  %1215 = vmatpush1.msra.mxu0 0.0
  %1216 = vmatprep.subr.mxu0 %v556
  %1217 = vmatpush1.msra.mxu0 %v553
  %1218 = vmatprep.subr.mxu0 %v501
  %1219 = vmatpush1.msra.mxu0 %v500
  %1220 = vmatprep.subr.mxu0 %v488
  %1221 = vmatpush1.msra.mxu0 %v487
  %1222 = vmatprep.subr.mxu0 %v475
  %1223 = vmatpush1.msra.mxu0 %v474
  %1224 = vmatprep.subr.mxu0 %v462
  %1225 = vmatpush1.msra.mxu0 %v461
  %1226 = vmatprep.subr.mxu0 %v449
  %1227 = vmatpush1.msra.mxu0 %v448
  %1228 = vmatprep.subr.mxu0 0.0
  %1229 = vmatpush2.msra.mxu0 0.0
  %1230 = vmatprep.subr.mxu0 0.0
  %1231 = vmatpush2.msra.mxu0 0.0
  %1232 = vmatprep.subr.mxu0 0.0
  %1233 = vmatpush2.msra.mxu0 0.0
  %1234 = vmatprep.subr.mxu0 0.0
  %1235 = vmatpush2.msra.mxu0 0.0
  %1236 = vmatprep.subr.mxu0 0.0
  %1237 = vmatpush2.msra.mxu0 0.0
  %1238 = vmatprep.subr.mxu0 0.0
  %1239 = vmatpush2.msra.mxu0 0.0
  %1240 = vmatprep.subr.mxu0 0.0
  %1241 = vmatpush2.msra.mxu0 0.0
  %1242 = vmatprep.subr.mxu0 0.0
  %1243 = vmatpush2.msra.mxu0 0.0
  %1244 = vmatprep.subr.mxu0 0.0
  %1245 = vmatpush2.msra.mxu0 0.0
  %1246 = vmatprep.subr.mxu0 0.0
  %1247 = vmatpush2.msra.mxu0 0.0
  %1248 = vmatprep.subr.mxu0 0.0
  %1249 = vmatpush2.msra.mxu0 0.0
  %1250 = vmatprep.subr.mxu0 0.0
  %1251 = vmatpush2.msra.mxu0 0.0
  %1252 = vmatprep.subr.mxu0 0.0
  %1253 = vmatpush2.msra.mxu0 0.0
  %1254 = vmatprep.subr.mxu0 0.0
  %1255 = vmatpush2.msra.mxu0 0.0
  %1256 = vmatprep.subr.mxu0 0.0
  %1257 = vmatpush2.msra.mxu0 0.0
  %1258 = vmatprep.subr.mxu0 0.0
  %1259 = vmatpush2.msra.mxu0 0.0
  %1260 = vmatprep.mubr.f32.mxu0 0.0
  %1261 = vmatmul.mubr.f32.gmra.mxu0 %v522
  %v1262 = vpop.f32.mrf.mxu0
  %v1263 = vadd.f32 %v1174, %v1262
  %v1264 = vpop.f32.mrf.mxu0
  %v1265 = vadd.f32 %v1176, %v1264
  %1266 = vmatprep.mubr.f32.mxu0 0.0
  %1267 = vmatmul.mubr.f32.gmra.mxu0 %v525
  %v1268 = vpop.f32.mrf.mxu0
  %v1269 = vadd.f32 %v1180, %v1268
  %v1270 = vpop.f32.mrf.mxu0
  %v1271 = vadd.f32 %v1182, %v1270
  %1272 = vmatprep.mubr.f32.mxu0 0.0
  %1273 = vmatmul.mubr.f32.gmra.mxu0 %v528
  %v1274 = vpop.f32.mrf.mxu0
  %v1275 = vadd.f32 %v1186, %v1274
  %v1276 = vpop.f32.mrf.mxu0
  %v1277 = vadd.f32 %v1188, %v1276
  %1278 = vmatprep.mubr.f32.mxu0 0.0
  %1279 = vmatmul.mubr.f32.gmra.mxu0 %v531
  %v1280 = vpop.f32.mrf.mxu0
  %v1281 = vadd.f32 %v1192, %v1280
  %v1282 = vpop.f32.mrf.mxu0
  %v1283 = vadd.f32 %v1194, %v1282
  %1284 = vdwg.mxu0
  %1285 = vmatprep.subr.mxu0 %v230
  %1286 = vmatpush1.msra.mxu0 %v229
  %1287 = vmatprep.subr.mxu0 %v217
  %1288 = vmatpush1.msra.mxu0 %v216
  %1289 = vmatprep.subr.mxu0 %v204
  %1290 = vmatpush1.msra.mxu0 %v203
  %1291 = vmatprep.subr.mxu0 %v191
  %1292 = vmatpush1.msra.mxu0 %v190
  %1293 = vmatprep.subr.mxu0 %v178
  %1294 = vmatpush1.msra.mxu0 %v177
  %1295 = vmatprep.subr.mxu0 %v165
  %1296 = vmatpush1.msra.mxu0 %v164
  %1297 = vmatprep.subr.mxu0 %v152
  %1298 = vmatpush1.msra.mxu0 %v151
  %1299 = vmatprep.subr.mxu0 %v139
  %1300 = vmatpush1.msra.mxu0 %v138
  %1301 = vmatprep.subr.mxu0 %v126
  %1302 = vmatpush1.msra.mxu0 %v125
  %1303 = vmatprep.subr.mxu0 %v113
  %1304 = vmatpush1.msra.mxu0 %v112
  %1305 = vmatprep.subr.mxu0 %v100
  %1306 = vmatpush1.msra.mxu0 %v99
  %1307 = vmatprep.subr.mxu0 %v87
  %1308 = vmatpush1.msra.mxu0 %v86
  %1309 = vmatprep.subr.mxu0 %v74
  %1310 = vmatpush1.msra.mxu0 %v73
  %1311 = vmatprep.subr.mxu0 %v61
  %1312 = vmatpush1.msra.mxu0 %v60
  %1313 = vmatprep.subr.mxu0 %v48
  %1314 = vmatpush1.msra.mxu0 %v47
  %1315 = vmatprep.subr.mxu0 %v35
  %1316 = vmatpush1.msra.mxu0 %v34
  %1317 = vmatprep.subr.mxu0 %v438
  %1318 = vmatpush2.msra.mxu0 %v437
  %1319 = vmatprep.subr.mxu0 %v425
  %1320 = vmatpush2.msra.mxu0 %v424
  %1321 = vmatprep.subr.mxu0 %v412
  %1322 = vmatpush2.msra.mxu0 %v411
  %1323 = vmatprep.subr.mxu0 %v399
  %1324 = vmatpush2.msra.mxu0 %v398
  %1325 = vmatprep.subr.mxu0 %v386
  %1326 = vmatpush2.msra.mxu0 %v385
  %1327 = vmatprep.subr.mxu0 %v373
  %1328 = vmatpush2.msra.mxu0 %v372
  %1329 = vmatprep.subr.mxu0 %v360
  %1330 = vmatpush2.msra.mxu0 %v359
  %1331 = vmatprep.subr.mxu0 %v347
  %1332 = vmatpush2.msra.mxu0 %v346
  %1333 = vmatprep.subr.mxu0 %v334
  %1334 = vmatpush2.msra.mxu0 %v333
  %1335 = vmatprep.subr.mxu0 %v321
  %1336 = vmatpush2.msra.mxu0 %v320
  %1337 = vmatprep.subr.mxu0 %v308
  %1338 = vmatpush2.msra.mxu0 %v307
  %1339 = vmatprep.subr.mxu0 %v295
  %1340 = vmatpush2.msra.mxu0 %v294
  %1341 = vmatprep.subr.mxu0 %v282
  %1342 = vmatpush2.msra.mxu0 %v281
  %1343 = vmatprep.subr.mxu0 %v269
  %1344 = vmatpush2.msra.mxu0 %v268
  %1345 = vmatprep.subr.mxu0 %v256
  %1346 = vmatpush2.msra.mxu0 %v255
  %1347 = vmatprep.subr.mxu0 %v243
  %1348 = vmatpush2.msra.mxu0 %v242
  %1349 = vmatprep.mubr.f32.mxu0 %v15
  %1350 = vmatmul.mubr.f32.gmra.mxu0 %v14
  %v1351 = vpop.f32.mrf.mxu0
  %v1352 = vadd.f32 0.0, %v1351
  %v1353 = vpop.f32.mrf.mxu0
  %v1354 = vadd.f32 0.0, %v1353
  %1355 = vmatprep.mubr.f32.mxu0 %v18
  %1356 = vmatmul.mubr.f32.gmra.mxu0 %v17
  %v1357 = vpop.f32.mrf.mxu0
  %v1358 = vadd.f32 0.0, %v1357
  %v1359 = vpop.f32.mrf.mxu0
  %v1360 = vadd.f32 0.0, %v1359
  %1361 = vmatprep.mubr.f32.mxu0 %v21
  %1362 = vmatmul.mubr.f32.gmra.mxu0 %v20
  %v1363 = vpop.f32.mrf.mxu0
  %v1364 = vadd.f32 0.0, %v1363
  %v1365 = vpop.f32.mrf.mxu0
  %v1366 = vadd.f32 0.0, %v1365
  %1367 = vmatprep.mubr.f32.mxu0 %v24
  %1368 = vmatmul.mubr.f32.gmra.mxu0 %v23
  %v1369 = vpop.f32.mrf.mxu0
  %v1370 = vadd.f32 0.0, %v1369
  %v1371 = vpop.f32.mrf.mxu0
  %v1372 = vadd.f32 0.0, %v1371
  %1373 = vdwg.mxu0
  %1374 = vmatprep.subr.mxu0 0.0
  %1375 = vmatpush1.msra.mxu0 0.0
  %1376 = vmatprep.subr.mxu0 0.0
  %1377 = vmatpush1.msra.mxu0 0.0
  %1378 = vmatprep.subr.mxu0 0.0
  %1379 = vmatpush1.msra.mxu0 0.0
  %1380 = vmatprep.subr.mxu0 0.0
  %1381 = vmatpush1.msra.mxu0 0.0
  %1382 = vmatprep.subr.mxu0 0.0
  %1383 = vmatpush1.msra.mxu0 0.0
  %1384 = vmatprep.subr.mxu0 0.0
  %1385 = vmatpush1.msra.mxu0 0.0
  %1386 = vmatprep.subr.mxu0 0.0
  %1387 = vmatpush1.msra.mxu0 0.0
  %1388 = vmatprep.subr.mxu0 0.0
  %1389 = vmatpush1.msra.mxu0 0.0
  %1390 = vmatprep.subr.mxu0 0.0
  %1391 = vmatpush1.msra.mxu0 0.0
  %1392 = vmatprep.subr.mxu0 0.0
  %1393 = vmatpush1.msra.mxu0 0.0
  %1394 = vmatprep.subr.mxu0 %v562
  %1395 = vmatpush1.msra.mxu0 %v559
  %1396 = vmatprep.subr.mxu0 %v503
  %1397 = vmatpush1.msra.mxu0 %v502
  %1398 = vmatprep.subr.mxu0 %v490
  %1399 = vmatpush1.msra.mxu0 %v489
  %1400 = vmatprep.subr.mxu0 %v477
  %1401 = vmatpush1.msra.mxu0 %v476
  %1402 = vmatprep.subr.mxu0 %v464
  %1403 = vmatpush1.msra.mxu0 %v463
  %1404 = vmatprep.subr.mxu0 %v451
  %1405 = vmatpush1.msra.mxu0 %v450
  %1406 = vmatprep.subr.mxu0 0.0
  %1407 = vmatpush2.msra.mxu0 0.0
  %1408 = vmatprep.subr.mxu0 0.0
  %1409 = vmatpush2.msra.mxu0 0.0
  %1410 = vmatprep.subr.mxu0 0.0
  %1411 = vmatpush2.msra.mxu0 0.0
  %1412 = vmatprep.subr.mxu0 0.0
  %1413 = vmatpush2.msra.mxu0 0.0
  %1414 = vmatprep.subr.mxu0 0.0
  %1415 = vmatpush2.msra.mxu0 0.0
  %1416 = vmatprep.subr.mxu0 0.0
  %1417 = vmatpush2.msra.mxu0 0.0
  %1418 = vmatprep.subr.mxu0 0.0
  %1419 = vmatpush2.msra.mxu0 0.0
  %1420 = vmatprep.subr.mxu0 0.0
  %1421 = vmatpush2.msra.mxu0 0.0
  %1422 = vmatprep.subr.mxu0 0.0
  %1423 = vmatpush2.msra.mxu0 0.0
  %1424 = vmatprep.subr.mxu0 0.0
  %1425 = vmatpush2.msra.mxu0 0.0
  %1426 = vmatprep.subr.mxu0 0.0
  %1427 = vmatpush2.msra.mxu0 0.0
  %1428 = vmatprep.subr.mxu0 0.0
  %1429 = vmatpush2.msra.mxu0 0.0
  %1430 = vmatprep.subr.mxu0 0.0
  %1431 = vmatpush2.msra.mxu0 0.0
  %1432 = vmatprep.subr.mxu0 0.0
  %1433 = vmatpush2.msra.mxu0 0.0
  %1434 = vmatprep.subr.mxu0 0.0
  %1435 = vmatpush2.msra.mxu0 0.0
  %1436 = vmatprep.subr.mxu0 0.0
  %1437 = vmatpush2.msra.mxu0 0.0
  %1438 = vmatprep.mubr.f32.mxu0 0.0
  %1439 = vmatmul.mubr.f32.gmra.mxu0 %v522
  %v1440 = vpop.f32.mrf.mxu0
  %v1441 = vadd.f32 %v1352, %v1440
  %v1442 = vpop.f32.mrf.mxu0
  %v1443 = vadd.f32 %v1354, %v1442
  %1444 = vmatprep.mubr.f32.mxu0 0.0
  %1445 = vmatmul.mubr.f32.gmra.mxu0 %v525
  %v1446 = vpop.f32.mrf.mxu0
  %v1447 = vadd.f32 %v1358, %v1446
  %v1448 = vpop.f32.mrf.mxu0
  %v1449 = vadd.f32 %v1360, %v1448
  %1450 = vmatprep.mubr.f32.mxu0 0.0
  %1451 = vmatmul.mubr.f32.gmra.mxu0 %v528
  %v1452 = vpop.f32.mrf.mxu0
  %v1453 = vadd.f32 %v1364, %v1452
  %v1454 = vpop.f32.mrf.mxu0
  %v1455 = vadd.f32 %v1366, %v1454
  %1456 = vmatprep.mubr.f32.mxu0 0.0
  %1457 = vmatmul.mubr.f32.gmra.mxu0 %v531
  %v1458 = vpop.f32.mrf.mxu0
  %v1459 = vadd.f32 %v1370, %v1458
  %v1460 = vpop.f32.mrf.mxu0
  %v1461 = vadd.f32 %v1372, %v1460
  %1462 = vdwg.mxu0
  %1463 = vmatprep.subr.mxu0 %v232
  %1464 = vmatpush1.msra.mxu0 %v231
  %1465 = vmatprep.subr.mxu0 %v219
  %1466 = vmatpush1.msra.mxu0 %v218
  %1467 = vmatprep.subr.mxu0 %v206
  %1468 = vmatpush1.msra.mxu0 %v205
  %1469 = vmatprep.subr.mxu0 %v193
  %1470 = vmatpush1.msra.mxu0 %v192
  %1471 = vmatprep.subr.mxu0 %v180
  %1472 = vmatpush1.msra.mxu0 %v179
  %1473 = vmatprep.subr.mxu0 %v167
  %1474 = vmatpush1.msra.mxu0 %v166
  %1475 = vmatprep.subr.mxu0 %v154
  %1476 = vmatpush1.msra.mxu0 %v153
  %1477 = vmatprep.subr.mxu0 %v141
  %1478 = vmatpush1.msra.mxu0 %v140
  %1479 = vmatprep.subr.mxu0 %v128
  %1480 = vmatpush1.msra.mxu0 %v127
  %1481 = vmatprep.subr.mxu0 %v115
  %1482 = vmatpush1.msra.mxu0 %v114
  %1483 = vmatprep.subr.mxu0 %v102
  %1484 = vmatpush1.msra.mxu0 %v101
  %1485 = vmatprep.subr.mxu0 %v89
  %1486 = vmatpush1.msra.mxu0 %v88
  %1487 = vmatprep.subr.mxu0 %v76
  %1488 = vmatpush1.msra.mxu0 %v75
  %1489 = vmatprep.subr.mxu0 %v63
  %1490 = vmatpush1.msra.mxu0 %v62
  %1491 = vmatprep.subr.mxu0 %v50
  %1492 = vmatpush1.msra.mxu0 %v49
  %1493 = vmatprep.subr.mxu0 %v37
  %1494 = vmatpush1.msra.mxu0 %v36
  %1495 = vmatprep.subr.mxu0 %v440
  %1496 = vmatpush2.msra.mxu0 %v439
  %1497 = vmatprep.subr.mxu0 %v427
  %1498 = vmatpush2.msra.mxu0 %v426
  %1499 = vmatprep.subr.mxu0 %v414
  %1500 = vmatpush2.msra.mxu0 %v413
  %1501 = vmatprep.subr.mxu0 %v401
  %1502 = vmatpush2.msra.mxu0 %v400
  %1503 = vmatprep.subr.mxu0 %v388
  %1504 = vmatpush2.msra.mxu0 %v387
  %1505 = vmatprep.subr.mxu0 %v375
  %1506 = vmatpush2.msra.mxu0 %v374
  %1507 = vmatprep.subr.mxu0 %v362
  %1508 = vmatpush2.msra.mxu0 %v361
  %1509 = vmatprep.subr.mxu0 %v349
  %1510 = vmatpush2.msra.mxu0 %v348
  %1511 = vmatprep.subr.mxu0 %v336
  %1512 = vmatpush2.msra.mxu0 %v335
  %1513 = vmatprep.subr.mxu0 %v323
  %1514 = vmatpush2.msra.mxu0 %v322
  %1515 = vmatprep.subr.mxu0 %v310
  %1516 = vmatpush2.msra.mxu0 %v309
  %1517 = vmatprep.subr.mxu0 %v297
  %1518 = vmatpush2.msra.mxu0 %v296
  %1519 = vmatprep.subr.mxu0 %v284
  %1520 = vmatpush2.msra.mxu0 %v283
  %1521 = vmatprep.subr.mxu0 %v271
  %1522 = vmatpush2.msra.mxu0 %v270
  %1523 = vmatprep.subr.mxu0 %v258
  %1524 = vmatpush2.msra.mxu0 %v257
  %1525 = vmatprep.subr.mxu0 %v245
  %1526 = vmatpush2.msra.mxu0 %v244
  %1527 = vmatprep.mubr.f32.mxu0 %v15
  %1528 = vmatmul.mubr.f32.gmra.mxu0 %v14
  %v1529 = vpop.f32.mrf.mxu0
  %v1530 = vadd.f32 0.0, %v1529
  %v1531 = vpop.f32.mrf.mxu0
  %v1532 = vadd.f32 0.0, %v1531
  %1533 = vmatprep.mubr.f32.mxu0 %v18
  %1534 = vmatmul.mubr.f32.gmra.mxu0 %v17
  %v1535 = vpop.f32.mrf.mxu0
  %v1536 = vadd.f32 0.0, %v1535
  %v1537 = vpop.f32.mrf.mxu0
  %v1538 = vadd.f32 0.0, %v1537
  %1539 = vmatprep.mubr.f32.mxu0 %v21
  %1540 = vmatmul.mubr.f32.gmra.mxu0 %v20
  %v1541 = vpop.f32.mrf.mxu0
  %v1542 = vadd.f32 0.0, %v1541
  %v1543 = vpop.f32.mrf.mxu0
  %v1544 = vadd.f32 0.0, %v1543
  %1545 = vmatprep.mubr.f32.mxu0 %v24
  %1546 = vmatmul.mubr.f32.gmra.mxu0 %v23
  %v1547 = vpop.f32.mrf.mxu0
  %v1548 = vadd.f32 0.0, %v1547
  %v1549 = vpop.f32.mrf.mxu0
  %v1550 = vadd.f32 0.0, %v1549
  %1551 = vdwg.mxu0
  %1552 = vmatprep.subr.mxu0 0.0
  %1553 = vmatpush1.msra.mxu0 0.0
  %1554 = vmatprep.subr.mxu0 0.0
  %1555 = vmatpush1.msra.mxu0 0.0
  %1556 = vmatprep.subr.mxu0 0.0
  %1557 = vmatpush1.msra.mxu0 0.0
  %1558 = vmatprep.subr.mxu0 0.0
  %1559 = vmatpush1.msra.mxu0 0.0
  %1560 = vmatprep.subr.mxu0 0.0
  %1561 = vmatpush1.msra.mxu0 0.0
  %1562 = vmatprep.subr.mxu0 0.0
  %1563 = vmatpush1.msra.mxu0 0.0
  %1564 = vmatprep.subr.mxu0 0.0
  %1565 = vmatpush1.msra.mxu0 0.0
  %1566 = vmatprep.subr.mxu0 0.0
  %1567 = vmatpush1.msra.mxu0 0.0
  %1568 = vmatprep.subr.mxu0 0.0
  %1569 = vmatpush1.msra.mxu0 0.0
  %1570 = vmatprep.subr.mxu0 0.0
  %1571 = vmatpush1.msra.mxu0 0.0
  %1572 = vmatprep.subr.mxu0 %v568
  %1573 = vmatpush1.msra.mxu0 %v565
  %1574 = vmatprep.subr.mxu0 %v505
  %1575 = vmatpush1.msra.mxu0 %v504
  %1576 = vmatprep.subr.mxu0 %v492
  %1577 = vmatpush1.msra.mxu0 %v491
  %1578 = vmatprep.subr.mxu0 %v479
  %1579 = vmatpush1.msra.mxu0 %v478
  %1580 = vmatprep.subr.mxu0 %v466
  %1581 = vmatpush1.msra.mxu0 %v465
  %1582 = vmatprep.subr.mxu0 %v453
  %1583 = vmatpush1.msra.mxu0 %v452
  %1584 = vmatprep.subr.mxu0 0.0
  %1585 = vmatpush2.msra.mxu0 0.0
  %1586 = vmatprep.subr.mxu0 0.0
  %1587 = vmatpush2.msra.mxu0 0.0
  %1588 = vmatprep.subr.mxu0 0.0
  %1589 = vmatpush2.msra.mxu0 0.0
  %1590 = vmatprep.subr.mxu0 0.0
  %1591 = vmatpush2.msra.mxu0 0.0
  %1592 = vmatprep.subr.mxu0 0.0
  %1593 = vmatpush2.msra.mxu0 0.0
  %1594 = vmatprep.subr.mxu0 0.0
  %1595 = vmatpush2.msra.mxu0 0.0
  %1596 = vmatprep.subr.mxu0 0.0
  %1597 = vmatpush2.msra.mxu0 0.0
  %1598 = vmatprep.subr.mxu0 0.0
  %1599 = vmatpush2.msra.mxu0 0.0
  %1600 = vmatprep.subr.mxu0 0.0
  %1601 = vmatpush2.msra.mxu0 0.0
  %1602 = vmatprep.subr.mxu0 0.0
  %1603 = vmatpush2.msra.mxu0 0.0
  %1604 = vmatprep.subr.mxu0 0.0
  %1605 = vmatpush2.msra.mxu0 0.0
  %1606 = vmatprep.subr.mxu0 0.0
  %1607 = vmatpush2.msra.mxu0 0.0
  %1608 = vmatprep.subr.mxu0 0.0
  %1609 = vmatpush2.msra.mxu0 0.0
  %1610 = vmatprep.subr.mxu0 0.0
  %1611 = vmatpush2.msra.mxu0 0.0
  %1612 = vmatprep.subr.mxu0 0.0
  %1613 = vmatpush2.msra.mxu0 0.0
  %1614 = vmatprep.subr.mxu0 0.0
  %1615 = vmatpush2.msra.mxu0 0.0
  %1616 = vmatprep.mubr.f32.mxu0 0.0
  %1617 = vmatmul.mubr.f32.gmra.mxu0 %v522
  %v1618 = vpop.f32.mrf.mxu0
  %v1619 = vadd.f32 %v1530, %v1618
  %v1620 = vpop.f32.mrf.mxu0
  %v1621 = vadd.f32 %v1532, %v1620
  %1622 = vmatprep.mubr.f32.mxu0 0.0
  %1623 = vmatmul.mubr.f32.gmra.mxu0 %v525
  %v1624 = vpop.f32.mrf.mxu0
  %v1625 = vadd.f32 %v1536, %v1624
  %v1626 = vpop.f32.mrf.mxu0
  %v1627 = vadd.f32 %v1538, %v1626
  %1628 = vmatprep.mubr.f32.mxu0 0.0
  %1629 = vmatmul.mubr.f32.gmra.mxu0 %v528
  %v1630 = vpop.f32.mrf.mxu0
  %v1631 = vadd.f32 %v1542, %v1630
  %v1632 = vpop.f32.mrf.mxu0
  %v1633 = vadd.f32 %v1544, %v1632
  %1634 = vmatprep.mubr.f32.mxu0 0.0
  %1635 = vmatmul.mubr.f32.gmra.mxu0 %v531
  %v1636 = vpop.f32.mrf.mxu0
  %v1637 = vadd.f32 %v1548, %v1636
  %v1638 = vpop.f32.mrf.mxu0
  %v1639 = vadd.f32 %v1550, %v1638
  %1640 = vdwg.mxu0
  %1641 = vmatprep.subr.mxu0 0.0
  %1642 = vmatpush1.msra.mxu0 %v233
  %1643 = vmatprep.subr.mxu0 0.0
  %1644 = vmatpush1.msra.mxu0 %v220
  %1645 = vmatprep.subr.mxu0 0.0
  %1646 = vmatpush1.msra.mxu0 %v207
  %1647 = vmatprep.subr.mxu0 0.0
  %1648 = vmatpush1.msra.mxu0 %v194
  %1649 = vmatprep.subr.mxu0 0.0
  %1650 = vmatpush1.msra.mxu0 %v181
  %1651 = vmatprep.subr.mxu0 0.0
  %1652 = vmatpush1.msra.mxu0 %v168
  %1653 = vmatprep.subr.mxu0 0.0
  %1654 = vmatpush1.msra.mxu0 %v155
  %1655 = vmatprep.subr.mxu0 0.0
  %1656 = vmatpush1.msra.mxu0 %v142
  %1657 = vmatprep.subr.mxu0 0.0
  %1658 = vmatpush1.msra.mxu0 %v129
  %1659 = vmatprep.subr.mxu0 0.0
  %1660 = vmatpush1.msra.mxu0 %v116
  %1661 = vmatprep.subr.mxu0 0.0
  %1662 = vmatpush1.msra.mxu0 %v103
  %1663 = vmatprep.subr.mxu0 0.0
  %1664 = vmatpush1.msra.mxu0 %v90
  %1665 = vmatprep.subr.mxu0 0.0
  %1666 = vmatpush1.msra.mxu0 %v77
  %1667 = vmatprep.subr.mxu0 0.0
  %1668 = vmatpush1.msra.mxu0 %v64
  %1669 = vmatprep.subr.mxu0 0.0
  %1670 = vmatpush1.msra.mxu0 %v51
  %1671 = vmatprep.subr.mxu0 0.0
  %1672 = vmatpush1.msra.mxu0 %v38
  %1673 = vmatprep.subr.mxu0 0.0
  %1674 = vmatpush2.msra.mxu0 %v441
  %1675 = vmatprep.subr.mxu0 0.0
  %1676 = vmatpush2.msra.mxu0 %v428
  %1677 = vmatprep.subr.mxu0 0.0
  %1678 = vmatpush2.msra.mxu0 %v415
  %1679 = vmatprep.subr.mxu0 0.0
  %1680 = vmatpush2.msra.mxu0 %v402
  %1681 = vmatprep.subr.mxu0 0.0
  %1682 = vmatpush2.msra.mxu0 %v389
  %1683 = vmatprep.subr.mxu0 0.0
  %1684 = vmatpush2.msra.mxu0 %v376
  %1685 = vmatprep.subr.mxu0 0.0
  %1686 = vmatpush2.msra.mxu0 %v363
  %1687 = vmatprep.subr.mxu0 0.0
  %1688 = vmatpush2.msra.mxu0 %v350
  %1689 = vmatprep.subr.mxu0 0.0
  %1690 = vmatpush2.msra.mxu0 %v337
  %1691 = vmatprep.subr.mxu0 0.0
  %1692 = vmatpush2.msra.mxu0 %v324
  %1693 = vmatprep.subr.mxu0 0.0
  %1694 = vmatpush2.msra.mxu0 %v311
  %1695 = vmatprep.subr.mxu0 0.0
  %1696 = vmatpush2.msra.mxu0 %v298
  %1697 = vmatprep.subr.mxu0 0.0
  %1698 = vmatpush2.msra.mxu0 %v285
  %1699 = vmatprep.subr.mxu0 0.0
  %1700 = vmatpush2.msra.mxu0 %v272
  %1701 = vmatprep.subr.mxu0 0.0
  %1702 = vmatpush2.msra.mxu0 %v259
  %1703 = vmatprep.subr.mxu0 0.0
  %1704 = vmatpush2.msra.mxu0 %v246
  %1705 = vmatprep.mubr.f32.mxu0 %v15
  %1706 = vmatmul.mubr.f32.gmra.mxu0 %v14
  %v1707 = vpop.f32.mrf.mxu0
  %v1708 = vadd.f32 0.0, %v1707
  %v1709 = vpop.f32.mrf.mxu0
  %1710 = vmatprep.mubr.f32.mxu0 %v18
  %1711 = vmatmul.mubr.f32.gmra.mxu0 %v17
  %v1712 = vpop.f32.mrf.mxu0
  %v1713 = vadd.f32 0.0, %v1712
  %v1714 = vpop.f32.mrf.mxu0
  %1715 = vmatprep.mubr.f32.mxu0 %v21
  %1716 = vmatmul.mubr.f32.gmra.mxu0 %v20
  %v1717 = vpop.f32.mrf.mxu0
  %v1718 = vadd.f32 0.0, %v1717
  %v1719 = vpop.f32.mrf.mxu0
  %1720 = vmatprep.mubr.f32.mxu0 %v24
  %1721 = vmatmul.mubr.f32.gmra.mxu0 %v23
  %v1722 = vpop.f32.mrf.mxu0
  %v1723 = vadd.f32 0.0, %v1722
  %v1724 = vpop.f32.mrf.mxu0
  %1725 = vdwg.mxu0
  %1726 = vmatprep.subr.mxu0 0.0
  %1727 = vmatpush1.msra.mxu0 0.0
  %1728 = vmatprep.subr.mxu0 0.0
  %1729 = vmatpush1.msra.mxu0 0.0
  %1730 = vmatprep.subr.mxu0 0.0
  %1731 = vmatpush1.msra.mxu0 0.0
  %1732 = vmatprep.subr.mxu0 0.0
  %1733 = vmatpush1.msra.mxu0 0.0
  %1734 = vmatprep.subr.mxu0 0.0
  %1735 = vmatpush1.msra.mxu0 0.0
  %1736 = vmatprep.subr.mxu0 0.0
  %1737 = vmatpush1.msra.mxu0 0.0
  %1738 = vmatprep.subr.mxu0 0.0
  %1739 = vmatpush1.msra.mxu0 0.0
  %1740 = vmatprep.subr.mxu0 0.0
  %1741 = vmatpush1.msra.mxu0 0.0
  %1742 = vmatprep.subr.mxu0 0.0
  %1743 = vmatpush1.msra.mxu0 0.0
  %1744 = vmatprep.subr.mxu0 0.0
  %1745 = vmatpush1.msra.mxu0 0.0
  %1746 = vmatprep.subr.mxu0 0.0
  %1747 = vmatpush1.msra.mxu0 %v571
  %1748 = vmatprep.subr.mxu0 0.0
  %1749 = vmatpush1.msra.mxu0 %v506
  %1750 = vmatprep.subr.mxu0 0.0
  %1751 = vmatpush1.msra.mxu0 %v493
  %1752 = vmatprep.subr.mxu0 0.0
  %1753 = vmatpush1.msra.mxu0 %v480
  %1754 = vmatprep.subr.mxu0 0.0
  %1755 = vmatpush1.msra.mxu0 %v467
  %1756 = vmatprep.subr.mxu0 0.0
  %1757 = vmatpush1.msra.mxu0 %v454
  %1758 = vmatprep.subr.mxu0 0.0
  %1759 = vmatpush2.msra.mxu0 0.0
  %1760 = vmatprep.subr.mxu0 0.0
  %1761 = vmatpush2.msra.mxu0 0.0
  %1762 = vmatprep.subr.mxu0 0.0
  %1763 = vmatpush2.msra.mxu0 0.0
  %1764 = vmatprep.subr.mxu0 0.0
  %1765 = vmatpush2.msra.mxu0 0.0
  %1766 = vmatprep.subr.mxu0 0.0
  %1767 = vmatpush2.msra.mxu0 0.0
  %1768 = vmatprep.subr.mxu0 0.0
  %1769 = vmatpush2.msra.mxu0 0.0
  %1770 = vmatprep.subr.mxu0 0.0
  %1771 = vmatpush2.msra.mxu0 0.0
  %1772 = vmatprep.subr.mxu0 0.0
  %1773 = vmatpush2.msra.mxu0 0.0
  %1774 = vmatprep.subr.mxu0 0.0
  %1775 = vmatpush2.msra.mxu0 0.0
  %1776 = vmatprep.subr.mxu0 0.0
  %1777 = vmatpush2.msra.mxu0 0.0
  %1778 = vmatprep.subr.mxu0 0.0
  %1779 = vmatpush2.msra.mxu0 0.0
  %1780 = vmatprep.subr.mxu0 0.0
  %1781 = vmatpush2.msra.mxu0 0.0
  %1782 = vmatprep.subr.mxu0 0.0
  %1783 = vmatpush2.msra.mxu0 0.0
  %1784 = vmatprep.subr.mxu0 0.0
  %1785 = vmatpush2.msra.mxu0 0.0
  %1786 = vmatprep.subr.mxu0 0.0
  %1787 = vmatpush2.msra.mxu0 0.0
  %1788 = vmatprep.subr.mxu0 0.0
  %1789 = vmatpush2.msra.mxu0 0.0
  %1790 = vmatprep.mubr.f32.mxu0 0.0
  %1791 = vmatmul.mubr.f32.gmra.mxu0 %v522
  %v1792 = vpop.f32.mrf.mxu0
  %v1793 = vadd.f32 %v1708, %v1792
  %v1794 = vpop.f32.mrf.mxu0
  %1795 = vmatprep.mubr.f32.mxu0 0.0
  %1796 = vmatmul.mubr.f32.gmra.mxu0 %v525
  %v1797 = vpop.f32.mrf.mxu0
  %v1798 = vadd.f32 %v1713, %v1797
  %v1799 = vpop.f32.mrf.mxu0
  %1800 = vmatprep.mubr.f32.mxu0 0.0
  %1801 = vmatmul.mubr.f32.gmra.mxu0 %v528
  %v1802 = vpop.f32.mrf.mxu0
  %v1803 = vadd.f32 %v1718, %v1802
  %v1804 = vpop.f32.mrf.mxu0
  %1805 = vmatprep.mubr.f32.mxu0 0.0
  %1806 = vmatmul.mubr.f32.gmra.mxu0 %v531
  %v1807 = vpop.f32.mrf.mxu0
  %v1808 = vadd.f32 %v1723, %v1807
  %v1809 = vpop.f32.mrf.mxu0
  %1810 = vdwg.mxu0
  %v1811 = vmax.f32 %v729, %v735
  %v1812 = vmax.f32 %v731, %v737
  %v1813 = vmax.f32 %v907, %v913
  %v1814 = vmax.f32 %v909, %v915
  %v1815 = vmax.f32 %v1085, %v1091
  %v1816 = vmax.f32 %v1087, %v1093
  %v1817 = vmax.f32 %v1263, %v1269
  %v1818 = vmax.f32 %v1265, %v1271
  %v1819 = vmax.f32 %v1441, %v1447
  %v1820 = vmax.f32 %v1443, %v1449
  %v1821 = vmax.f32 %v1619, %v1625
  %v1822 = vmax.f32 %v1621, %v1627
  %v1823 = vmax.f32 %v1793, %v1798
  %v1824 = vmax.f32 %v741, %v747
  %v1825 = vmax.f32 %v743, %v749
  %v1826 = vmax.f32 %v919, %v925
  %v1827 = vmax.f32 %v921, %v927
  %v1828 = vmax.f32 %v1097, %v1103
  %v1829 = vmax.f32 %v1099, %v1105
  %v1830 = vmax.f32 %v1275, %v1281
  %v1831 = vmax.f32 %v1277, %v1283
  %v1832 = vmax.f32 %v1453, %v1459
  %v1833 = vmax.f32 %v1455, %v1461
  %v1834 = vmax.f32 %v1631, %v1637
  %v1835 = vmax.f32 %v1633, %v1639
  %v1836 = vmax.f32 %v1803, %v1808
  %v1837 = vmax.f32 %v1811, %v1824
  %v1838 = vmax.f32 %v1812, %v1825
  %v1839 = vmax.f32 %v1813, %v1826
  %v1840 = vmax.f32 %v1814, %v1827
  %v1841 = vmax.f32 %v1815, %v1828
  %v1842 = vmax.f32 %v1816, %v1829
  %v1843 = vmax.f32 %v1817, %v1830
  %v1844 = vmax.f32 %v1818, %v1831
  %v1845 = vmax.f32 %v1819, %v1832
  %v1846 = vmax.f32 %v1820, %v1833
  %v1847 = vmax.f32 %v1821, %v1834
  %v1848 = vmax.f32 %v1822, %v1835
  %v1849 = vmax.f32 %v1823, %v1836
  %v1850 = vld [vmem:[%s2] sm:$0xff]
  %1852 = vset.pattern.permute.xlu0 0
  %1853 = vperm.xlu0 %1852, %v1850
  %v1854 = vpop.permute.xlu0 %1853
  %v1856 = vadd.f32 %v1837, %v1854
  %v1857 = vadd.f32 %v1838, %v1854
  %v1858 = vadd.f32 %v1839, %v1854
  %v1859 = vadd.f32 %v1840, %v1854
  %v1860 = vadd.f32 %v1841, %v1854
  %v1861 = vadd.f32 %v1842, %v1854
  %v1862 = vadd.f32 %v1843, %v1854
  %v1863 = vadd.f32 %v1844, %v1854
  %v1864 = vadd.f32 %v1845, %v1854
  %v1865 = vadd.f32 %v1846, %v1854
  %v1866 = vadd.f32 %v1847, %v1854
  %v1867 = vadd.f32 %v1848, %v1854
  %v1868 = vadd.f32 %v1849, %v1854
  %v1869 = vxor.u32 %v1856, 2147483648
  %v1870 = vxor.u32 %v1857, 2147483648
  %v1871 = vxor.u32 %v1858, 2147483648
  %v1872 = vxor.u32 %v1859, 2147483648
  %v1873 = vxor.u32 %v1860, 2147483648
  %v1874 = vxor.u32 %v1861, 2147483648
  %v1875 = vxor.u32 %v1862, 2147483648
  %v1876 = vxor.u32 %v1863, 2147483648
  %v1877 = vxor.u32 %v1864, 2147483648
  %v1878 = vxor.u32 %v1865, 2147483648
  %v1879 = vxor.u32 %v1866, 2147483648
  %v1880 = vxor.u32 %v1867, 2147483648
  %v1881 = vxor.u32 %v1868, 2147483648
  %v1882 = vmul.f32 %v1869, 1.442695
  %v1883 = vpow.pop %v1882
  %v1884 = vmul.f32 %v1870, 1.442695
  %v1885 = vpow.pop %v1884
  %v1886 = vmul.f32 %v1871, 1.442695
  %v1887 = vpow.pop %v1886
  %v1888 = vmul.f32 %v1872, 1.442695
  %v1889 = vpow.pop %v1888
  %v1890 = vmul.f32 %v1873, 1.442695
  %v1891 = vpow.pop %v1890
  %v1892 = vmul.f32 %v1874, 1.442695
  %v1893 = vpow.pop %v1892
  %v1894 = vmul.f32 %v1875, 1.442695
  %v1895 = vpow.pop %v1894
  %v1896 = vmul.f32 %v1876, 1.442695
  %v1897 = vpow.pop %v1896
  %v1898 = vmul.f32 %v1877, 1.442695
  %v1899 = vpow.pop %v1898
  %v1900 = vmul.f32 %v1878, 1.442695
  %v1901 = vpow.pop %v1900
  %v1902 = vmul.f32 %v1879, 1.442695
  %v1903 = vpow.pop %v1902
  %v1904 = vmul.f32 %v1880, 1.442695
  %v1905 = vpow.pop %v1904
  %v1906 = vmul.f32 %v1881, 1.442695
  %v1907 = vpow.pop %v1906
  %v1908 = vadd.f32 %v1883, 1.0
  %v1909 = vadd.f32 %v1885, 1.0
  %v1910 = vadd.f32 %v1887, 1.0
  %v1911 = vadd.f32 %v1889, 1.0
  %v1912 = vadd.f32 %v1891, 1.0
  %v1913 = vadd.f32 %v1893, 1.0
  %v1914 = vadd.f32 %v1895, 1.0
  %v1915 = vadd.f32 %v1897, 1.0
  %v1916 = vadd.f32 %v1899, 1.0
  %v1917 = vadd.f32 %v1901, 1.0
  %v1918 = vadd.f32 %v1903, 1.0
  %v1919 = vadd.f32 %v1905, 1.0
  %v1920 = vadd.f32 %v1907, 1.0
  %v1921 = vrcp.pop %v1908
  %v1922 = vmul.f32 1.0, %v1921
  %v1923 = vrcp.pop %v1909
  %v1924 = vmul.f32 1.0, %v1923
  %v1925 = vrcp.pop %v1910
  %v1926 = vmul.f32 1.0, %v1925
  %v1927 = vrcp.pop %v1911
  %v1928 = vmul.f32 1.0, %v1927
  %v1929 = vrcp.pop %v1912
  %v1930 = vmul.f32 1.0, %v1929
  %v1931 = vrcp.pop %v1913
  %v1932 = vmul.f32 1.0, %v1931
  %v1933 = vrcp.pop %v1914
  %v1934 = vmul.f32 1.0, %v1933
  %v1935 = vrcp.pop %v1915
  %v1936 = vmul.f32 1.0, %v1935
  %v1937 = vrcp.pop %v1916
  %v1938 = vmul.f32 1.0, %v1937
  %v1939 = vrcp.pop %v1917
  %v1940 = vmul.f32 1.0, %v1939
  %v1941 = vrcp.pop %v1918
  %v1942 = vmul.f32 1.0, %v1941
  %v1943 = vrcp.pop %v1919
  %v1944 = vmul.f32 1.0, %v1943
  %v1945 = vrcp.pop %v1920
  %v1946 = vmul.f32 1.0, %v1945
  %1947 = vst [vmem:[%s3] sm:$0xff] %v1922
  %1948 = vst [vmem:[%s3 + $0x8] sm:$0xff] %v1924
  %1949 = vst [vmem:[%s3 + $0x10] sm:$0xff] %v1926
  %1950 = vst [vmem:[%s3 + $0x18] sm:$0xff] %v1928
  %1951 = vst [vmem:[%s3 + $0x20] sm:$0xff] %v1930
  %1952 = vst [vmem:[%s3 + $0x28] sm:$0xff] %v1932
  %1953 = vst [vmem:[%s3 + $0x30] sm:$0xff] %v1934
  %1954 = vst [vmem:[%s3 + $0x38] sm:$0xff] %v1936
  %1955 = vst [vmem:[%s3 + $0x40] sm:$0xff] %v1938
  %1956 = vst [vmem:[%s3 + $0x48] sm:$0xff] %v1940
  %1957 = vst [vmem:[%s3 + $0x50] sm:$0xff] %v1942
  %1958 = vst [vmem:[%s3 + $0x58] sm:$0xff] %v1944
  %vm1959 = vcmask 261120
  %1960 = vst.msk [vmem:[%s3 + $0x60] sm:$0xff] %vm1959, %v1946
  // Predicated region
  $region14: #{grnn_lenet_forward.2} parent=0 // pred_check
    _
  $region15: #{grnn_lenet_forward.2} parent=0 // pred_check_branch
    %1962 = sbr.rel (0) target = $region17
  $region16: #{grnn_lenet_forward.2} parent=0 // pred_region
    _
  $region17: #{grnn_lenet_forward.2} parent=0 // pred_fallthru
    _
  // Predicated region
  $region18: #{grnn_lenet_forward.2} parent=0 // pred_check
    _
  $region19: #{grnn_lenet_forward.2} parent=0 // pred_check_branch
    %1964 = sbr.rel (0) target = $region21
  $region20: #{grnn_lenet_forward.2} parent=0 // pred_region
    _
  $region21: #{grnn_lenet_forward.2} parent=0 // pred_fallthru
    _

// kernel: grnn_lenet_forward.3
$region0: #{grnn_lenet_forward.3}
  #allocation0 [shape = 'u32[]', space=smem, size = 0x4, offset = 0x4, fixed_abs, tag = 'smem constant byte address 0x4 - core index']
  #allocation1 [shape = 'u32[144,128]{1,0:T(1,128)}', space=vmem, size = 0x12000, scoped, tag = 'internal scratch']
  %s0 = inlined_call_operand.vmem [shape: f32[1,800,150], index: 0, kind: input, shape index: {}]
  %s1 = inlined_call_operand.vmem [shape: f32[150,16], index: 1, kind: input, shape index: {}]
  %s2 = inlined_call_operand.vmem [shape: f32[1,16], index: 2, kind: input, shape index: {}]
  %s3 = inlined_call_operand.vmem [shape: f32[400,120], index: 3, kind: input, shape index: {}]
  %s4 = inlined_call_operand.vmem [shape: f32[1,120], index: 4, kind: input, shape index: {}]
  %s5 = inlined_call_operand.vmem [shape: f32[120,84], index: 5, kind: input, shape index: {}]
  %s6 = inlined_call_operand.vmem [shape: f32[1,84], index: 6, kind: input, shape index: {}]
  %s7 = inlined_call_operand.vmem [shape: f32[84,128], index: 7, kind: input, shape index: {}]
  %s8 = inlined_call_operand.vmem [shape: f32[1,128], index: 8, kind: input, shape index: {}]
  %s9 = inlined_call_operand.vmem [shape: f32[1,8,128], index: 9, kind: output, shape index: {}]
  %s10 = sld [smem:[#allocation0]]
  $region46: #{grnn_lenet_forward.3} parent=0
    _
  %s12 = ssub.s32 1, %s10
  %s13 = scalar_select 0, %s12, %s10
  // Predicated region
  $region2: #{grnn_lenet_forward.3} parent=0 // pred_check
    _
  $region3: #{grnn_lenet_forward.3} parent=0 // pred_check_branch
    %15 = sbr.rel (0) target = $region5
  $region4: #{grnn_lenet_forward.3} parent=0 // pred_region
    _
  $region5: #{grnn_lenet_forward.3} parent=0 // pred_fallthru
    _
  // Predicated region
  $region6: #{grnn_lenet_forward.3} parent=0 // pred_check
    _
  $region7: #{grnn_lenet_forward.3} parent=0 // pred_check_branch
    %17 = sbr.rel (0) target = $region9
  $region8: #{grnn_lenet_forward.3} parent=0 // pred_region
    _
  $region9: #{grnn_lenet_forward.3} parent=0 // pred_fallthru
    _
  // Predicated region
  $region10: #{grnn_lenet_forward.3} parent=0 // pred_check
    _
  $region11: #{grnn_lenet_forward.3} parent=0 // pred_check_branch
    %19 = sbr.rel (0) target = $region13
  $region12: #{grnn_lenet_forward.3} parent=0 // pred_region
    _
  $region13: #{grnn_lenet_forward.3} parent=0 // pred_fallthru
    _
  // Predicated region
  $region14: #{grnn_lenet_forward.3} parent=0 // pred_check
    _
  $region15: #{grnn_lenet_forward.3} parent=0 // pred_check_branch
    %21 = sbr.rel (0) target = $region17
  $region16: #{grnn_lenet_forward.3} parent=0 // pred_region
    _
  $region17: #{grnn_lenet_forward.3} parent=0 // pred_fallthru
    _
  // Predicated region
  $region18: #{grnn_lenet_forward.3} parent=0 // pred_check
    _
  $region19: #{grnn_lenet_forward.3} parent=0 // pred_check_branch
    %23 = sbr.rel (0) target = $region21
  $region20: #{grnn_lenet_forward.3} parent=0 // pred_region
    _
  $region21: #{grnn_lenet_forward.3} parent=0 // pred_fallthru
    _
  // Predicated region
  $region22: #{grnn_lenet_forward.3} parent=0 // pred_check
    _
  $region23: #{grnn_lenet_forward.3} parent=0 // pred_check_branch
    %25 = sbr.rel (0) target = $region25
  $region24: #{grnn_lenet_forward.3} parent=0 // pred_region
    _
  $region25: #{grnn_lenet_forward.3} parent=0 // pred_fallthru
    _
  // Predicated region
  $region26: #{grnn_lenet_forward.3} parent=0 // pred_check
    _
  $region27: #{grnn_lenet_forward.3} parent=0 // pred_check_branch
    %27 = sbr.rel (0) target = $region29
  $region28: #{grnn_lenet_forward.3} parent=0 // pred_region
    _
  $region29: #{grnn_lenet_forward.3} parent=0 // pred_fallthru
    _
  // Predicated region
  $region30: #{grnn_lenet_forward.3} parent=0 // pred_check
    _
  $region31: #{grnn_lenet_forward.3} parent=0 // pred_check_branch
    %29 = sbr.rel (0) target = $region33
  $region32: #{grnn_lenet_forward.3} parent=0 // pred_region
    _
  $region33: #{grnn_lenet_forward.3} parent=0 // pred_fallthru
    _
  // Predicated region
  $region34: #{grnn_lenet_forward.3} parent=0 // pred_check
    _
  $region35: #{grnn_lenet_forward.3} parent=0 // pred_check_branch
    %31 = sbr.rel (0) target = $region37
  $region36: #{grnn_lenet_forward.3} parent=0 // pred_region
    _
  $region37: #{grnn_lenet_forward.3} parent=0 // pred_fallthru
    _
  %v32 = vld [vmem:[%s0] sm:$0xff]
  %v33 = vld [vmem:[%s0 + $0x8] sm:$0xff]
  %v34 = vld [vmem:[%s0 + $0x10] sm:$0xff]
  %v35 = vld [vmem:[%s0 + $0x18] sm:$0xff]
  %v36 = vld [vmem:[%s0 + $0x20] sm:$0xff]
  %v37 = vld [vmem:[%s0 + $0x28] sm:$0xff]
  %v38 = vld [vmem:[%s0 + $0x30] sm:$0xff]
  %v39 = vld [vmem:[%s0 + $0x38] sm:$0xff]
  %v40 = vld [vmem:[%s0 + $0x40] sm:$0xff]
  %v41 = vld [vmem:[%s0 + $0x48] sm:$0xff]
  %v42 = vld [vmem:[%s0 + $0x50] sm:$0xff]
  %v43 = vld [vmem:[%s0 + $0x58] sm:$0xff]
  %v44 = vld [vmem:[%s0 + $0x60] sm:$0xff]
  %v45 = vld [vmem:[%s0 + $0x68] sm:$0xff]
  %v46 = vld [vmem:[%s0 + $0x70] sm:$0xff]
  %v47 = vld [vmem:[%s0 + $0x78] sm:$0xff]
  %v48 = vld [vmem:[%s0 + $0x80] sm:$0xff]
  %v49 = vld [vmem:[%s0 + $0x88] sm:$0xff]
  %v50 = vld [vmem:[%s0 + $0x90] sm:$0xff]
  %v51 = vld [vmem:[%s0 + $0x98] sm:$0xff]
  %v52 = vld [vmem:[%s0 + $0xa0] sm:$0xff]
  %v53 = vld [vmem:[%s0 + $0xa8] sm:$0xff]
  %v54 = vld [vmem:[%s0 + $0xb0] sm:$0xff]
  %v55 = vld [vmem:[%s0 + $0xb8] sm:$0xff]
  %v56 = vld [vmem:[%s0 + $0xc0] sm:$0xff]
  %v57 = vld [vmem:[%s0 + $0xc8] sm:$0xff]
  %v58 = vld [vmem:[%s0 + $0xd0] sm:$0xff]
  %v59 = vld [vmem:[%s0 + $0xd8] sm:$0xff]
  %v60 = vld [vmem:[%s0 + $0xe0] sm:$0xff]
  %v61 = vld [vmem:[%s0 + $0xe8] sm:$0xff]
  %v62 = vld [vmem:[%s0 + $0xf0] sm:$0xff]
  %v63 = vld [vmem:[%s0 + $0xf8] sm:$0xff]
  %v64 = vld [vmem:[%s0 + $0x100] sm:$0xff]
  %v65 = vld [vmem:[%s0 + $0x108] sm:$0xff]
  %v66 = vld [vmem:[%s0 + $0x110] sm:$0xff]
  %v67 = vld [vmem:[%s0 + $0x118] sm:$0xff]
  %v68 = vld [vmem:[%s0 + $0x120] sm:$0xff]
  %v69 = vld [vmem:[%s0 + $0x128] sm:$0xff]
  %v70 = vld [vmem:[%s0 + $0x130] sm:$0xff]
  %v71 = vld [vmem:[%s0 + $0x138] sm:$0xff]
  %v72 = vld [vmem:[%s0 + $0x140] sm:$0xff]
  %v73 = vld [vmem:[%s0 + $0x148] sm:$0xff]
  %v74 = vld [vmem:[%s0 + $0x150] sm:$0xff]
  %v75 = vld [vmem:[%s0 + $0x158] sm:$0xff]
  %v76 = vld [vmem:[%s0 + $0x160] sm:$0xff]
  %v77 = vld [vmem:[%s0 + $0x168] sm:$0xff]
  %v78 = vld [vmem:[%s0 + $0x170] sm:$0xff]
  %v79 = vld [vmem:[%s0 + $0x178] sm:$0xff]
  %v80 = vld [vmem:[%s0 + $0x180] sm:$0xff]
  %v81 = vld [vmem:[%s0 + $0x188] sm:$0xff]
  %v82 = vld [vmem:[%s0 + $0x190] sm:$0xff]
  %v83 = vld [vmem:[%s0 + $0x198] sm:$0xff]
  %v84 = vld [vmem:[%s0 + $0x1a0] sm:$0xff]
  %v85 = vld [vmem:[%s0 + $0x1a8] sm:$0xff]
  %v86 = vld [vmem:[%s0 + $0x1b0] sm:$0xff]
  %v87 = vld [vmem:[%s0 + $0x1b8] sm:$0xff]
  %v88 = vld [vmem:[%s0 + $0x1c0] sm:$0xff]
  %v89 = vld [vmem:[%s0 + $0x1c8] sm:$0xff]
  %v90 = vld [vmem:[%s0 + $0x1d0] sm:$0xff]
  %v91 = vld [vmem:[%s0 + $0x1d8] sm:$0xff]
  %v92 = vld [vmem:[%s0 + $0x1e0] sm:$0xff]
  %v93 = vld [vmem:[%s0 + $0x1e8] sm:$0xff]
  %v94 = vld [vmem:[%s0 + $0x1f0] sm:$0xff]
  %v95 = vld [vmem:[%s0 + $0x1f8] sm:$0xff]
  %v96 = vld [vmem:[%s0 + $0x200] sm:$0xff]
  %v97 = vld [vmem:[%s0 + $0x208] sm:$0xff]
  %v98 = vld [vmem:[%s0 + $0x210] sm:$0xff]
  %v99 = vld [vmem:[%s0 + $0x218] sm:$0xff]
  %v100 = vld [vmem:[%s0 + $0x220] sm:$0xff]
  %v101 = vld [vmem:[%s0 + $0x228] sm:$0xff]
  %v102 = vld [vmem:[%s0 + $0x230] sm:$0xff]
  %v103 = vld [vmem:[%s0 + $0x238] sm:$0xff]
  %v104 = vld [vmem:[%s0 + $0x240] sm:$0xff]
  %v105 = vld [vmem:[%s0 + $0x248] sm:$0xff]
  %v106 = vld [vmem:[%s0 + $0x250] sm:$0xff]
  %v107 = vld [vmem:[%s0 + $0x258] sm:$0xff]
  %v108 = vld [vmem:[%s0 + $0x260] sm:$0xff]
  %v109 = vld [vmem:[%s0 + $0x268] sm:$0xff]
  %v110 = vld [vmem:[%s0 + $0x270] sm:$0xff]
  %v111 = vld [vmem:[%s0 + $0x278] sm:$0xff]
  %v112 = vld [vmem:[%s0 + $0x280] sm:$0xff]
  %v113 = vld [vmem:[%s0 + $0x288] sm:$0xff]
  %v114 = vld [vmem:[%s0 + $0x290] sm:$0xff]
  %v115 = vld [vmem:[%s0 + $0x298] sm:$0xff]
  %v116 = vld [vmem:[%s0 + $0x2a0] sm:$0xff]
  %v117 = vld [vmem:[%s0 + $0x2a8] sm:$0xff]
  %v118 = vld [vmem:[%s0 + $0x2b0] sm:$0xff]
  %v119 = vld [vmem:[%s0 + $0x2b8] sm:$0xff]
  %v120 = vld [vmem:[%s0 + $0x2c0] sm:$0xff]
  %v121 = vld [vmem:[%s0 + $0x2c8] sm:$0xff]
  %v122 = vld [vmem:[%s0 + $0x2d0] sm:$0xff]
  %v123 = vld [vmem:[%s0 + $0x2d8] sm:$0xff]
  %v124 = vld [vmem:[%s0 + $0x2e0] sm:$0xff]
  %v125 = vld [vmem:[%s0 + $0x2e8] sm:$0xff]
  %v126 = vld [vmem:[%s0 + $0x2f0] sm:$0xff]
  %v127 = vld [vmem:[%s0 + $0x2f8] sm:$0xff]
  %v128 = vld [vmem:[%s0 + $0x300] sm:$0xff]
  %v129 = vld [vmem:[%s0 + $0x308] sm:$0xff]
  %v130 = vld [vmem:[%s0 + $0x310] sm:$0xff]
  %v131 = vld [vmem:[%s0 + $0x318] sm:$0xff]
  %v132 = vld [vmem:[%s0 + $0x320] sm:$0xff]
  %v133 = vld [vmem:[%s0 + $0x328] sm:$0xff]
  %v134 = vld [vmem:[%s0 + $0x330] sm:$0xff]
  %v135 = vld [vmem:[%s0 + $0x338] sm:$0xff]
  %v136 = vld [vmem:[%s0 + $0x340] sm:$0xff]
  %v137 = vld [vmem:[%s0 + $0x348] sm:$0xff]
  %v138 = vld [vmem:[%s0 + $0x350] sm:$0xff]
  %v139 = vld [vmem:[%s0 + $0x358] sm:$0xff]
  %v140 = vld [vmem:[%s0 + $0x360] sm:$0xff]
  %v141 = vld [vmem:[%s0 + $0x368] sm:$0xff]
  %v142 = vld [vmem:[%s0 + $0x370] sm:$0xff]
  %v143 = vld [vmem:[%s0 + $0x378] sm:$0xff]
  %v144 = vld [vmem:[%s0 + $0x380] sm:$0xff]
  %v145 = vld [vmem:[%s0 + $0x388] sm:$0xff]
  %v146 = vld [vmem:[%s0 + $0x390] sm:$0xff]
  %v147 = vld [vmem:[%s0 + $0x398] sm:$0xff]
  %v148 = vld [vmem:[%s0 + $0x3a0] sm:$0xff]
  %v149 = vld [vmem:[%s0 + $0x3a8] sm:$0xff]
  %v150 = vld [vmem:[%s0 + $0x3b0] sm:$0xff]
  %v151 = vld [vmem:[%s0 + $0x3b8] sm:$0xff]
  %v152 = vld [vmem:[%s0 + $0x3c0] sm:$0xff]
  %v153 = vld [vmem:[%s0 + $0x3c8] sm:$0xff]
  %v154 = vld [vmem:[%s0 + $0x3d0] sm:$0xff]
  %v155 = vld [vmem:[%s0 + $0x3d8] sm:$0xff]
  %v156 = vld [vmem:[%s0 + $0x3e0] sm:$0xff]
  %v157 = vld [vmem:[%s0 + $0x3e8] sm:$0xff]
  %v158 = vld [vmem:[%s0 + $0x3f0] sm:$0xff]
  %v159 = vld [vmem:[%s0 + $0x3f8] sm:$0xff]
  %v160 = vld [vmem:[%s0 + $0x400] sm:$0xff]
  %v161 = vld [vmem:[%s0 + $0x408] sm:$0xff]
  %v162 = vld [vmem:[%s0 + $0x410] sm:$0xff]
  %v163 = vld [vmem:[%s0 + $0x418] sm:$0xff]
  %v164 = vld [vmem:[%s0 + $0x420] sm:$0xff]
  %v165 = vld [vmem:[%s0 + $0x428] sm:$0xff]
  %v166 = vld [vmem:[%s0 + $0x430] sm:$0xff]
  %v167 = vld [vmem:[%s0 + $0x438] sm:$0xff]
  %v168 = vld [vmem:[%s0 + $0x440] sm:$0xff]
  %v169 = vld [vmem:[%s0 + $0x448] sm:$0xff]
  %v170 = vld [vmem:[%s0 + $0x450] sm:$0xff]
  %v171 = vld [vmem:[%s0 + $0x458] sm:$0xff]
  %v172 = vld [vmem:[%s0 + $0x460] sm:$0xff]
  %v173 = vld [vmem:[%s0 + $0x468] sm:$0xff]
  %v174 = vld [vmem:[%s0 + $0x470] sm:$0xff]
  %v175 = vld [vmem:[%s0 + $0x478] sm:$0xff]
  %v176 = vld [vmem:[%s0 + $0x480] sm:$0xff]
  %v177 = vld [vmem:[%s0 + $0x488] sm:$0xff]
  %v178 = vld [vmem:[%s0 + $0x490] sm:$0xff]
  %v179 = vld [vmem:[%s0 + $0x498] sm:$0xff]
  %v180 = vld [vmem:[%s0 + $0x4a0] sm:$0xff]
  %v181 = vld [vmem:[%s0 + $0x4a8] sm:$0xff]
  %v182 = vld [vmem:[%s0 + $0x4b0] sm:$0xff]
  %v183 = vld [vmem:[%s0 + $0x4b8] sm:$0xff]
  %v184 = vld [vmem:[%s0 + $0x4c0] sm:$0xff]
  %v185 = vld [vmem:[%s0 + $0x4c8] sm:$0xff]
  %v186 = vld [vmem:[%s0 + $0x4d0] sm:$0xff]
  %v187 = vld [vmem:[%s0 + $0x4d8] sm:$0xff]
  %v188 = vld [vmem:[%s0 + $0x4e0] sm:$0xff]
  %v189 = vld [vmem:[%s0 + $0x4e8] sm:$0xff]
  %v190 = vld [vmem:[%s0 + $0x4f0] sm:$0xff]
  %v191 = vld [vmem:[%s0 + $0x4f8] sm:$0xff]
  %v192 = vld [vmem:[%s0 + $0x500] sm:$0xff]
  %v193 = vld [vmem:[%s0 + $0x508] sm:$0xff]
  %v194 = vld [vmem:[%s0 + $0x510] sm:$0xff]
  %v195 = vld [vmem:[%s0 + $0x518] sm:$0xff]
  %v196 = vld [vmem:[%s0 + $0x520] sm:$0xff]
  %v197 = vld [vmem:[%s0 + $0x528] sm:$0xff]
  %v198 = vld [vmem:[%s0 + $0x530] sm:$0xff]
  %v199 = vld [vmem:[%s0 + $0x538] sm:$0xff]
  %v200 = vld [vmem:[%s0 + $0x540] sm:$0xff]
  %v201 = vld [vmem:[%s0 + $0x548] sm:$0xff]
  %v202 = vld [vmem:[%s0 + $0x550] sm:$0xff]
  %v203 = vld [vmem:[%s0 + $0x558] sm:$0xff]
  %v204 = vld [vmem:[%s0 + $0x560] sm:$0xff]
  %v205 = vld [vmem:[%s0 + $0x568] sm:$0xff]
  %v206 = vld [vmem:[%s0 + $0x570] sm:$0xff]
  %v207 = vld [vmem:[%s0 + $0x578] sm:$0xff]
  %v208 = vld [vmem:[%s0 + $0x580] sm:$0xff]
  %v209 = vld [vmem:[%s0 + $0x588] sm:$0xff]
  %v210 = vld [vmem:[%s0 + $0x590] sm:$0xff]
  %v211 = vld [vmem:[%s0 + $0x598] sm:$0xff]
  %v212 = vld [vmem:[%s0 + $0x5a0] sm:$0xff]
  %v213 = vld [vmem:[%s0 + $0x5a8] sm:$0xff]
  %v214 = vld [vmem:[%s0 + $0x5b0] sm:$0xff]
  %v215 = vld [vmem:[%s0 + $0x5b8] sm:$0xff]
  %v216 = vld [vmem:[%s0 + $0x5c0] sm:$0xff]
  %v217 = vld [vmem:[%s0 + $0x5c8] sm:$0xff]
  %v218 = vld [vmem:[%s0 + $0x5d0] sm:$0xff]
  %v219 = vld [vmem:[%s0 + $0x5d8] sm:$0xff]
  %v220 = vld [vmem:[%s0 + $0x5e0] sm:$0xff]
  %v221 = vld [vmem:[%s0 + $0x5e8] sm:$0xff]
  %v222 = vld [vmem:[%s0 + $0x5f0] sm:$0xff]
  %v223 = vld [vmem:[%s0 + $0x5f8] sm:$0xff]
  %v224 = vld [vmem:[%s0 + $0x600] sm:$0xff]
  %v225 = vld [vmem:[%s0 + $0x608] sm:$0xff]
  %v226 = vld [vmem:[%s0 + $0x610] sm:$0xff]
  %v227 = vld [vmem:[%s0 + $0x618] sm:$0xff]
  %v228 = vld [vmem:[%s0 + $0x620] sm:$0xff]
  %v229 = vld [vmem:[%s0 + $0x628] sm:$0xff]
  %v230 = vld [vmem:[%s0 + $0x630] sm:$0xff]
  %v231 = vld [vmem:[%s0 + $0x638] sm:$0xff]
  %v232 = vld [vmem:[%s1] sm:$0xff]
  %v233 = vld [vmem:[%s1 + $0x8] sm:$0xff]
  %v234 = vld [vmem:[%s1 + $0x10] sm:$0xff]
  %v235 = vld [vmem:[%s1 + $0x18] sm:$0xff]
  %v236 = vld [vmem:[%s1 + $0x20] sm:$0xff]
  %v237 = vld [vmem:[%s1 + $0x28] sm:$0xff]
  %v238 = vld [vmem:[%s1 + $0x30] sm:$0xff]
  %v239 = vld [vmem:[%s1 + $0x38] sm:$0xff]
  %v240 = vld [vmem:[%s1 + $0x40] sm:$0xff]
  %v241 = vld [vmem:[%s1 + $0x48] sm:$0xff]
  %v242 = vld [vmem:[%s1 + $0x50] sm:$0xff]
  %v243 = vld [vmem:[%s1 + $0x58] sm:$0xff]
  %v244 = vld [vmem:[%s1 + $0x60] sm:$0xff]
  %v245 = vld [vmem:[%s1 + $0x68] sm:$0xff]
  %v246 = vld [vmem:[%s1 + $0x70] sm:$0xff]
  %v247 = vld [vmem:[%s1 + $0x78] sm:$0xff]
  %v248 = vld [vmem:[%s1 + $0x80] sm:$0xff]
  %v249 = vld [vmem:[%s1 + $0x88] sm:$0xff]
  %v250 = vld [vmem:[%s1 + $0x90] sm:$0x3f]
  %vm251 = vcmask 179200
  %v253 = vsel %vm251, %v33, 0
  %v256 = vsel %vm251, %v35, 0
  %v259 = vsel %vm251, %v37, 0
  %v262 = vsel %vm251, %v39, 0
  %v265 = vsel %vm251, %v41, 0
  %v268 = vsel %vm251, %v43, 0
  %v271 = vsel %vm251, %v45, 0
  %v274 = vsel %vm251, %v47, 0
  %v277 = vsel %vm251, %v49, 0
  %v280 = vsel %vm251, %v51, 0
  %v283 = vsel %vm251, %v53, 0
  %v286 = vsel %vm251, %v55, 0
  %v289 = vsel %vm251, %v57, 0
  %v292 = vsel %vm251, %v59, 0
  %v295 = vsel %vm251, %v61, 0
  %v298 = vsel %vm251, %v63, 0
  %v301 = vsel %vm251, %v65, 0
  %v304 = vsel %vm251, %v67, 0
  %v307 = vsel %vm251, %v69, 0
  %v310 = vsel %vm251, %v71, 0
  %v313 = vsel %vm251, %v73, 0
  %v316 = vsel %vm251, %v75, 0
  %v319 = vsel %vm251, %v77, 0
  %v322 = vsel %vm251, %v79, 0
  %v325 = vsel %vm251, %v81, 0
  %v328 = vsel %vm251, %v83, 0
  %v331 = vsel %vm251, %v85, 0
  %v334 = vsel %vm251, %v87, 0
  %v337 = vsel %vm251, %v89, 0
  %v340 = vsel %vm251, %v91, 0
  %v343 = vsel %vm251, %v93, 0
  %v346 = vsel %vm251, %v95, 0
  %v349 = vsel %vm251, %v97, 0
  %v352 = vsel %vm251, %v99, 0
  %v355 = vsel %vm251, %v101, 0
  %v358 = vsel %vm251, %v103, 0
  %v361 = vsel %vm251, %v105, 0
  %v364 = vsel %vm251, %v107, 0
  %v367 = vsel %vm251, %v109, 0
  %v370 = vsel %vm251, %v111, 0
  %v373 = vsel %vm251, %v113, 0
  %v376 = vsel %vm251, %v115, 0
  %v379 = vsel %vm251, %v117, 0
  %v382 = vsel %vm251, %v119, 0
  %v385 = vsel %vm251, %v121, 0
  %v388 = vsel %vm251, %v123, 0
  %v391 = vsel %vm251, %v125, 0
  %v394 = vsel %vm251, %v127, 0
  %v397 = vsel %vm251, %v129, 0
  %v400 = vsel %vm251, %v131, 0
  %v403 = vsel %vm251, %v133, 0
  %v406 = vsel %vm251, %v135, 0
  %v409 = vsel %vm251, %v137, 0
  %v412 = vsel %vm251, %v139, 0
  %v415 = vsel %vm251, %v141, 0
  %v418 = vsel %vm251, %v143, 0
  %v421 = vsel %vm251, %v145, 0
  %v424 = vsel %vm251, %v147, 0
  %v427 = vsel %vm251, %v149, 0
  %v430 = vsel %vm251, %v151, 0
  %v433 = vsel %vm251, %v153, 0
  %v436 = vsel %vm251, %v155, 0
  %v439 = vsel %vm251, %v157, 0
  %v442 = vsel %vm251, %v159, 0
  %v445 = vsel %vm251, %v161, 0
  %v448 = vsel %vm251, %v163, 0
  %v451 = vsel %vm251, %v165, 0
  %v454 = vsel %vm251, %v167, 0
  %v457 = vsel %vm251, %v169, 0
  %v460 = vsel %vm251, %v171, 0
  %v463 = vsel %vm251, %v173, 0
  %v466 = vsel %vm251, %v175, 0
  %v469 = vsel %vm251, %v177, 0
  %v472 = vsel %vm251, %v179, 0
  %v475 = vsel %vm251, %v181, 0
  %v478 = vsel %vm251, %v183, 0
  %v481 = vsel %vm251, %v185, 0
  %v484 = vsel %vm251, %v187, 0
  %v487 = vsel %vm251, %v189, 0
  %v490 = vsel %vm251, %v191, 0
  %v493 = vsel %vm251, %v193, 0
  %v496 = vsel %vm251, %v195, 0
  %v499 = vsel %vm251, %v197, 0
  %v502 = vsel %vm251, %v199, 0
  %v505 = vsel %vm251, %v201, 0
  %v508 = vsel %vm251, %v203, 0
  %v511 = vsel %vm251, %v205, 0
  %v514 = vsel %vm251, %v207, 0
  %v517 = vsel %vm251, %v209, 0
  %v520 = vsel %vm251, %v211, 0
  %v523 = vsel %vm251, %v213, 0
  %v526 = vsel %vm251, %v215, 0
  %v529 = vsel %vm251, %v217, 0
  %v532 = vsel %vm251, %v219, 0
  %v535 = vsel %vm251, %v221, 0
  %v538 = vsel %vm251, %v223, 0
  %v541 = vsel %vm251, %v225, 0
  %v544 = vsel %vm251, %v227, 0
  %v547 = vsel %vm251, %v229, 0
  %v550 = vsel %vm251, %v231, 0
  %vm552 = vcmask 1045504
  %v554 = vsel %vm552, %v250, 0
  %556 = vmatprep.subr.mxu0 0.0
  %557 = vmatpush1.msra.mxu0 %v247
  %558 = vmatprep.subr.mxu0 0.0
  %559 = vmatpush1.msra.mxu0 %v246
  %560 = vmatprep.subr.mxu0 0.0
  %561 = vmatpush1.msra.mxu0 %v245
  %562 = vmatprep.subr.mxu0 0.0
  %563 = vmatpush1.msra.mxu0 %v244
  %564 = vmatprep.subr.mxu0 0.0
  %565 = vmatpush1.msra.mxu0 %v243
  %566 = vmatprep.subr.mxu0 0.0
  %567 = vmatpush1.msra.mxu0 %v242
  %568 = vmatprep.subr.mxu0 0.0
  %569 = vmatpush1.msra.mxu0 %v241
  %570 = vmatprep.subr.mxu0 0.0
  %571 = vmatpush1.msra.mxu0 %v240
  %572 = vmatprep.subr.mxu0 0.0
  %573 = vmatpush1.msra.mxu0 %v239
  %574 = vmatprep.subr.mxu0 0.0
  %575 = vmatpush1.msra.mxu0 %v238
  %576 = vmatprep.subr.mxu0 0.0
  %577 = vmatpush1.msra.mxu0 %v237
  %578 = vmatprep.subr.mxu0 0.0
  %579 = vmatpush1.msra.mxu0 %v236
  %580 = vmatprep.subr.mxu0 0.0
  %581 = vmatpush1.msra.mxu0 %v235
  %582 = vmatprep.subr.mxu0 0.0
  %583 = vmatpush1.msra.mxu0 %v234
  %584 = vmatprep.subr.mxu0 0.0
  %585 = vmatpush1.msra.mxu0 %v233
  %586 = vmatprep.subr.mxu0 0.0
  %587 = vmatpush1.msra.mxu0 %v232
  %588 = vmatprep.subr.mxu0 0.0
  %589 = vmatpush2.msra.mxu0 0.0
  %590 = vmatprep.subr.mxu0 0.0
  %591 = vmatpush2.msra.mxu0 0.0
  %592 = vmatprep.subr.mxu0 0.0
  %593 = vmatpush2.msra.mxu0 0.0
  %594 = vmatprep.subr.mxu0 0.0
  %595 = vmatpush2.msra.mxu0 0.0
  %596 = vmatprep.subr.mxu0 0.0
  %597 = vmatpush2.msra.mxu0 0.0
  %598 = vmatprep.subr.mxu0 0.0
  %599 = vmatpush2.msra.mxu0 0.0
  %600 = vmatprep.subr.mxu0 0.0
  %601 = vmatpush2.msra.mxu0 0.0
  %602 = vmatprep.subr.mxu0 0.0
  %603 = vmatpush2.msra.mxu0 0.0
  %604 = vmatprep.subr.mxu0 0.0
  %605 = vmatpush2.msra.mxu0 0.0
  %606 = vmatprep.subr.mxu0 0.0
  %607 = vmatpush2.msra.mxu0 0.0
  %608 = vmatprep.subr.mxu0 0.0
  %609 = vmatpush2.msra.mxu0 0.0
  %610 = vmatprep.subr.mxu0 0.0
  %611 = vmatpush2.msra.mxu0 0.0
  %612 = vmatprep.subr.mxu0 0.0
  %613 = vmatpush2.msra.mxu0 0.0
  %614 = vmatprep.subr.mxu0 0.0
  %615 = vmatpush2.msra.mxu0 %v554
  %616 = vmatprep.subr.mxu0 0.0
  %617 = vmatpush2.msra.mxu0 %v249
  %618 = vmatprep.subr.mxu0 0.0
  %619 = vmatpush2.msra.mxu0 %v248
  %620 = vmatprep.mubr.f32.mxu0 %v253
  %621 = vmatmul.mubr.f32.gmra.mxu0 %v32
  %v622 = vpop.f32.mrf.mxu0
  %v623 = vadd.f32 0.0, %v622
  %v624 = vpop.f32.mrf.mxu0
  %625 = vmatprep.mubr.f32.mxu0 %v256
  %626 = vmatmul.mubr.f32.gmra.mxu0 %v34
  %v627 = vpop.f32.mrf.mxu0
  %v628 = vadd.f32 0.0, %v627
  %v629 = vpop.f32.mrf.mxu0
  %630 = vmatprep.mubr.f32.mxu0 %v259
  %631 = vmatmul.mubr.f32.gmra.mxu0 %v36
  %v632 = vpop.f32.mrf.mxu0
  %v633 = vadd.f32 0.0, %v632
  %v634 = vpop.f32.mrf.mxu0
  %635 = vmatprep.mubr.f32.mxu0 %v262
  %636 = vmatmul.mubr.f32.gmra.mxu0 %v38
  %v637 = vpop.f32.mrf.mxu0
  %v638 = vadd.f32 0.0, %v637
  %v639 = vpop.f32.mrf.mxu0
  %640 = vmatprep.mubr.f32.mxu0 %v265
  %641 = vmatmul.mubr.f32.gmra.mxu0 %v40
  %v642 = vpop.f32.mrf.mxu0
  %v643 = vadd.f32 0.0, %v642
  %v644 = vpop.f32.mrf.mxu0
  %645 = vmatprep.mubr.f32.mxu0 %v268
  %646 = vmatmul.mubr.f32.gmra.mxu0 %v42
  %v647 = vpop.f32.mrf.mxu0
  %v648 = vadd.f32 0.0, %v647
  %v649 = vpop.f32.mrf.mxu0
  %650 = vmatprep.mubr.f32.mxu0 %v271
  %651 = vmatmul.mubr.f32.gmra.mxu0 %v44
  %v652 = vpop.f32.mrf.mxu0
  %v653 = vadd.f32 0.0, %v652
  %v654 = vpop.f32.mrf.mxu0
  %655 = vmatprep.mubr.f32.mxu0 %v274
  %656 = vmatmul.mubr.f32.gmra.mxu0 %v46
  %v657 = vpop.f32.mrf.mxu0
  %v658 = vadd.f32 0.0, %v657
  %v659 = vpop.f32.mrf.mxu0
  %660 = vmatprep.mubr.f32.mxu0 %v277
  %661 = vmatmul.mubr.f32.gmra.mxu0 %v48
  %v662 = vpop.f32.mrf.mxu0
  %v663 = vadd.f32 0.0, %v662
  %v664 = vpop.f32.mrf.mxu0
  %665 = vmatprep.mubr.f32.mxu0 %v280
  %666 = vmatmul.mubr.f32.gmra.mxu0 %v50
  %v667 = vpop.f32.mrf.mxu0
  %v668 = vadd.f32 0.0, %v667
  %v669 = vpop.f32.mrf.mxu0
  %670 = vmatprep.mubr.f32.mxu0 %v283
  %671 = vmatmul.mubr.f32.gmra.mxu0 %v52
  %v672 = vpop.f32.mrf.mxu0
  %v673 = vadd.f32 0.0, %v672
  %v674 = vpop.f32.mrf.mxu0
  %675 = vmatprep.mubr.f32.mxu0 %v286
  %676 = vmatmul.mubr.f32.gmra.mxu0 %v54
  %v677 = vpop.f32.mrf.mxu0
  %v678 = vadd.f32 0.0, %v677
  %v679 = vpop.f32.mrf.mxu0
  %680 = vmatprep.mubr.f32.mxu0 %v289
  %681 = vmatmul.mubr.f32.gmra.mxu0 %v56
  %v682 = vpop.f32.mrf.mxu0
  %v683 = vadd.f32 0.0, %v682
  %v684 = vpop.f32.mrf.mxu0
  %685 = vmatprep.mubr.f32.mxu0 %v292
  %686 = vmatmul.mubr.f32.gmra.mxu0 %v58
  %v687 = vpop.f32.mrf.mxu0
  %v688 = vadd.f32 0.0, %v687
  %v689 = vpop.f32.mrf.mxu0
  %690 = vmatprep.mubr.f32.mxu0 %v295
  %691 = vmatmul.mubr.f32.gmra.mxu0 %v60
  %v692 = vpop.f32.mrf.mxu0
  %v693 = vadd.f32 0.0, %v692
  %v694 = vpop.f32.mrf.mxu0
  %695 = vmatprep.mubr.f32.mxu0 %v298
  %696 = vmatmul.mubr.f32.gmra.mxu0 %v62
  %v697 = vpop.f32.mrf.mxu0
  %v698 = vadd.f32 0.0, %v697
  %v699 = vpop.f32.mrf.mxu0
  %700 = vmatprep.mubr.f32.mxu0 %v301
  %701 = vmatmul.mubr.f32.gmra.mxu0 %v64
  %v702 = vpop.f32.mrf.mxu0
  %v703 = vadd.f32 0.0, %v702
  %v704 = vpop.f32.mrf.mxu0
  %705 = vmatprep.mubr.f32.mxu0 %v304
  %706 = vmatmul.mubr.f32.gmra.mxu0 %v66
  %v707 = vpop.f32.mrf.mxu0
  %v708 = vadd.f32 0.0, %v707
  %v709 = vpop.f32.mrf.mxu0
  %710 = vmatprep.mubr.f32.mxu0 %v307
  %711 = vmatmul.mubr.f32.gmra.mxu0 %v68
  %v712 = vpop.f32.mrf.mxu0
  %v713 = vadd.f32 0.0, %v712
  %v714 = vpop.f32.mrf.mxu0
  %715 = vmatprep.mubr.f32.mxu0 %v310
  %716 = vmatmul.mubr.f32.gmra.mxu0 %v70
  %v717 = vpop.f32.mrf.mxu0
  %v718 = vadd.f32 0.0, %v717
  %v719 = vpop.f32.mrf.mxu0
  %720 = vmatprep.mubr.f32.mxu0 %v313
  %721 = vmatmul.mubr.f32.gmra.mxu0 %v72
  %v722 = vpop.f32.mrf.mxu0
  %v723 = vadd.f32 0.0, %v722
  %v724 = vpop.f32.mrf.mxu0
  %725 = vmatprep.mubr.f32.mxu0 %v316
  %726 = vmatmul.mubr.f32.gmra.mxu0 %v74
  %v727 = vpop.f32.mrf.mxu0
  %v728 = vadd.f32 0.0, %v727
  %v729 = vpop.f32.mrf.mxu0
  %730 = vmatprep.mubr.f32.mxu0 %v319
  %731 = vmatmul.mubr.f32.gmra.mxu0 %v76
  %v732 = vpop.f32.mrf.mxu0
  %v733 = vadd.f32 0.0, %v732
  %v734 = vpop.f32.mrf.mxu0
  %735 = vmatprep.mubr.f32.mxu0 %v322
  %736 = vmatmul.mubr.f32.gmra.mxu0 %v78
  %v737 = vpop.f32.mrf.mxu0
  %v738 = vadd.f32 0.0, %v737
  %v739 = vpop.f32.mrf.mxu0
  %740 = vmatprep.mubr.f32.mxu0 %v325
  %741 = vmatmul.mubr.f32.gmra.mxu0 %v80
  %v742 = vpop.f32.mrf.mxu0
  %v743 = vadd.f32 0.0, %v742
  %v744 = vpop.f32.mrf.mxu0
  %745 = vmatprep.mubr.f32.mxu0 %v328
  %746 = vmatmul.mubr.f32.gmra.mxu0 %v82
  %v747 = vpop.f32.mrf.mxu0
  %v748 = vadd.f32 0.0, %v747
  %v749 = vpop.f32.mrf.mxu0
  %750 = vmatprep.mubr.f32.mxu0 %v331
  %751 = vmatmul.mubr.f32.gmra.mxu0 %v84
  %v752 = vpop.f32.mrf.mxu0
  %v753 = vadd.f32 0.0, %v752
  %v754 = vpop.f32.mrf.mxu0
  %755 = vmatprep.mubr.f32.mxu0 %v334
  %756 = vmatmul.mubr.f32.gmra.mxu0 %v86
  %v757 = vpop.f32.mrf.mxu0
  %v758 = vadd.f32 0.0, %v757
  %v759 = vpop.f32.mrf.mxu0
  %760 = vmatprep.mubr.f32.mxu0 %v337
  %761 = vmatmul.mubr.f32.gmra.mxu0 %v88
  %v762 = vpop.f32.mrf.mxu0
  %v763 = vadd.f32 0.0, %v762
  %v764 = vpop.f32.mrf.mxu0
  %765 = vmatprep.mubr.f32.mxu0 %v340
  %766 = vmatmul.mubr.f32.gmra.mxu0 %v90
  %v767 = vpop.f32.mrf.mxu0
  %v768 = vadd.f32 0.0, %v767
  %v769 = vpop.f32.mrf.mxu0
  %770 = vmatprep.mubr.f32.mxu0 %v343
  %771 = vmatmul.mubr.f32.gmra.mxu0 %v92
  %v772 = vpop.f32.mrf.mxu0
  %v773 = vadd.f32 0.0, %v772
  %v774 = vpop.f32.mrf.mxu0
  %775 = vmatprep.mubr.f32.mxu0 %v346
  %776 = vmatmul.mubr.f32.gmra.mxu0 %v94
  %v777 = vpop.f32.mrf.mxu0
  %v778 = vadd.f32 0.0, %v777
  %v779 = vpop.f32.mrf.mxu0
  %780 = vmatprep.mubr.f32.mxu0 %v349
  %781 = vmatmul.mubr.f32.gmra.mxu0 %v96
  %v782 = vpop.f32.mrf.mxu0
  %v783 = vadd.f32 0.0, %v782
  %v784 = vpop.f32.mrf.mxu0
  %785 = vmatprep.mubr.f32.mxu0 %v352
  %786 = vmatmul.mubr.f32.gmra.mxu0 %v98
  %v787 = vpop.f32.mrf.mxu0
  %v788 = vadd.f32 0.0, %v787
  %v789 = vpop.f32.mrf.mxu0
  %790 = vmatprep.mubr.f32.mxu0 %v355
  %791 = vmatmul.mubr.f32.gmra.mxu0 %v100
  %v792 = vpop.f32.mrf.mxu0
  %v793 = vadd.f32 0.0, %v792
  %v794 = vpop.f32.mrf.mxu0
  %795 = vmatprep.mubr.f32.mxu0 %v358
  %796 = vmatmul.mubr.f32.gmra.mxu0 %v102
  %v797 = vpop.f32.mrf.mxu0
  %v798 = vadd.f32 0.0, %v797
  %v799 = vpop.f32.mrf.mxu0
  %800 = vmatprep.mubr.f32.mxu0 %v361
  %801 = vmatmul.mubr.f32.gmra.mxu0 %v104
  %v802 = vpop.f32.mrf.mxu0
  %v803 = vadd.f32 0.0, %v802
  %v804 = vpop.f32.mrf.mxu0
  %805 = vmatprep.mubr.f32.mxu0 %v364
  %806 = vmatmul.mubr.f32.gmra.mxu0 %v106
  %v807 = vpop.f32.mrf.mxu0
  %v808 = vadd.f32 0.0, %v807
  %v809 = vpop.f32.mrf.mxu0
  %810 = vmatprep.mubr.f32.mxu0 %v367
  %811 = vmatmul.mubr.f32.gmra.mxu0 %v108
  %v812 = vpop.f32.mrf.mxu0
  %v813 = vadd.f32 0.0, %v812
  %v814 = vpop.f32.mrf.mxu0
  %815 = vmatprep.mubr.f32.mxu0 %v370
  %816 = vmatmul.mubr.f32.gmra.mxu0 %v110
  %v817 = vpop.f32.mrf.mxu0
  %v818 = vadd.f32 0.0, %v817
  %v819 = vpop.f32.mrf.mxu0
  %820 = vmatprep.mubr.f32.mxu0 %v373
  %821 = vmatmul.mubr.f32.gmra.mxu0 %v112
  %v822 = vpop.f32.mrf.mxu0
  %v823 = vadd.f32 0.0, %v822
  %v824 = vpop.f32.mrf.mxu0
  %825 = vmatprep.mubr.f32.mxu0 %v376
  %826 = vmatmul.mubr.f32.gmra.mxu0 %v114
  %v827 = vpop.f32.mrf.mxu0
  %v828 = vadd.f32 0.0, %v827
  %v829 = vpop.f32.mrf.mxu0
  %830 = vmatprep.mubr.f32.mxu0 %v379
  %831 = vmatmul.mubr.f32.gmra.mxu0 %v116
  %v832 = vpop.f32.mrf.mxu0
  %v833 = vadd.f32 0.0, %v832
  %v834 = vpop.f32.mrf.mxu0
  %835 = vmatprep.mubr.f32.mxu0 %v382
  %836 = vmatmul.mubr.f32.gmra.mxu0 %v118
  %v837 = vpop.f32.mrf.mxu0
  %v838 = vadd.f32 0.0, %v837
  %v839 = vpop.f32.mrf.mxu0
  %840 = vmatprep.mubr.f32.mxu0 %v385
  %841 = vmatmul.mubr.f32.gmra.mxu0 %v120
  %v842 = vpop.f32.mrf.mxu0
  %v843 = vadd.f32 0.0, %v842
  %v844 = vpop.f32.mrf.mxu0
  %845 = vmatprep.mubr.f32.mxu0 %v388
  %846 = vmatmul.mubr.f32.gmra.mxu0 %v122
  %v847 = vpop.f32.mrf.mxu0
  %v848 = vadd.f32 0.0, %v847
  %v849 = vpop.f32.mrf.mxu0
  %850 = vmatprep.mubr.f32.mxu0 %v391
  %851 = vmatmul.mubr.f32.gmra.mxu0 %v124
  %v852 = vpop.f32.mrf.mxu0
  %v853 = vadd.f32 0.0, %v852
  %v854 = vpop.f32.mrf.mxu0
  %855 = vmatprep.mubr.f32.mxu0 %v394
  %856 = vmatmul.mubr.f32.gmra.mxu0 %v126
  %v857 = vpop.f32.mrf.mxu0
  %v858 = vadd.f32 0.0, %v857
  %v859 = vpop.f32.mrf.mxu0
  %860 = vmatprep.mubr.f32.mxu0 %v397
  %861 = vmatmul.mubr.f32.gmra.mxu0 %v128
  %v862 = vpop.f32.mrf.mxu0
  %v863 = vadd.f32 0.0, %v862
  %v864 = vpop.f32.mrf.mxu0
  %865 = vmatprep.mubr.f32.mxu0 %v400
  %866 = vmatmul.mubr.f32.gmra.mxu0 %v130
  %v867 = vpop.f32.mrf.mxu0
  %v868 = vadd.f32 0.0, %v867
  %v869 = vpop.f32.mrf.mxu0
  %870 = vmatprep.mubr.f32.mxu0 %v403
  %871 = vmatmul.mubr.f32.gmra.mxu0 %v132
  %v872 = vpop.f32.mrf.mxu0
  %v873 = vadd.f32 0.0, %v872
  %v874 = vpop.f32.mrf.mxu0
  %875 = vmatprep.mubr.f32.mxu0 %v406
  %876 = vmatmul.mubr.f32.gmra.mxu0 %v134
  %v877 = vpop.f32.mrf.mxu0
  %v878 = vadd.f32 0.0, %v877
  %v879 = vpop.f32.mrf.mxu0
  %880 = vmatprep.mubr.f32.mxu0 %v409
  %881 = vmatmul.mubr.f32.gmra.mxu0 %v136
  %v882 = vpop.f32.mrf.mxu0
  %v883 = vadd.f32 0.0, %v882
  %v884 = vpop.f32.mrf.mxu0
  %885 = vmatprep.mubr.f32.mxu0 %v412
  %886 = vmatmul.mubr.f32.gmra.mxu0 %v138
  %v887 = vpop.f32.mrf.mxu0
  %v888 = vadd.f32 0.0, %v887
  %v889 = vpop.f32.mrf.mxu0
  %890 = vmatprep.mubr.f32.mxu0 %v415
  %891 = vmatmul.mubr.f32.gmra.mxu0 %v140
  %v892 = vpop.f32.mrf.mxu0
  %v893 = vadd.f32 0.0, %v892
  %v894 = vpop.f32.mrf.mxu0
  %895 = vmatprep.mubr.f32.mxu0 %v418
  %896 = vmatmul.mubr.f32.gmra.mxu0 %v142
  %v897 = vpop.f32.mrf.mxu0
  %v898 = vadd.f32 0.0, %v897
  %v899 = vpop.f32.mrf.mxu0
  %900 = vmatprep.mubr.f32.mxu0 %v421
  %901 = vmatmul.mubr.f32.gmra.mxu0 %v144
  %v902 = vpop.f32.mrf.mxu0
  %v903 = vadd.f32 0.0, %v902
  %v904 = vpop.f32.mrf.mxu0
  %905 = vmatprep.mubr.f32.mxu0 %v424
  %906 = vmatmul.mubr.f32.gmra.mxu0 %v146
  %v907 = vpop.f32.mrf.mxu0
  %v908 = vadd.f32 0.0, %v907
  %v909 = vpop.f32.mrf.mxu0
  %910 = vmatprep.mubr.f32.mxu0 %v427
  %911 = vmatmul.mubr.f32.gmra.mxu0 %v148
  %v912 = vpop.f32.mrf.mxu0
  %v913 = vadd.f32 0.0, %v912
  %v914 = vpop.f32.mrf.mxu0
  %915 = vmatprep.mubr.f32.mxu0 %v430
  %916 = vmatmul.mubr.f32.gmra.mxu0 %v150
  %v917 = vpop.f32.mrf.mxu0
  %v918 = vadd.f32 0.0, %v917
  %v919 = vpop.f32.mrf.mxu0
  %920 = vmatprep.mubr.f32.mxu0 %v433
  %921 = vmatmul.mubr.f32.gmra.mxu0 %v152
  %v922 = vpop.f32.mrf.mxu0
  %v923 = vadd.f32 0.0, %v922
  %v924 = vpop.f32.mrf.mxu0
  %925 = vmatprep.mubr.f32.mxu0 %v436
  %926 = vmatmul.mubr.f32.gmra.mxu0 %v154
  %v927 = vpop.f32.mrf.mxu0
  %v928 = vadd.f32 0.0, %v927
  %v929 = vpop.f32.mrf.mxu0
  %930 = vmatprep.mubr.f32.mxu0 %v439
  %931 = vmatmul.mubr.f32.gmra.mxu0 %v156
  %v932 = vpop.f32.mrf.mxu0
  %v933 = vadd.f32 0.0, %v932
  %v934 = vpop.f32.mrf.mxu0
  %935 = vmatprep.mubr.f32.mxu0 %v442
  %936 = vmatmul.mubr.f32.gmra.mxu0 %v158
  %v937 = vpop.f32.mrf.mxu0
  %v938 = vadd.f32 0.0, %v937
  %v939 = vpop.f32.mrf.mxu0
  %940 = vmatprep.mubr.f32.mxu0 %v445
  %941 = vmatmul.mubr.f32.gmra.mxu0 %v160
  %v942 = vpop.f32.mrf.mxu0
  %v943 = vadd.f32 0.0, %v942
  %v944 = vpop.f32.mrf.mxu0
  %945 = vmatprep.mubr.f32.mxu0 %v448
  %946 = vmatmul.mubr.f32.gmra.mxu0 %v162
  %v947 = vpop.f32.mrf.mxu0
  %v948 = vadd.f32 0.0, %v947
  %v949 = vpop.f32.mrf.mxu0
  %950 = vmatprep.mubr.f32.mxu0 %v451
  %951 = vmatmul.mubr.f32.gmra.mxu0 %v164
  %v952 = vpop.f32.mrf.mxu0
  %v953 = vadd.f32 0.0, %v952
  %v954 = vpop.f32.mrf.mxu0
  %955 = vmatprep.mubr.f32.mxu0 %v454
  %956 = vmatmul.mubr.f32.gmra.mxu0 %v166
  %v957 = vpop.f32.mrf.mxu0
  %v958 = vadd.f32 0.0, %v957
  %v959 = vpop.f32.mrf.mxu0
  %960 = vmatprep.mubr.f32.mxu0 %v457
  %961 = vmatmul.mubr.f32.gmra.mxu0 %v168
  %v962 = vpop.f32.mrf.mxu0
  %v963 = vadd.f32 0.0, %v962
  %v964 = vpop.f32.mrf.mxu0
  %965 = vmatprep.mubr.f32.mxu0 %v460
  %966 = vmatmul.mubr.f32.gmra.mxu0 %v170
  %v967 = vpop.f32.mrf.mxu0
  %v968 = vadd.f32 0.0, %v967
  %v969 = vpop.f32.mrf.mxu0
  %970 = vmatprep.mubr.f32.mxu0 %v463
  %971 = vmatmul.mubr.f32.gmra.mxu0 %v172
  %v972 = vpop.f32.mrf.mxu0
  %v973 = vadd.f32 0.0, %v972
  %v974 = vpop.f32.mrf.mxu0
  %975 = vmatprep.mubr.f32.mxu0 %v466
  %976 = vmatmul.mubr.f32.gmra.mxu0 %v174
  %v977 = vpop.f32.mrf.mxu0
  %v978 = vadd.f32 0.0, %v977
  %v979 = vpop.f32.mrf.mxu0
  %980 = vmatprep.mubr.f32.mxu0 %v469
  %981 = vmatmul.mubr.f32.gmra.mxu0 %v176
  %v982 = vpop.f32.mrf.mxu0
  %v983 = vadd.f32 0.0, %v982
  %v984 = vpop.f32.mrf.mxu0
  %985 = vmatprep.mubr.f32.mxu0 %v472
  %986 = vmatmul.mubr.f32.gmra.mxu0 %v178
  %v987 = vpop.f32.mrf.mxu0
  %v988 = vadd.f32 0.0, %v987
  %v989 = vpop.f32.mrf.mxu0
  %990 = vmatprep.mubr.f32.mxu0 %v475
  %991 = vmatmul.mubr.f32.gmra.mxu0 %v180
  %v992 = vpop.f32.mrf.mxu0
  %v993 = vadd.f32 0.0, %v992
  %v994 = vpop.f32.mrf.mxu0
  %995 = vmatprep.mubr.f32.mxu0 %v478
  %996 = vmatmul.mubr.f32.gmra.mxu0 %v182
  %v997 = vpop.f32.mrf.mxu0
  %v998 = vadd.f32 0.0, %v997
  %v999 = vpop.f32.mrf.mxu0
  %1000 = vmatprep.mubr.f32.mxu0 %v481
  %1001 = vmatmul.mubr.f32.gmra.mxu0 %v184
  %v1002 = vpop.f32.mrf.mxu0
  %v1003 = vadd.f32 0.0, %v1002
  %v1004 = vpop.f32.mrf.mxu0
  %1005 = vmatprep.mubr.f32.mxu0 %v484
  %1006 = vmatmul.mubr.f32.gmra.mxu0 %v186
  %v1007 = vpop.f32.mrf.mxu0
  %v1008 = vadd.f32 0.0, %v1007
  %v1009 = vpop.f32.mrf.mxu0
  %1010 = vmatprep.mubr.f32.mxu0 %v487
  %1011 = vmatmul.mubr.f32.gmra.mxu0 %v188
  %v1012 = vpop.f32.mrf.mxu0
  %v1013 = vadd.f32 0.0, %v1012
  %v1014 = vpop.f32.mrf.mxu0
  %1015 = vmatprep.mubr.f32.mxu0 %v490
  %1016 = vmatmul.mubr.f32.gmra.mxu0 %v190
  %v1017 = vpop.f32.mrf.mxu0
  %v1018 = vadd.f32 0.0, %v1017
  %v1019 = vpop.f32.mrf.mxu0
  %1020 = vmatprep.mubr.f32.mxu0 %v493
  %1021 = vmatmul.mubr.f32.gmra.mxu0 %v192
  %v1022 = vpop.f32.mrf.mxu0
  %v1023 = vadd.f32 0.0, %v1022
  %v1024 = vpop.f32.mrf.mxu0
  %1025 = vmatprep.mubr.f32.mxu0 %v496
  %1026 = vmatmul.mubr.f32.gmra.mxu0 %v194
  %v1027 = vpop.f32.mrf.mxu0
  %v1028 = vadd.f32 0.0, %v1027
  %v1029 = vpop.f32.mrf.mxu0
  %1030 = vmatprep.mubr.f32.mxu0 %v499
  %1031 = vmatmul.mubr.f32.gmra.mxu0 %v196
  %v1032 = vpop.f32.mrf.mxu0
  %v1033 = vadd.f32 0.0, %v1032
  %v1034 = vpop.f32.mrf.mxu0
  %1035 = vmatprep.mubr.f32.mxu0 %v502
  %1036 = vmatmul.mubr.f32.gmra.mxu0 %v198
  %v1037 = vpop.f32.mrf.mxu0
  %v1038 = vadd.f32 0.0, %v1037
  %v1039 = vpop.f32.mrf.mxu0
  %1040 = vmatprep.mubr.f32.mxu0 %v505
  %1041 = vmatmul.mubr.f32.gmra.mxu0 %v200
  %v1042 = vpop.f32.mrf.mxu0
  %v1043 = vadd.f32 0.0, %v1042
  %v1044 = vpop.f32.mrf.mxu0
  %1045 = vmatprep.mubr.f32.mxu0 %v508
  %1046 = vmatmul.mubr.f32.gmra.mxu0 %v202
  %v1047 = vpop.f32.mrf.mxu0
  %v1048 = vadd.f32 0.0, %v1047
  %v1049 = vpop.f32.mrf.mxu0
  %1050 = vmatprep.mubr.f32.mxu0 %v511
  %1051 = vmatmul.mubr.f32.gmra.mxu0 %v204
  %v1052 = vpop.f32.mrf.mxu0
  %v1053 = vadd.f32 0.0, %v1052
  %v1054 = vpop.f32.mrf.mxu0
  %1055 = vmatprep.mubr.f32.mxu0 %v514
  %1056 = vmatmul.mubr.f32.gmra.mxu0 %v206
  %v1057 = vpop.f32.mrf.mxu0
  %v1058 = vadd.f32 0.0, %v1057
  %v1059 = vpop.f32.mrf.mxu0
  %1060 = vmatprep.mubr.f32.mxu0 %v517
  %1061 = vmatmul.mubr.f32.gmra.mxu0 %v208
  %v1062 = vpop.f32.mrf.mxu0
  %v1063 = vadd.f32 0.0, %v1062
  %v1064 = vpop.f32.mrf.mxu0
  %1065 = vmatprep.mubr.f32.mxu0 %v520
  %1066 = vmatmul.mubr.f32.gmra.mxu0 %v210
  %v1067 = vpop.f32.mrf.mxu0
  %v1068 = vadd.f32 0.0, %v1067
  %v1069 = vpop.f32.mrf.mxu0
  %1070 = vmatprep.mubr.f32.mxu0 %v523
  %1071 = vmatmul.mubr.f32.gmra.mxu0 %v212
  %v1072 = vpop.f32.mrf.mxu0
  %v1073 = vadd.f32 0.0, %v1072
  %v1074 = vpop.f32.mrf.mxu0
  %1075 = vmatprep.mubr.f32.mxu0 %v526
  %1076 = vmatmul.mubr.f32.gmra.mxu0 %v214
  %v1077 = vpop.f32.mrf.mxu0
  %v1078 = vadd.f32 0.0, %v1077
  %v1079 = vpop.f32.mrf.mxu0
  %1080 = vmatprep.mubr.f32.mxu0 %v529
  %1081 = vmatmul.mubr.f32.gmra.mxu0 %v216
  %v1082 = vpop.f32.mrf.mxu0
  %v1083 = vadd.f32 0.0, %v1082
  %v1084 = vpop.f32.mrf.mxu0
  %1085 = vmatprep.mubr.f32.mxu0 %v532
  %1086 = vmatmul.mubr.f32.gmra.mxu0 %v218
  %v1087 = vpop.f32.mrf.mxu0
  %v1088 = vadd.f32 0.0, %v1087
  %v1089 = vpop.f32.mrf.mxu0
  %1090 = vmatprep.mubr.f32.mxu0 %v535
  %1091 = vmatmul.mubr.f32.gmra.mxu0 %v220
  %v1092 = vpop.f32.mrf.mxu0
  %v1093 = vadd.f32 0.0, %v1092
  %v1094 = vpop.f32.mrf.mxu0
  %1095 = vmatprep.mubr.f32.mxu0 %v538
  %1096 = vmatmul.mubr.f32.gmra.mxu0 %v222
  %v1097 = vpop.f32.mrf.mxu0
  %v1098 = vadd.f32 0.0, %v1097
  %v1099 = vpop.f32.mrf.mxu0
  %1100 = vmatprep.mubr.f32.mxu0 %v541
  %1101 = vmatmul.mubr.f32.gmra.mxu0 %v224
  %v1102 = vpop.f32.mrf.mxu0
  %v1103 = vadd.f32 0.0, %v1102
  %v1104 = vpop.f32.mrf.mxu0
  %1105 = vmatprep.mubr.f32.mxu0 %v544
  %1106 = vmatmul.mubr.f32.gmra.mxu0 %v226
  %v1107 = vpop.f32.mrf.mxu0
  %v1108 = vadd.f32 0.0, %v1107
  %v1109 = vpop.f32.mrf.mxu0
  %1110 = vmatprep.mubr.f32.mxu0 %v547
  %1111 = vmatmul.mubr.f32.gmra.mxu0 %v228
  %v1112 = vpop.f32.mrf.mxu0
  %v1113 = vadd.f32 0.0, %v1112
  %v1114 = vpop.f32.mrf.mxu0
  %1115 = vmatprep.mubr.f32.mxu0 %v550
  %1116 = vmatmul.mubr.f32.gmra.mxu0 %v230
  %v1117 = vpop.f32.mrf.mxu0
  %v1118 = vadd.f32 0.0, %v1117
  %v1119 = vpop.f32.mrf.mxu0
  %1120 = vdwg.mxu0
  %v1121 = vmax.f32 %v623, %v748
  %v1122 = vmax.f32 %v628, %v753
  %v1123 = vmax.f32 %v633, %v758
  %v1124 = vmax.f32 %v638, %v763
  %v1125 = vmax.f32 %v643, %v768
  %v1126 = vmax.f32 %v648, %v773
  %v1127 = vmax.f32 %v653, %v778
  %v1128 = vmax.f32 %v658, %v783
  %v1129 = vmax.f32 %v663, %v788
  %v1130 = vmax.f32 %v668, %v793
  %v1131 = vmax.f32 %v673, %v798
  %v1132 = vmax.f32 %v678, %v803
  %v1133 = vmax.f32 %v683, %v808
  %v1134 = vmax.f32 %v688, %v813
  %v1135 = vmax.f32 %v693, %v818
  %v1136 = vmax.f32 %v698, %v823
  %v1137 = vmax.f32 %v703, %v828
  %v1138 = vmax.f32 %v708, %v833
  %v1139 = vmax.f32 %v713, %v838
  %v1140 = vmax.f32 %v718, %v843
  %v1141 = vmax.f32 %v723, %v848
  %v1142 = vmax.f32 %v728, %v853
  %v1143 = vmax.f32 %v733, %v858
  %v1144 = vmax.f32 %v738, %v863
  %v1145 = vmax.f32 %v743, %v868
  %v1146 = vmax.f32 %v873, %v998
  %v1147 = vmax.f32 %v878, %v1003
  %v1148 = vmax.f32 %v883, %v1008
  %v1149 = vmax.f32 %v888, %v1013
  %v1150 = vmax.f32 %v893, %v1018
  %v1151 = vmax.f32 %v898, %v1023
  %v1152 = vmax.f32 %v903, %v1028
  %v1153 = vmax.f32 %v908, %v1033
  %v1154 = vmax.f32 %v913, %v1038
  %v1155 = vmax.f32 %v918, %v1043
  %v1156 = vmax.f32 %v923, %v1048
  %v1157 = vmax.f32 %v928, %v1053
  %v1158 = vmax.f32 %v933, %v1058
  %v1159 = vmax.f32 %v938, %v1063
  %v1160 = vmax.f32 %v943, %v1068
  %v1161 = vmax.f32 %v948, %v1073
  %v1162 = vmax.f32 %v953, %v1078
  %v1163 = vmax.f32 %v958, %v1083
  %v1164 = vmax.f32 %v963, %v1088
  %v1165 = vmax.f32 %v968, %v1093
  %v1166 = vmax.f32 %v973, %v1098
  %v1167 = vmax.f32 %v978, %v1103
  %v1168 = vmax.f32 %v983, %v1108
  %v1169 = vmax.f32 %v988, %v1113
  %v1170 = vmax.f32 %v993, %v1118
  %v1171 = vmax.f32 %v1121, %v1146
  %v1172 = vmax.f32 %v1122, %v1147
  %v1173 = vmax.f32 %v1123, %v1148
  %v1174 = vmax.f32 %v1124, %v1149
  %v1175 = vmax.f32 %v1125, %v1150
  %v1176 = vmax.f32 %v1126, %v1151
  %v1177 = vmax.f32 %v1127, %v1152
  %v1178 = vmax.f32 %v1128, %v1153
  %v1179 = vmax.f32 %v1129, %v1154
  %v1180 = vmax.f32 %v1130, %v1155
  %v1181 = vmax.f32 %v1131, %v1156
  %v1182 = vmax.f32 %v1132, %v1157
  %v1183 = vmax.f32 %v1133, %v1158
  %v1184 = vmax.f32 %v1134, %v1159
  %v1185 = vmax.f32 %v1135, %v1160
  %v1186 = vmax.f32 %v1136, %v1161
  %v1187 = vmax.f32 %v1137, %v1162
  %v1188 = vmax.f32 %v1138, %v1163
  %v1189 = vmax.f32 %v1139, %v1164
  %v1190 = vmax.f32 %v1140, %v1165
  %v1191 = vmax.f32 %v1141, %v1166
  %v1192 = vmax.f32 %v1142, %v1167
  %v1193 = vmax.f32 %v1143, %v1168
  %v1194 = vmax.f32 %v1144, %v1169
  %v1195 = vmax.f32 %v1145, %v1170
  %v1196 = vld [vmem:[%s2] sm:$0x1]
  %v1198 = vlaneseq
  %v1199 = vshrl.u32 %v1198, 7
  %v1200 = vsub.s32 0, %v1199
  %v1201 = vrot.slane %v1196, %v1200
  %v1203 = vadd.f32 %v1171, %v1201
  %v1204 = vadd.f32 %v1172, %v1201
  %v1205 = vadd.f32 %v1173, %v1201
  %v1206 = vadd.f32 %v1174, %v1201
  %v1207 = vadd.f32 %v1175, %v1201
  %v1208 = vadd.f32 %v1176, %v1201
  %v1209 = vadd.f32 %v1177, %v1201
  %v1210 = vadd.f32 %v1178, %v1201
  %v1211 = vadd.f32 %v1179, %v1201
  %v1212 = vadd.f32 %v1180, %v1201
  %v1213 = vadd.f32 %v1181, %v1201
  %v1214 = vadd.f32 %v1182, %v1201
  %v1215 = vadd.f32 %v1183, %v1201
  %v1216 = vadd.f32 %v1184, %v1201
  %v1217 = vadd.f32 %v1185, %v1201
  %v1218 = vadd.f32 %v1186, %v1201
  %v1219 = vadd.f32 %v1187, %v1201
  %v1220 = vadd.f32 %v1188, %v1201
  %v1221 = vadd.f32 %v1189, %v1201
  %v1222 = vadd.f32 %v1190, %v1201
  %v1223 = vadd.f32 %v1191, %v1201
  %v1224 = vadd.f32 %v1192, %v1201
  %v1225 = vadd.f32 %v1193, %v1201
  %v1226 = vadd.f32 %v1194, %v1201
  %v1227 = vadd.f32 %v1195, %v1201
  %v1228 = vxor.u32 %v1203, 2147483648
  %v1229 = vxor.u32 %v1204, 2147483648
  %v1230 = vxor.u32 %v1205, 2147483648
  %v1231 = vxor.u32 %v1206, 2147483648
  %v1232 = vxor.u32 %v1207, 2147483648
  %v1233 = vxor.u32 %v1208, 2147483648
  %v1234 = vxor.u32 %v1209, 2147483648
  %v1235 = vxor.u32 %v1210, 2147483648
  %v1236 = vxor.u32 %v1211, 2147483648
  %v1237 = vxor.u32 %v1212, 2147483648
  %v1238 = vxor.u32 %v1213, 2147483648
  %v1239 = vxor.u32 %v1214, 2147483648
  %v1240 = vxor.u32 %v1215, 2147483648
  %v1241 = vxor.u32 %v1216, 2147483648
  %v1242 = vxor.u32 %v1217, 2147483648
  %v1243 = vxor.u32 %v1218, 2147483648
  %v1244 = vxor.u32 %v1219, 2147483648
  %v1245 = vxor.u32 %v1220, 2147483648
  %v1246 = vxor.u32 %v1221, 2147483648
  %v1247 = vxor.u32 %v1222, 2147483648
  %v1248 = vxor.u32 %v1223, 2147483648
  %v1249 = vxor.u32 %v1224, 2147483648
  %v1250 = vxor.u32 %v1225, 2147483648
  %v1251 = vxor.u32 %v1226, 2147483648
  %v1252 = vxor.u32 %v1227, 2147483648
  %v1253 = vmul.f32 %v1228, 1.442695
  %v1254 = vpow.pop %v1253
  %v1255 = vmul.f32 %v1229, 1.442695
  %v1256 = vpow.pop %v1255
  %v1257 = vmul.f32 %v1230, 1.442695
  %v1258 = vpow.pop %v1257
  %v1259 = vmul.f32 %v1231, 1.442695
  %v1260 = vpow.pop %v1259
  %v1261 = vmul.f32 %v1232, 1.442695
  %v1262 = vpow.pop %v1261
  %v1263 = vmul.f32 %v1233, 1.442695
  %v1264 = vpow.pop %v1263
  %v1265 = vmul.f32 %v1234, 1.442695
  %v1266 = vpow.pop %v1265
  %v1267 = vmul.f32 %v1235, 1.442695
  %v1268 = vpow.pop %v1267
  %v1269 = vmul.f32 %v1236, 1.442695
  %v1270 = vpow.pop %v1269
  %v1271 = vmul.f32 %v1237, 1.442695
  %v1272 = vpow.pop %v1271
  %v1273 = vmul.f32 %v1238, 1.442695
  %v1274 = vpow.pop %v1273
  %v1275 = vmul.f32 %v1239, 1.442695
  %v1276 = vpow.pop %v1275
  %v1277 = vmul.f32 %v1240, 1.442695
  %v1278 = vpow.pop %v1277
  %v1279 = vmul.f32 %v1241, 1.442695
  %v1280 = vpow.pop %v1279
  %v1281 = vmul.f32 %v1242, 1.442695
  %v1282 = vpow.pop %v1281
  %v1283 = vmul.f32 %v1243, 1.442695
  %v1284 = vpow.pop %v1283
  %v1285 = vmul.f32 %v1244, 1.442695
  %v1286 = vpow.pop %v1285
  %v1287 = vmul.f32 %v1245, 1.442695
  %v1288 = vpow.pop %v1287
  %v1289 = vmul.f32 %v1246, 1.442695
  %v1290 = vpow.pop %v1289
  %v1291 = vmul.f32 %v1247, 1.442695
  %v1292 = vpow.pop %v1291
  %v1293 = vmul.f32 %v1248, 1.442695
  %v1294 = vpow.pop %v1293
  %v1295 = vmul.f32 %v1249, 1.442695
  %v1296 = vpow.pop %v1295
  %v1297 = vmul.f32 %v1250, 1.442695
  %v1298 = vpow.pop %v1297
  %v1299 = vmul.f32 %v1251, 1.442695
  %v1300 = vpow.pop %v1299
  %v1301 = vmul.f32 %v1252, 1.442695
  %v1302 = vpow.pop %v1301
  %v1303 = vadd.f32 %v1254, 1.0
  %v1304 = vadd.f32 %v1256, 1.0
  %v1305 = vadd.f32 %v1258, 1.0
  %v1306 = vadd.f32 %v1260, 1.0
  %v1307 = vadd.f32 %v1262, 1.0
  %v1308 = vadd.f32 %v1264, 1.0
  %v1309 = vadd.f32 %v1266, 1.0
  %v1310 = vadd.f32 %v1268, 1.0
  %v1311 = vadd.f32 %v1270, 1.0
  %v1312 = vadd.f32 %v1272, 1.0
  %v1313 = vadd.f32 %v1274, 1.0
  %v1314 = vadd.f32 %v1276, 1.0
  %v1315 = vadd.f32 %v1278, 1.0
  %v1316 = vadd.f32 %v1280, 1.0
  %v1317 = vadd.f32 %v1282, 1.0
  %v1318 = vadd.f32 %v1284, 1.0
  %v1319 = vadd.f32 %v1286, 1.0
  %v1320 = vadd.f32 %v1288, 1.0
  %v1321 = vadd.f32 %v1290, 1.0
  %v1322 = vadd.f32 %v1292, 1.0
  %v1323 = vadd.f32 %v1294, 1.0
  %v1324 = vadd.f32 %v1296, 1.0
  %v1325 = vadd.f32 %v1298, 1.0
  %v1326 = vadd.f32 %v1300, 1.0
  %v1327 = vadd.f32 %v1302, 1.0
  %v1328 = vrcp.pop %v1303
  %v1329 = vmul.f32 1.0, %v1328
  %v1330 = vrcp.pop %v1304
  %v1331 = vmul.f32 1.0, %v1330
  %v1332 = vrcp.pop %v1305
  %v1333 = vmul.f32 1.0, %v1332
  %v1334 = vrcp.pop %v1306
  %v1335 = vmul.f32 1.0, %v1334
  %v1336 = vrcp.pop %v1307
  %v1337 = vmul.f32 1.0, %v1336
  %v1338 = vrcp.pop %v1308
  %v1339 = vmul.f32 1.0, %v1338
  %v1340 = vrcp.pop %v1309
  %v1341 = vmul.f32 1.0, %v1340
  %v1342 = vrcp.pop %v1310
  %v1343 = vmul.f32 1.0, %v1342
  %v1344 = vrcp.pop %v1311
  %v1345 = vmul.f32 1.0, %v1344
  %v1346 = vrcp.pop %v1312
  %v1347 = vmul.f32 1.0, %v1346
  %v1348 = vrcp.pop %v1313
  %v1349 = vmul.f32 1.0, %v1348
  %v1350 = vrcp.pop %v1314
  %v1351 = vmul.f32 1.0, %v1350
  %v1352 = vrcp.pop %v1315
  %v1353 = vmul.f32 1.0, %v1352
  %v1354 = vrcp.pop %v1316
  %v1355 = vmul.f32 1.0, %v1354
  %v1356 = vrcp.pop %v1317
  %v1357 = vmul.f32 1.0, %v1356
  %v1358 = vrcp.pop %v1318
  %v1359 = vmul.f32 1.0, %v1358
  %v1360 = vrcp.pop %v1319
  %v1361 = vmul.f32 1.0, %v1360
  %v1362 = vrcp.pop %v1320
  %v1363 = vmul.f32 1.0, %v1362
  %v1364 = vrcp.pop %v1321
  %v1365 = vmul.f32 1.0, %v1364
  %v1366 = vrcp.pop %v1322
  %v1367 = vmul.f32 1.0, %v1366
  %v1368 = vrcp.pop %v1323
  %v1369 = vmul.f32 1.0, %v1368
  %v1370 = vrcp.pop %v1324
  %v1371 = vmul.f32 1.0, %v1370
  %v1372 = vrcp.pop %v1325
  %v1373 = vmul.f32 1.0, %v1372
  %v1374 = vrcp.pop %v1326
  %v1375 = vmul.f32 1.0, %v1374
  %v1376 = vrcp.pop %v1327
  %v1377 = vmul.f32 1.0, %v1376
  %v1378 = vld [vmem:[%s3] sm:$0xff]
  %v1379 = vld [vmem:[%s3 + $0x8] sm:$0xff]
  %v1380 = vld [vmem:[%s3 + $0x10] sm:$0xff]
  %v1381 = vld [vmem:[%s3 + $0x18] sm:$0xff]
  %vm1382 = vcmask 130048
  %v1384 = vsel %vm1382, %v1331, 0
  %1386 = vmatprep.subr.mxu0 0.0
  %1387 = vmatpush1.msra.mxu0 0.0
  %1388 = vmatprep.subr.mxu0 0.0
  %1389 = vmatpush1.msra.mxu0 0.0
  %1390 = vmatprep.subr.mxu0 0.0
  %1391 = vmatpush1.msra.mxu0 0.0
  %1392 = vmatprep.subr.mxu0 0.0
  %1393 = vmatpush1.msra.mxu0 0.0
  %1394 = vmatprep.subr.mxu0 0.0
  %1395 = vmatpush1.msra.mxu0 0.0
  %1396 = vmatprep.subr.mxu0 0.0
  %1397 = vmatpush1.msra.mxu0 0.0
  %1398 = vmatprep.subr.mxu0 0.0
  %1399 = vmatpush1.msra.mxu0 0.0
  %1400 = vmatprep.subr.mxu0 0.0
  %1401 = vmatpush1.msra.mxu0 0.0
  %1402 = vmatprep.subr.mxu0 0.0
  %1403 = vmatpush1.msra.mxu0 0.0
  %1404 = vmatprep.subr.mxu0 0.0
  %1405 = vmatpush1.msra.mxu0 0.0
  %1406 = vmatprep.subr.mxu0 0.0
  %1407 = vmatpush1.msra.mxu0 0.0
  %1408 = vmatprep.subr.mxu0 0.0
  %1409 = vmatpush1.msra.mxu0 0.0
  %1410 = vmatprep.subr.mxu0 0.0
  %1411 = vmatpush1.msra.mxu0 0.0
  %1412 = vmatprep.subr.mxu0 0.0
  %1413 = vmatpush1.msra.mxu0 0.0
  %1414 = vmatprep.subr.mxu0 0.0
  %1415 = vmatpush1.msra.mxu0 %v1381
  %1416 = vmatprep.subr.mxu0 0.0
  %1417 = vmatpush1.msra.mxu0 %v1380
  %1418 = vmatprep.subr.mxu0 0.0
  %1419 = vmatpush2.msra.mxu0 0.0
  %1420 = vmatprep.subr.mxu0 0.0
  %1421 = vmatpush2.msra.mxu0 0.0
  %1422 = vmatprep.subr.mxu0 0.0
  %1423 = vmatpush2.msra.mxu0 0.0
  %1424 = vmatprep.subr.mxu0 0.0
  %1425 = vmatpush2.msra.mxu0 0.0
  %1426 = vmatprep.subr.mxu0 0.0
  %1427 = vmatpush2.msra.mxu0 0.0
  %1428 = vmatprep.subr.mxu0 0.0
  %1429 = vmatpush2.msra.mxu0 0.0
  %1430 = vmatprep.subr.mxu0 0.0
  %1431 = vmatpush2.msra.mxu0 0.0
  %1432 = vmatprep.subr.mxu0 0.0
  %1433 = vmatpush2.msra.mxu0 0.0
  %1434 = vmatprep.subr.mxu0 0.0
  %1435 = vmatpush2.msra.mxu0 0.0
  %1436 = vmatprep.subr.mxu0 0.0
  %1437 = vmatpush2.msra.mxu0 0.0
  %1438 = vmatprep.subr.mxu0 0.0
  %1439 = vmatpush2.msra.mxu0 0.0
  %1440 = vmatprep.subr.mxu0 0.0
  %1441 = vmatpush2.msra.mxu0 0.0
  %1442 = vmatprep.subr.mxu0 0.0
  %1443 = vmatpush2.msra.mxu0 0.0
  %1444 = vmatprep.subr.mxu0 0.0
  %1445 = vmatpush2.msra.mxu0 0.0
  %1446 = vmatprep.subr.mxu0 0.0
  %1447 = vmatpush2.msra.mxu0 0.0
  %1448 = vmatprep.subr.mxu0 0.0
  %1449 = vmatpush2.msra.mxu0 0.0
  %1450 = vmatprep.mubr.f32.mxu0 0.0
  %1451 = vmatmul.mubr.f32.gmra.mxu0 %v1384
  %v1452 = vpop.f32.mrf.mxu0
  %v1453 = vadd.f32 0.0, %v1452
  %v1454 = vpop.f32.mrf.mxu0
  %1455 = vdwg.mxu0
  %v1456 = vld [vmem:[%s3 + $0x20] sm:$0xff]
  %v1457 = vld [vmem:[%s3 + $0x28] sm:$0xff]
  %v1458 = vld [vmem:[%s3 + $0x30] sm:$0xff]
  %v1459 = vld [vmem:[%s3 + $0x38] sm:$0xff]
  %v1461 = vsel %vm1382, %v1335, 0
  %1463 = vmatprep.subr.mxu0 0.0
  %1464 = vmatpush1.msra.mxu0 0.0
  %1465 = vmatprep.subr.mxu0 0.0
  %1466 = vmatpush1.msra.mxu0 0.0
  %1467 = vmatprep.subr.mxu0 0.0
  %1468 = vmatpush1.msra.mxu0 0.0
  %1469 = vmatprep.subr.mxu0 0.0
  %1470 = vmatpush1.msra.mxu0 0.0
  %1471 = vmatprep.subr.mxu0 0.0
  %1472 = vmatpush1.msra.mxu0 0.0
  %1473 = vmatprep.subr.mxu0 0.0
  %1474 = vmatpush1.msra.mxu0 0.0
  %1475 = vmatprep.subr.mxu0 0.0
  %1476 = vmatpush1.msra.mxu0 0.0
  %1477 = vmatprep.subr.mxu0 0.0
  %1478 = vmatpush1.msra.mxu0 0.0
  %1479 = vmatprep.subr.mxu0 0.0
  %1480 = vmatpush1.msra.mxu0 0.0
  %1481 = vmatprep.subr.mxu0 0.0
  %1482 = vmatpush1.msra.mxu0 0.0
  %1483 = vmatprep.subr.mxu0 0.0
  %1484 = vmatpush1.msra.mxu0 0.0
  %1485 = vmatprep.subr.mxu0 0.0
  %1486 = vmatpush1.msra.mxu0 0.0
  %1487 = vmatprep.subr.mxu0 0.0
  %1488 = vmatpush1.msra.mxu0 0.0
  %1489 = vmatprep.subr.mxu0 0.0
  %1490 = vmatpush1.msra.mxu0 0.0
  %1491 = vmatprep.subr.mxu0 0.0
  %1492 = vmatpush1.msra.mxu0 %v1459
  %1493 = vmatprep.subr.mxu0 0.0
  %1494 = vmatpush1.msra.mxu0 %v1458
  %1495 = vmatprep.subr.mxu0 0.0
  %1496 = vmatpush2.msra.mxu0 0.0
  %1497 = vmatprep.subr.mxu0 0.0
  %1498 = vmatpush2.msra.mxu0 0.0
  %1499 = vmatprep.subr.mxu0 0.0
  %1500 = vmatpush2.msra.mxu0 0.0
  %1501 = vmatprep.subr.mxu0 0.0
  %1502 = vmatpush2.msra.mxu0 0.0
  %1503 = vmatprep.subr.mxu0 0.0
  %1504 = vmatpush2.msra.mxu0 0.0
  %1505 = vmatprep.subr.mxu0 0.0
  %1506 = vmatpush2.msra.mxu0 0.0
  %1507 = vmatprep.subr.mxu0 0.0
  %1508 = vmatpush2.msra.mxu0 0.0
  %1509 = vmatprep.subr.mxu0 0.0
  %1510 = vmatpush2.msra.mxu0 0.0
  %1511 = vmatprep.subr.mxu0 0.0
  %1512 = vmatpush2.msra.mxu0 0.0
  %1513 = vmatprep.subr.mxu0 0.0
  %1514 = vmatpush2.msra.mxu0 0.0
  %1515 = vmatprep.subr.mxu0 0.0
  %1516 = vmatpush2.msra.mxu0 0.0
  %1517 = vmatprep.subr.mxu0 0.0
  %1518 = vmatpush2.msra.mxu0 0.0
  %1519 = vmatprep.subr.mxu0 0.0
  %1520 = vmatpush2.msra.mxu0 0.0
  %1521 = vmatprep.subr.mxu0 0.0
  %1522 = vmatpush2.msra.mxu0 0.0
  %1523 = vmatprep.subr.mxu0 0.0
  %1524 = vmatpush2.msra.mxu0 0.0
  %1525 = vmatprep.subr.mxu0 0.0
  %1526 = vmatpush2.msra.mxu0 0.0
  %1527 = vmatprep.mubr.f32.mxu0 0.0
  %1528 = vmatmul.mubr.f32.gmra.mxu0 %v1461
  %v1529 = vpop.f32.mrf.mxu0
  %v1530 = vadd.f32 0.0, %v1529
  %v1531 = vpop.f32.mrf.mxu0
  %1532 = vdwg.mxu0
  %v1533 = vld [vmem:[%s3 + $0x40] sm:$0xff]
  %v1534 = vld [vmem:[%s3 + $0x48] sm:$0xff]
  %v1535 = vld [vmem:[%s3 + $0x50] sm:$0xff]
  %v1536 = vld [vmem:[%s3 + $0x58] sm:$0xff]
  %v1538 = vsel %vm1382, %v1339, 0
  %1540 = vmatprep.subr.mxu0 0.0
  %1541 = vmatpush1.msra.mxu0 0.0
  %1542 = vmatprep.subr.mxu0 0.0
  %1543 = vmatpush1.msra.mxu0 0.0
  %1544 = vmatprep.subr.mxu0 0.0
  %1545 = vmatpush1.msra.mxu0 0.0
  %1546 = vmatprep.subr.mxu0 0.0
  %1547 = vmatpush1.msra.mxu0 0.0
  %1548 = vmatprep.subr.mxu0 0.0
  %1549 = vmatpush1.msra.mxu0 0.0
  %1550 = vmatprep.subr.mxu0 0.0
  %1551 = vmatpush1.msra.mxu0 0.0
  %1552 = vmatprep.subr.mxu0 0.0
  %1553 = vmatpush1.msra.mxu0 0.0
  %1554 = vmatprep.subr.mxu0 0.0
  %1555 = vmatpush1.msra.mxu0 0.0
  %1556 = vmatprep.subr.mxu0 0.0
  %1557 = vmatpush1.msra.mxu0 0.0
  %1558 = vmatprep.subr.mxu0 0.0
  %1559 = vmatpush1.msra.mxu0 0.0
  %1560 = vmatprep.subr.mxu0 0.0
  %1561 = vmatpush1.msra.mxu0 0.0
  %1562 = vmatprep.subr.mxu0 0.0
  %1563 = vmatpush1.msra.mxu0 0.0
  %1564 = vmatprep.subr.mxu0 0.0
  %1565 = vmatpush1.msra.mxu0 0.0
  %1566 = vmatprep.subr.mxu0 0.0
  %1567 = vmatpush1.msra.mxu0 0.0
  %1568 = vmatprep.subr.mxu0 0.0
  %1569 = vmatpush1.msra.mxu0 %v1536
  %1570 = vmatprep.subr.mxu0 0.0
  %1571 = vmatpush1.msra.mxu0 %v1535
  %1572 = vmatprep.subr.mxu0 0.0
  %1573 = vmatpush2.msra.mxu0 0.0
  %1574 = vmatprep.subr.mxu0 0.0
  %1575 = vmatpush2.msra.mxu0 0.0
  %1576 = vmatprep.subr.mxu0 0.0
  %1577 = vmatpush2.msra.mxu0 0.0
  %1578 = vmatprep.subr.mxu0 0.0
  %1579 = vmatpush2.msra.mxu0 0.0
  %1580 = vmatprep.subr.mxu0 0.0
  %1581 = vmatpush2.msra.mxu0 0.0
  %1582 = vmatprep.subr.mxu0 0.0
  %1583 = vmatpush2.msra.mxu0 0.0
  %1584 = vmatprep.subr.mxu0 0.0
  %1585 = vmatpush2.msra.mxu0 0.0
  %1586 = vmatprep.subr.mxu0 0.0
  %1587 = vmatpush2.msra.mxu0 0.0
  %1588 = vmatprep.subr.mxu0 0.0
  %1589 = vmatpush2.msra.mxu0 0.0
  %1590 = vmatprep.subr.mxu0 0.0
  %1591 = vmatpush2.msra.mxu0 0.0
  %1592 = vmatprep.subr.mxu0 0.0
  %1593 = vmatpush2.msra.mxu0 0.0
  %1594 = vmatprep.subr.mxu0 0.0
  %1595 = vmatpush2.msra.mxu0 0.0
  %1596 = vmatprep.subr.mxu0 0.0
  %1597 = vmatpush2.msra.mxu0 0.0
  %1598 = vmatprep.subr.mxu0 0.0
  %1599 = vmatpush2.msra.mxu0 0.0
  %1600 = vmatprep.subr.mxu0 0.0
  %1601 = vmatpush2.msra.mxu0 0.0
  %1602 = vmatprep.subr.mxu0 0.0
  %1603 = vmatpush2.msra.mxu0 0.0
  %1604 = vmatprep.mubr.f32.mxu0 0.0
  %1605 = vmatmul.mubr.f32.gmra.mxu0 %v1538
  %v1606 = vpop.f32.mrf.mxu0
  %v1607 = vadd.f32 0.0, %v1606
  %v1608 = vpop.f32.mrf.mxu0
  %1609 = vdwg.mxu0
  %v1610 = vld [vmem:[%s3 + $0x60] sm:$0xff]
  %v1611 = vld [vmem:[%s3 + $0x68] sm:$0xff]
  %v1612 = vld [vmem:[%s3 + $0x70] sm:$0xff]
  %v1613 = vld [vmem:[%s3 + $0x78] sm:$0xff]
  %v1615 = vsel %vm1382, %v1343, 0
  %1617 = vmatprep.subr.mxu0 0.0
  %1618 = vmatpush1.msra.mxu0 0.0
  %1619 = vmatprep.subr.mxu0 0.0
  %1620 = vmatpush1.msra.mxu0 0.0
  %1621 = vmatprep.subr.mxu0 0.0
  %1622 = vmatpush1.msra.mxu0 0.0
  %1623 = vmatprep.subr.mxu0 0.0
  %1624 = vmatpush1.msra.mxu0 0.0
  %1625 = vmatprep.subr.mxu0 0.0
  %1626 = vmatpush1.msra.mxu0 0.0
  %1627 = vmatprep.subr.mxu0 0.0
  %1628 = vmatpush1.msra.mxu0 0.0
  %1629 = vmatprep.subr.mxu0 0.0
  %1630 = vmatpush1.msra.mxu0 0.0
  %1631 = vmatprep.subr.mxu0 0.0
  %1632 = vmatpush1.msra.mxu0 0.0
  %1633 = vmatprep.subr.mxu0 0.0
  %1634 = vmatpush1.msra.mxu0 0.0
  %1635 = vmatprep.subr.mxu0 0.0
  %1636 = vmatpush1.msra.mxu0 0.0
  %1637 = vmatprep.subr.mxu0 0.0
  %1638 = vmatpush1.msra.mxu0 0.0
  %1639 = vmatprep.subr.mxu0 0.0
  %1640 = vmatpush1.msra.mxu0 0.0
  %1641 = vmatprep.subr.mxu0 0.0
  %1642 = vmatpush1.msra.mxu0 0.0
  %1643 = vmatprep.subr.mxu0 0.0
  %1644 = vmatpush1.msra.mxu0 0.0
  %1645 = vmatprep.subr.mxu0 0.0
  %1646 = vmatpush1.msra.mxu0 %v1613
  %1647 = vmatprep.subr.mxu0 0.0
  %1648 = vmatpush1.msra.mxu0 %v1612
  %1649 = vmatprep.subr.mxu0 0.0
  %1650 = vmatpush2.msra.mxu0 0.0
  %1651 = vmatprep.subr.mxu0 0.0
  %1652 = vmatpush2.msra.mxu0 0.0
  %1653 = vmatprep.subr.mxu0 0.0
  %1654 = vmatpush2.msra.mxu0 0.0
  %1655 = vmatprep.subr.mxu0 0.0
  %1656 = vmatpush2.msra.mxu0 0.0
  %1657 = vmatprep.subr.mxu0 0.0
  %1658 = vmatpush2.msra.mxu0 0.0
  %1659 = vmatprep.subr.mxu0 0.0
  %1660 = vmatpush2.msra.mxu0 0.0
  %1661 = vmatprep.subr.mxu0 0.0
  %1662 = vmatpush2.msra.mxu0 0.0
  %1663 = vmatprep.subr.mxu0 0.0
  %1664 = vmatpush2.msra.mxu0 0.0
  %1665 = vmatprep.subr.mxu0 0.0
  %1666 = vmatpush2.msra.mxu0 0.0
  %1667 = vmatprep.subr.mxu0 0.0
  %1668 = vmatpush2.msra.mxu0 0.0
  %1669 = vmatprep.subr.mxu0 0.0
  %1670 = vmatpush2.msra.mxu0 0.0
  %1671 = vmatprep.subr.mxu0 0.0
  %1672 = vmatpush2.msra.mxu0 0.0
  %1673 = vmatprep.subr.mxu0 0.0
  %1674 = vmatpush2.msra.mxu0 0.0
  %1675 = vmatprep.subr.mxu0 0.0
  %1676 = vmatpush2.msra.mxu0 0.0
  %1677 = vmatprep.subr.mxu0 0.0
  %1678 = vmatpush2.msra.mxu0 0.0
  %1679 = vmatprep.subr.mxu0 0.0
  %1680 = vmatpush2.msra.mxu0 0.0
  %1681 = vmatprep.mubr.f32.mxu0 0.0
  %1682 = vmatmul.mubr.f32.gmra.mxu0 %v1615
  %v1683 = vpop.f32.mrf.mxu0
  %v1684 = vadd.f32 0.0, %v1683
  %v1685 = vpop.f32.mrf.mxu0
  %1686 = vdwg.mxu0
  %v1687 = vld [vmem:[%s3 + $0x80] sm:$0xff]
  %v1688 = vld [vmem:[%s3 + $0x88] sm:$0xff]
  %v1689 = vld [vmem:[%s3 + $0x90] sm:$0xff]
  %v1690 = vld [vmem:[%s3 + $0x98] sm:$0xff]
  %v1692 = vsel %vm1382, %v1347, 0
  %1694 = vmatprep.subr.mxu0 0.0
  %1695 = vmatpush1.msra.mxu0 0.0
  %1696 = vmatprep.subr.mxu0 0.0
  %1697 = vmatpush1.msra.mxu0 0.0
  %1698 = vmatprep.subr.mxu0 0.0
  %1699 = vmatpush1.msra.mxu0 0.0
  %1700 = vmatprep.subr.mxu0 0.0
  %1701 = vmatpush1.msra.mxu0 0.0
  %1702 = vmatprep.subr.mxu0 0.0
  %1703 = vmatpush1.msra.mxu0 0.0
  %1704 = vmatprep.subr.mxu0 0.0
  %1705 = vmatpush1.msra.mxu0 0.0
  %1706 = vmatprep.subr.mxu0 0.0
  %1707 = vmatpush1.msra.mxu0 0.0
  %1708 = vmatprep.subr.mxu0 0.0
  %1709 = vmatpush1.msra.mxu0 0.0
  %1710 = vmatprep.subr.mxu0 0.0
  %1711 = vmatpush1.msra.mxu0 0.0
  %1712 = vmatprep.subr.mxu0 0.0
  %1713 = vmatpush1.msra.mxu0 0.0
  %1714 = vmatprep.subr.mxu0 0.0
  %1715 = vmatpush1.msra.mxu0 0.0
  %1716 = vmatprep.subr.mxu0 0.0
  %1717 = vmatpush1.msra.mxu0 0.0
  %1718 = vmatprep.subr.mxu0 0.0
  %1719 = vmatpush1.msra.mxu0 0.0
  %1720 = vmatprep.subr.mxu0 0.0
  %1721 = vmatpush1.msra.mxu0 0.0
  %1722 = vmatprep.subr.mxu0 0.0
  %1723 = vmatpush1.msra.mxu0 %v1690
  %1724 = vmatprep.subr.mxu0 0.0
  %1725 = vmatpush1.msra.mxu0 %v1689
  %1726 = vmatprep.subr.mxu0 0.0
  %1727 = vmatpush2.msra.mxu0 0.0
  %1728 = vmatprep.subr.mxu0 0.0
  %1729 = vmatpush2.msra.mxu0 0.0
  %1730 = vmatprep.subr.mxu0 0.0
  %1731 = vmatpush2.msra.mxu0 0.0
  %1732 = vmatprep.subr.mxu0 0.0
  %1733 = vmatpush2.msra.mxu0 0.0
  %1734 = vmatprep.subr.mxu0 0.0
  %1735 = vmatpush2.msra.mxu0 0.0
  %1736 = vmatprep.subr.mxu0 0.0
  %1737 = vmatpush2.msra.mxu0 0.0
  %1738 = vmatprep.subr.mxu0 0.0
  %1739 = vmatpush2.msra.mxu0 0.0
  %1740 = vmatprep.subr.mxu0 0.0
  %1741 = vmatpush2.msra.mxu0 0.0
  %1742 = vmatprep.subr.mxu0 0.0
  %1743 = vmatpush2.msra.mxu0 0.0
  %1744 = vmatprep.subr.mxu0 0.0
  %1745 = vmatpush2.msra.mxu0 0.0
  %1746 = vmatprep.subr.mxu0 0.0
  %1747 = vmatpush2.msra.mxu0 0.0
  %1748 = vmatprep.subr.mxu0 0.0
  %1749 = vmatpush2.msra.mxu0 0.0
  %1750 = vmatprep.subr.mxu0 0.0
  %1751 = vmatpush2.msra.mxu0 0.0
  %1752 = vmatprep.subr.mxu0 0.0
  %1753 = vmatpush2.msra.mxu0 0.0
  %1754 = vmatprep.subr.mxu0 0.0
  %1755 = vmatpush2.msra.mxu0 0.0
  %1756 = vmatprep.subr.mxu0 0.0
  %1757 = vmatpush2.msra.mxu0 0.0
  %1758 = vmatprep.mubr.f32.mxu0 0.0
  %1759 = vmatmul.mubr.f32.gmra.mxu0 %v1692
  %v1760 = vpop.f32.mrf.mxu0
  %v1761 = vadd.f32 0.0, %v1760
  %v1762 = vpop.f32.mrf.mxu0
  %1763 = vdwg.mxu0
  %v1764 = vld [vmem:[%s3 + $0xa0] sm:$0xff]
  %v1765 = vld [vmem:[%s3 + $0xa8] sm:$0xff]
  %v1766 = vld [vmem:[%s3 + $0xb0] sm:$0xff]
  %v1767 = vld [vmem:[%s3 + $0xb8] sm:$0xff]
  %v1769 = vsel %vm1382, %v1351, 0
  %1771 = vmatprep.subr.mxu0 0.0
  %1772 = vmatpush1.msra.mxu0 0.0
  %1773 = vmatprep.subr.mxu0 0.0
  %1774 = vmatpush1.msra.mxu0 0.0
  %1775 = vmatprep.subr.mxu0 0.0
  %1776 = vmatpush1.msra.mxu0 0.0
  %1777 = vmatprep.subr.mxu0 0.0
  %1778 = vmatpush1.msra.mxu0 0.0
  %1779 = vmatprep.subr.mxu0 0.0
  %1780 = vmatpush1.msra.mxu0 0.0
  %1781 = vmatprep.subr.mxu0 0.0
  %1782 = vmatpush1.msra.mxu0 0.0
  %1783 = vmatprep.subr.mxu0 0.0
  %1784 = vmatpush1.msra.mxu0 0.0
  %1785 = vmatprep.subr.mxu0 0.0
  %1786 = vmatpush1.msra.mxu0 0.0
  %1787 = vmatprep.subr.mxu0 0.0
  %1788 = vmatpush1.msra.mxu0 0.0
  %1789 = vmatprep.subr.mxu0 0.0
  %1790 = vmatpush1.msra.mxu0 0.0
  %1791 = vmatprep.subr.mxu0 0.0
  %1792 = vmatpush1.msra.mxu0 0.0
  %1793 = vmatprep.subr.mxu0 0.0
  %1794 = vmatpush1.msra.mxu0 0.0
  %1795 = vmatprep.subr.mxu0 0.0
  %1796 = vmatpush1.msra.mxu0 0.0
  %1797 = vmatprep.subr.mxu0 0.0
  %1798 = vmatpush1.msra.mxu0 0.0
  %1799 = vmatprep.subr.mxu0 0.0
  %1800 = vmatpush1.msra.mxu0 %v1767
  %1801 = vmatprep.subr.mxu0 0.0
  %1802 = vmatpush1.msra.mxu0 %v1766
  %1803 = vmatprep.subr.mxu0 0.0
  %1804 = vmatpush2.msra.mxu0 0.0
  %1805 = vmatprep.subr.mxu0 0.0
  %1806 = vmatpush2.msra.mxu0 0.0
  %1807 = vmatprep.subr.mxu0 0.0
  %1808 = vmatpush2.msra.mxu0 0.0
  %1809 = vmatprep.subr.mxu0 0.0
  %1810 = vmatpush2.msra.mxu0 0.0
  %1811 = vmatprep.subr.mxu0 0.0
  %1812 = vmatpush2.msra.mxu0 0.0
  %1813 = vmatprep.subr.mxu0 0.0
  %1814 = vmatpush2.msra.mxu0 0.0
  %1815 = vmatprep.subr.mxu0 0.0
  %1816 = vmatpush2.msra.mxu0 0.0
  %1817 = vmatprep.subr.mxu0 0.0
  %1818 = vmatpush2.msra.mxu0 0.0
  %1819 = vmatprep.subr.mxu0 0.0
  %1820 = vmatpush2.msra.mxu0 0.0
  %1821 = vmatprep.subr.mxu0 0.0
  %1822 = vmatpush2.msra.mxu0 0.0
  %1823 = vmatprep.subr.mxu0 0.0
  %1824 = vmatpush2.msra.mxu0 0.0
  %1825 = vmatprep.subr.mxu0 0.0
  %1826 = vmatpush2.msra.mxu0 0.0
  %1827 = vmatprep.subr.mxu0 0.0
  %1828 = vmatpush2.msra.mxu0 0.0
  %1829 = vmatprep.subr.mxu0 0.0
  %1830 = vmatpush2.msra.mxu0 0.0
  %1831 = vmatprep.subr.mxu0 0.0
  %1832 = vmatpush2.msra.mxu0 0.0
  %1833 = vmatprep.subr.mxu0 0.0
  %1834 = vmatpush2.msra.mxu0 0.0
  %1835 = vmatprep.mubr.f32.mxu0 0.0
  %1836 = vmatmul.mubr.f32.gmra.mxu0 %v1769
  %v1837 = vpop.f32.mrf.mxu0
  %v1838 = vadd.f32 0.0, %v1837
  %v1839 = vpop.f32.mrf.mxu0
  %1840 = vdwg.mxu0
  %v1841 = vld [vmem:[%s3 + $0xc0] sm:$0xff]
  %v1842 = vld [vmem:[%s3 + $0xc8] sm:$0xff]
  %v1843 = vld [vmem:[%s3 + $0xd0] sm:$0xff]
  %v1844 = vld [vmem:[%s3 + $0xd8] sm:$0xff]
  %v1846 = vsel %vm1382, %v1355, 0
  %1848 = vmatprep.subr.mxu0 0.0
  %1849 = vmatpush1.msra.mxu0 0.0
  %1850 = vmatprep.subr.mxu0 0.0
  %1851 = vmatpush1.msra.mxu0 0.0
  %1852 = vmatprep.subr.mxu0 0.0
  %1853 = vmatpush1.msra.mxu0 0.0
  %1854 = vmatprep.subr.mxu0 0.0
  %1855 = vmatpush1.msra.mxu0 0.0
  %1856 = vmatprep.subr.mxu0 0.0
  %1857 = vmatpush1.msra.mxu0 0.0
  %1858 = vmatprep.subr.mxu0 0.0
  %1859 = vmatpush1.msra.mxu0 0.0
  %1860 = vmatprep.subr.mxu0 0.0
  %1861 = vmatpush1.msra.mxu0 0.0
  %1862 = vmatprep.subr.mxu0 0.0
  %1863 = vmatpush1.msra.mxu0 0.0
  %1864 = vmatprep.subr.mxu0 0.0
  %1865 = vmatpush1.msra.mxu0 0.0
  %1866 = vmatprep.subr.mxu0 0.0
  %1867 = vmatpush1.msra.mxu0 0.0
  %1868 = vmatprep.subr.mxu0 0.0
  %1869 = vmatpush1.msra.mxu0 0.0
  %1870 = vmatprep.subr.mxu0 0.0
  %1871 = vmatpush1.msra.mxu0 0.0
  %1872 = vmatprep.subr.mxu0 0.0
  %1873 = vmatpush1.msra.mxu0 0.0
  %1874 = vmatprep.subr.mxu0 0.0
  %1875 = vmatpush1.msra.mxu0 0.0
  %1876 = vmatprep.subr.mxu0 0.0
  %1877 = vmatpush1.msra.mxu0 %v1844
  %1878 = vmatprep.subr.mxu0 0.0
  %1879 = vmatpush1.msra.mxu0 %v1843
  %1880 = vmatprep.subr.mxu0 0.0
  %1881 = vmatpush2.msra.mxu0 0.0
  %1882 = vmatprep.subr.mxu0 0.0
  %1883 = vmatpush2.msra.mxu0 0.0
  %1884 = vmatprep.subr.mxu0 0.0
  %1885 = vmatpush2.msra.mxu0 0.0
  %1886 = vmatprep.subr.mxu0 0.0
  %1887 = vmatpush2.msra.mxu0 0.0
  %1888 = vmatprep.subr.mxu0 0.0
  %1889 = vmatpush2.msra.mxu0 0.0
  %1890 = vmatprep.subr.mxu0 0.0
  %1891 = vmatpush2.msra.mxu0 0.0
  %1892 = vmatprep.subr.mxu0 0.0
  %1893 = vmatpush2.msra.mxu0 0.0
  %1894 = vmatprep.subr.mxu0 0.0
  %1895 = vmatpush2.msra.mxu0 0.0
  %1896 = vmatprep.subr.mxu0 0.0
  %1897 = vmatpush2.msra.mxu0 0.0
  %1898 = vmatprep.subr.mxu0 0.0
  %1899 = vmatpush2.msra.mxu0 0.0
  %1900 = vmatprep.subr.mxu0 0.0
  %1901 = vmatpush2.msra.mxu0 0.0
  %1902 = vmatprep.subr.mxu0 0.0
  %1903 = vmatpush2.msra.mxu0 0.0
  %1904 = vmatprep.subr.mxu0 0.0
  %1905 = vmatpush2.msra.mxu0 0.0
  %1906 = vmatprep.subr.mxu0 0.0
  %1907 = vmatpush2.msra.mxu0 0.0
  %1908 = vmatprep.subr.mxu0 0.0
  %1909 = vmatpush2.msra.mxu0 0.0
  %1910 = vmatprep.subr.mxu0 0.0
  %1911 = vmatpush2.msra.mxu0 0.0
  %1912 = vmatprep.mubr.f32.mxu0 0.0
  %1913 = vmatmul.mubr.f32.gmra.mxu0 %v1846
  %v1914 = vpop.f32.mrf.mxu0
  %v1915 = vadd.f32 0.0, %v1914
  %v1916 = vpop.f32.mrf.mxu0
  %1917 = vdwg.mxu0
  %v1918 = vld [vmem:[%s3 + $0xe0] sm:$0xff]
  %v1919 = vld [vmem:[%s3 + $0xe8] sm:$0xff]
  %v1920 = vld [vmem:[%s3 + $0xf0] sm:$0xff]
  %v1921 = vld [vmem:[%s3 + $0xf8] sm:$0xff]
  %v1923 = vsel %vm1382, %v1359, 0
  %1925 = vmatprep.subr.mxu0 0.0
  %1926 = vmatpush1.msra.mxu0 0.0
  %1927 = vmatprep.subr.mxu0 0.0
  %1928 = vmatpush1.msra.mxu0 0.0
  %1929 = vmatprep.subr.mxu0 0.0
  %1930 = vmatpush1.msra.mxu0 0.0
  %1931 = vmatprep.subr.mxu0 0.0
  %1932 = vmatpush1.msra.mxu0 0.0
  %1933 = vmatprep.subr.mxu0 0.0
  %1934 = vmatpush1.msra.mxu0 0.0
  %1935 = vmatprep.subr.mxu0 0.0
  %1936 = vmatpush1.msra.mxu0 0.0
  %1937 = vmatprep.subr.mxu0 0.0
  %1938 = vmatpush1.msra.mxu0 0.0
  %1939 = vmatprep.subr.mxu0 0.0
  %1940 = vmatpush1.msra.mxu0 0.0
  %1941 = vmatprep.subr.mxu0 0.0
  %1942 = vmatpush1.msra.mxu0 0.0
  %1943 = vmatprep.subr.mxu0 0.0
  %1944 = vmatpush1.msra.mxu0 0.0
  %1945 = vmatprep.subr.mxu0 0.0
  %1946 = vmatpush1.msra.mxu0 0.0
  %1947 = vmatprep.subr.mxu0 0.0
  %1948 = vmatpush1.msra.mxu0 0.0
  %1949 = vmatprep.subr.mxu0 0.0
  %1950 = vmatpush1.msra.mxu0 0.0
  %1951 = vmatprep.subr.mxu0 0.0
  %1952 = vmatpush1.msra.mxu0 0.0
  %1953 = vmatprep.subr.mxu0 0.0
  %1954 = vmatpush1.msra.mxu0 %v1921
  %1955 = vmatprep.subr.mxu0 0.0
  %1956 = vmatpush1.msra.mxu0 %v1920
  %1957 = vmatprep.subr.mxu0 0.0
  %1958 = vmatpush2.msra.mxu0 0.0
  %1959 = vmatprep.subr.mxu0 0.0
  %1960 = vmatpush2.msra.mxu0 0.0
  %1961 = vmatprep.subr.mxu0 0.0
  %1962 = vmatpush2.msra.mxu0 0.0
  %1963 = vmatprep.subr.mxu0 0.0
  %1964 = vmatpush2.msra.mxu0 0.0
  %1965 = vmatprep.subr.mxu0 0.0
  %1966 = vmatpush2.msra.mxu0 0.0
  %1967 = vmatprep.subr.mxu0 0.0
  %1968 = vmatpush2.msra.mxu0 0.0
  %1969 = vmatprep.subr.mxu0 0.0
  %1970 = vmatpush2.msra.mxu0 0.0
  %1971 = vmatprep.subr.mxu0 0.0
  %1972 = vmatpush2.msra.mxu0 0.0
  %1973 = vmatprep.subr.mxu0 0.0
  %1974 = vmatpush2.msra.mxu0 0.0
  %1975 = vmatprep.subr.mxu0 0.0
  %1976 = vmatpush2.msra.mxu0 0.0
  %1977 = vmatprep.subr.mxu0 0.0
  %1978 = vmatpush2.msra.mxu0 0.0
  %1979 = vmatprep.subr.mxu0 0.0
  %1980 = vmatpush2.msra.mxu0 0.0
  %1981 = vmatprep.subr.mxu0 0.0
  %1982 = vmatpush2.msra.mxu0 0.0
  %1983 = vmatprep.subr.mxu0 0.0
  %1984 = vmatpush2.msra.mxu0 0.0
  %1985 = vmatprep.subr.mxu0 0.0
  %1986 = vmatpush2.msra.mxu0 0.0
  %1987 = vmatprep.subr.mxu0 0.0
  %1988 = vmatpush2.msra.mxu0 0.0
  %1989 = vmatprep.mubr.f32.mxu0 0.0
  %1990 = vmatmul.mubr.f32.gmra.mxu0 %v1923
  %v1991 = vpop.f32.mrf.mxu0
  %v1992 = vadd.f32 0.0, %v1991
  %v1993 = vpop.f32.mrf.mxu0
  %1994 = vdwg.mxu0
  %v1995 = vld [vmem:[%s3 + $0x100] sm:$0xff]
  %v1996 = vld [vmem:[%s3 + $0x108] sm:$0xff]
  %v1997 = vld [vmem:[%s3 + $0x110] sm:$0xff]
  %v1998 = vld [vmem:[%s3 + $0x118] sm:$0xff]
  %v2000 = vsel %vm1382, %v1363, 0
  %2002 = vmatprep.subr.mxu0 0.0
  %2003 = vmatpush1.msra.mxu0 0.0
  %2004 = vmatprep.subr.mxu0 0.0
  %2005 = vmatpush1.msra.mxu0 0.0
  %2006 = vmatprep.subr.mxu0 0.0
  %2007 = vmatpush1.msra.mxu0 0.0
  %2008 = vmatprep.subr.mxu0 0.0
  %2009 = vmatpush1.msra.mxu0 0.0
  %2010 = vmatprep.subr.mxu0 0.0
  %2011 = vmatpush1.msra.mxu0 0.0
  %2012 = vmatprep.subr.mxu0 0.0
  %2013 = vmatpush1.msra.mxu0 0.0
  %2014 = vmatprep.subr.mxu0 0.0
  %2015 = vmatpush1.msra.mxu0 0.0
  %2016 = vmatprep.subr.mxu0 0.0
  %2017 = vmatpush1.msra.mxu0 0.0
  %2018 = vmatprep.subr.mxu0 0.0
  %2019 = vmatpush1.msra.mxu0 0.0
  %2020 = vmatprep.subr.mxu0 0.0
  %2021 = vmatpush1.msra.mxu0 0.0
  %2022 = vmatprep.subr.mxu0 0.0
  %2023 = vmatpush1.msra.mxu0 0.0
  %2024 = vmatprep.subr.mxu0 0.0
  %2025 = vmatpush1.msra.mxu0 0.0
  %2026 = vmatprep.subr.mxu0 0.0
  %2027 = vmatpush1.msra.mxu0 0.0
  %2028 = vmatprep.subr.mxu0 0.0
  %2029 = vmatpush1.msra.mxu0 0.0
  %2030 = vmatprep.subr.mxu0 0.0
  %2031 = vmatpush1.msra.mxu0 %v1998
  %2032 = vmatprep.subr.mxu0 0.0
  %2033 = vmatpush1.msra.mxu0 %v1997
  %2034 = vmatprep.subr.mxu0 0.0
  %2035 = vmatpush2.msra.mxu0 0.0
  %2036 = vmatprep.subr.mxu0 0.0
  %2037 = vmatpush2.msra.mxu0 0.0
  %2038 = vmatprep.subr.mxu0 0.0
  %2039 = vmatpush2.msra.mxu0 0.0
  %2040 = vmatprep.subr.mxu0 0.0
  %2041 = vmatpush2.msra.mxu0 0.0
  %2042 = vmatprep.subr.mxu0 0.0
  %2043 = vmatpush2.msra.mxu0 0.0
  %2044 = vmatprep.subr.mxu0 0.0
  %2045 = vmatpush2.msra.mxu0 0.0
  %2046 = vmatprep.subr.mxu0 0.0
  %2047 = vmatpush2.msra.mxu0 0.0
  %2048 = vmatprep.subr.mxu0 0.0
  %2049 = vmatpush2.msra.mxu0 0.0
  %2050 = vmatprep.subr.mxu0 0.0
  %2051 = vmatpush2.msra.mxu0 0.0
  %2052 = vmatprep.subr.mxu0 0.0
  %2053 = vmatpush2.msra.mxu0 0.0
  %2054 = vmatprep.subr.mxu0 0.0
  %2055 = vmatpush2.msra.mxu0 0.0
  %2056 = vmatprep.subr.mxu0 0.0
  %2057 = vmatpush2.msra.mxu0 0.0
  %2058 = vmatprep.subr.mxu0 0.0
  %2059 = vmatpush2.msra.mxu0 0.0
  %2060 = vmatprep.subr.mxu0 0.0
  %2061 = vmatpush2.msra.mxu0 0.0
  %2062 = vmatprep.subr.mxu0 0.0
  %2063 = vmatpush2.msra.mxu0 0.0
  %2064 = vmatprep.subr.mxu0 0.0
  %2065 = vmatpush2.msra.mxu0 0.0
  %2066 = vmatprep.mubr.f32.mxu0 0.0
  %2067 = vmatmul.mubr.f32.gmra.mxu0 %v2000
  %v2068 = vpop.f32.mrf.mxu0
  %v2069 = vadd.f32 0.0, %v2068
  %v2070 = vpop.f32.mrf.mxu0
  %2071 = vdwg.mxu0
  %v2072 = vld [vmem:[%s3 + $0x120] sm:$0xff]
  %v2073 = vld [vmem:[%s3 + $0x128] sm:$0xff]
  %v2074 = vld [vmem:[%s3 + $0x130] sm:$0xff]
  %v2075 = vld [vmem:[%s3 + $0x138] sm:$0xff]
  %v2077 = vsel %vm1382, %v1367, 0
  %2079 = vmatprep.subr.mxu0 0.0
  %2080 = vmatpush1.msra.mxu0 0.0
  %2081 = vmatprep.subr.mxu0 0.0
  %2082 = vmatpush1.msra.mxu0 0.0
  %2083 = vmatprep.subr.mxu0 0.0
  %2084 = vmatpush1.msra.mxu0 0.0
  %2085 = vmatprep.subr.mxu0 0.0
  %2086 = vmatpush1.msra.mxu0 0.0
  %2087 = vmatprep.subr.mxu0 0.0
  %2088 = vmatpush1.msra.mxu0 0.0
  %2089 = vmatprep.subr.mxu0 0.0
  %2090 = vmatpush1.msra.mxu0 0.0
  %2091 = vmatprep.subr.mxu0 0.0
  %2092 = vmatpush1.msra.mxu0 0.0
  %2093 = vmatprep.subr.mxu0 0.0
  %2094 = vmatpush1.msra.mxu0 0.0
  %2095 = vmatprep.subr.mxu0 0.0
  %2096 = vmatpush1.msra.mxu0 0.0
  %2097 = vmatprep.subr.mxu0 0.0
  %2098 = vmatpush1.msra.mxu0 0.0
  %2099 = vmatprep.subr.mxu0 0.0
  %2100 = vmatpush1.msra.mxu0 0.0
  %2101 = vmatprep.subr.mxu0 0.0
  %2102 = vmatpush1.msra.mxu0 0.0
  %2103 = vmatprep.subr.mxu0 0.0
  %2104 = vmatpush1.msra.mxu0 0.0
  %2105 = vmatprep.subr.mxu0 0.0
  %2106 = vmatpush1.msra.mxu0 0.0
  %2107 = vmatprep.subr.mxu0 0.0
  %2108 = vmatpush1.msra.mxu0 %v2075
  %2109 = vmatprep.subr.mxu0 0.0
  %2110 = vmatpush1.msra.mxu0 %v2074
  %2111 = vmatprep.subr.mxu0 0.0
  %2112 = vmatpush2.msra.mxu0 0.0
  %2113 = vmatprep.subr.mxu0 0.0
  %2114 = vmatpush2.msra.mxu0 0.0
  %2115 = vmatprep.subr.mxu0 0.0
  %2116 = vmatpush2.msra.mxu0 0.0
  %2117 = vmatprep.subr.mxu0 0.0
  %2118 = vmatpush2.msra.mxu0 0.0
  %2119 = vmatprep.subr.mxu0 0.0
  %2120 = vmatpush2.msra.mxu0 0.0
  %2121 = vmatprep.subr.mxu0 0.0
  %2122 = vmatpush2.msra.mxu0 0.0
  %2123 = vmatprep.subr.mxu0 0.0
  %2124 = vmatpush2.msra.mxu0 0.0
  %2125 = vmatprep.subr.mxu0 0.0
  %2126 = vmatpush2.msra.mxu0 0.0
  %2127 = vmatprep.subr.mxu0 0.0
  %2128 = vmatpush2.msra.mxu0 0.0
  %2129 = vmatprep.subr.mxu0 0.0
  %2130 = vmatpush2.msra.mxu0 0.0
  %2131 = vmatprep.subr.mxu0 0.0
  %2132 = vmatpush2.msra.mxu0 0.0
  %2133 = vmatprep.subr.mxu0 0.0
  %2134 = vmatpush2.msra.mxu0 0.0
  %2135 = vmatprep.subr.mxu0 0.0
  %2136 = vmatpush2.msra.mxu0 0.0
  %2137 = vmatprep.subr.mxu0 0.0
  %2138 = vmatpush2.msra.mxu0 0.0
  %2139 = vmatprep.subr.mxu0 0.0
  %2140 = vmatpush2.msra.mxu0 0.0
  %2141 = vmatprep.subr.mxu0 0.0
  %2142 = vmatpush2.msra.mxu0 0.0
  %2143 = vmatprep.mubr.f32.mxu0 0.0
  %2144 = vmatmul.mubr.f32.gmra.mxu0 %v2077
  %v2145 = vpop.f32.mrf.mxu0
  %v2146 = vadd.f32 0.0, %v2145
  %v2147 = vpop.f32.mrf.mxu0
  %2148 = vdwg.mxu0
  %v2149 = vld [vmem:[%s3 + $0x140] sm:$0xff]
  %v2150 = vld [vmem:[%s3 + $0x148] sm:$0xff]
  %v2151 = vld [vmem:[%s3 + $0x150] sm:$0xff]
  %v2152 = vld [vmem:[%s3 + $0x158] sm:$0xff]
  %v2154 = vsel %vm1382, %v1371, 0
  %2156 = vmatprep.subr.mxu0 0.0
  %2157 = vmatpush1.msra.mxu0 0.0
  %2158 = vmatprep.subr.mxu0 0.0
  %2159 = vmatpush1.msra.mxu0 0.0
  %2160 = vmatprep.subr.mxu0 0.0
  %2161 = vmatpush1.msra.mxu0 0.0
  %2162 = vmatprep.subr.mxu0 0.0
  %2163 = vmatpush1.msra.mxu0 0.0
  %2164 = vmatprep.subr.mxu0 0.0
  %2165 = vmatpush1.msra.mxu0 0.0
  %2166 = vmatprep.subr.mxu0 0.0
  %2167 = vmatpush1.msra.mxu0 0.0
  %2168 = vmatprep.subr.mxu0 0.0
  %2169 = vmatpush1.msra.mxu0 0.0
  %2170 = vmatprep.subr.mxu0 0.0
  %2171 = vmatpush1.msra.mxu0 0.0
  %2172 = vmatprep.subr.mxu0 0.0
  %2173 = vmatpush1.msra.mxu0 0.0
  %2174 = vmatprep.subr.mxu0 0.0
  %2175 = vmatpush1.msra.mxu0 0.0
  %2176 = vmatprep.subr.mxu0 0.0
  %2177 = vmatpush1.msra.mxu0 0.0
  %2178 = vmatprep.subr.mxu0 0.0
  %2179 = vmatpush1.msra.mxu0 0.0
  %2180 = vmatprep.subr.mxu0 0.0
  %2181 = vmatpush1.msra.mxu0 0.0
  %2182 = vmatprep.subr.mxu0 0.0
  %2183 = vmatpush1.msra.mxu0 0.0
  %2184 = vmatprep.subr.mxu0 0.0
  %2185 = vmatpush1.msra.mxu0 %v2152
  %2186 = vmatprep.subr.mxu0 0.0
  %2187 = vmatpush1.msra.mxu0 %v2151
  %2188 = vmatprep.subr.mxu0 0.0
  %2189 = vmatpush2.msra.mxu0 0.0
  %2190 = vmatprep.subr.mxu0 0.0
  %2191 = vmatpush2.msra.mxu0 0.0
  %2192 = vmatprep.subr.mxu0 0.0
  %2193 = vmatpush2.msra.mxu0 0.0
  %2194 = vmatprep.subr.mxu0 0.0
  %2195 = vmatpush2.msra.mxu0 0.0
  %2196 = vmatprep.subr.mxu0 0.0
  %2197 = vmatpush2.msra.mxu0 0.0
  %2198 = vmatprep.subr.mxu0 0.0
  %2199 = vmatpush2.msra.mxu0 0.0
  %2200 = vmatprep.subr.mxu0 0.0
  %2201 = vmatpush2.msra.mxu0 0.0
  %2202 = vmatprep.subr.mxu0 0.0
  %2203 = vmatpush2.msra.mxu0 0.0
  %2204 = vmatprep.subr.mxu0 0.0
  %2205 = vmatpush2.msra.mxu0 0.0
  %2206 = vmatprep.subr.mxu0 0.0
  %2207 = vmatpush2.msra.mxu0 0.0
  %2208 = vmatprep.subr.mxu0 0.0
  %2209 = vmatpush2.msra.mxu0 0.0
  %2210 = vmatprep.subr.mxu0 0.0
  %2211 = vmatpush2.msra.mxu0 0.0
  %2212 = vmatprep.subr.mxu0 0.0
  %2213 = vmatpush2.msra.mxu0 0.0
  %2214 = vmatprep.subr.mxu0 0.0
  %2215 = vmatpush2.msra.mxu0 0.0
  %2216 = vmatprep.subr.mxu0 0.0
  %2217 = vmatpush2.msra.mxu0 0.0
  %2218 = vmatprep.subr.mxu0 0.0
  %2219 = vmatpush2.msra.mxu0 0.0
  %2220 = vmatprep.mubr.f32.mxu0 0.0
  %2221 = vmatmul.mubr.f32.gmra.mxu0 %v2154
  %v2222 = vpop.f32.mrf.mxu0
  %v2223 = vadd.f32 0.0, %v2222
  %v2224 = vpop.f32.mrf.mxu0
  %2225 = vdwg.mxu0
  %v2226 = vld [vmem:[%s3 + $0x160] sm:$0xff]
  %v2227 = vld [vmem:[%s3 + $0x168] sm:$0xff]
  %v2228 = vld [vmem:[%s3 + $0x170] sm:$0xff]
  %v2229 = vld [vmem:[%s3 + $0x178] sm:$0xff]
  %v2231 = vsel %vm1382, %v1375, 0
  %2233 = vmatprep.subr.mxu0 0.0
  %2234 = vmatpush1.msra.mxu0 0.0
  %2235 = vmatprep.subr.mxu0 0.0
  %2236 = vmatpush1.msra.mxu0 0.0
  %2237 = vmatprep.subr.mxu0 0.0
  %2238 = vmatpush1.msra.mxu0 0.0
  %2239 = vmatprep.subr.mxu0 0.0
  %2240 = vmatpush1.msra.mxu0 0.0
  %2241 = vmatprep.subr.mxu0 0.0
  %2242 = vmatpush1.msra.mxu0 0.0
  %2243 = vmatprep.subr.mxu0 0.0
  %2244 = vmatpush1.msra.mxu0 0.0
  %2245 = vmatprep.subr.mxu0 0.0
  %2246 = vmatpush1.msra.mxu0 0.0
  %2247 = vmatprep.subr.mxu0 0.0
  %2248 = vmatpush1.msra.mxu0 0.0
  %2249 = vmatprep.subr.mxu0 0.0
  %2250 = vmatpush1.msra.mxu0 0.0
  %2251 = vmatprep.subr.mxu0 0.0
  %2252 = vmatpush1.msra.mxu0 0.0
  %2253 = vmatprep.subr.mxu0 0.0
  %2254 = vmatpush1.msra.mxu0 0.0
  %2255 = vmatprep.subr.mxu0 0.0
  %2256 = vmatpush1.msra.mxu0 0.0
  %2257 = vmatprep.subr.mxu0 0.0
  %2258 = vmatpush1.msra.mxu0 0.0
  %2259 = vmatprep.subr.mxu0 0.0
  %2260 = vmatpush1.msra.mxu0 0.0
  %2261 = vmatprep.subr.mxu0 0.0
  %2262 = vmatpush1.msra.mxu0 %v2229
  %2263 = vmatprep.subr.mxu0 0.0
  %2264 = vmatpush1.msra.mxu0 %v2228
  %2265 = vmatprep.subr.mxu0 0.0
  %2266 = vmatpush2.msra.mxu0 0.0
  %2267 = vmatprep.subr.mxu0 0.0
  %2268 = vmatpush2.msra.mxu0 0.0
  %2269 = vmatprep.subr.mxu0 0.0
  %2270 = vmatpush2.msra.mxu0 0.0
  %2271 = vmatprep.subr.mxu0 0.0
  %2272 = vmatpush2.msra.mxu0 0.0
  %2273 = vmatprep.subr.mxu0 0.0
  %2274 = vmatpush2.msra.mxu0 0.0
  %2275 = vmatprep.subr.mxu0 0.0
  %2276 = vmatpush2.msra.mxu0 0.0
  %2277 = vmatprep.subr.mxu0 0.0
  %2278 = vmatpush2.msra.mxu0 0.0
  %2279 = vmatprep.subr.mxu0 0.0
  %2280 = vmatpush2.msra.mxu0 0.0
  %2281 = vmatprep.subr.mxu0 0.0
  %2282 = vmatpush2.msra.mxu0 0.0
  %2283 = vmatprep.subr.mxu0 0.0
  %2284 = vmatpush2.msra.mxu0 0.0
  %2285 = vmatprep.subr.mxu0 0.0
  %2286 = vmatpush2.msra.mxu0 0.0
  %2287 = vmatprep.subr.mxu0 0.0
  %2288 = vmatpush2.msra.mxu0 0.0
  %2289 = vmatprep.subr.mxu0 0.0
  %2290 = vmatpush2.msra.mxu0 0.0
  %2291 = vmatprep.subr.mxu0 0.0
  %2292 = vmatpush2.msra.mxu0 0.0
  %2293 = vmatprep.subr.mxu0 0.0
  %2294 = vmatpush2.msra.mxu0 0.0
  %2295 = vmatprep.subr.mxu0 0.0
  %2296 = vmatpush2.msra.mxu0 0.0
  %2297 = vmatprep.mubr.f32.mxu0 0.0
  %2298 = vmatmul.mubr.f32.gmra.mxu0 %v2231
  %v2299 = vpop.f32.mrf.mxu0
  %v2300 = vadd.f32 0.0, %v2299
  %v2301 = vpop.f32.mrf.mxu0
  %2302 = vdwg.mxu0
  %v2303 = vld [vmem:[%s3 + $0x180] sm:$0xff]
  %v2304 = vld [vmem:[%s3 + $0x188] sm:$0xff]
  %v2306 = vsel %vm1382, %v1377, 0
  %2308 = vmatprep.subr.mxu0 0.0
  %2309 = vmatpush1.msra.mxu0 0.0
  %2310 = vmatprep.subr.mxu0 0.0
  %2311 = vmatpush1.msra.mxu0 0.0
  %2312 = vmatprep.subr.mxu0 0.0
  %2313 = vmatpush1.msra.mxu0 0.0
  %2314 = vmatprep.subr.mxu0 0.0
  %2315 = vmatpush1.msra.mxu0 0.0
  %2316 = vmatprep.subr.mxu0 0.0
  %2317 = vmatpush1.msra.mxu0 0.0
  %2318 = vmatprep.subr.mxu0 0.0
  %2319 = vmatpush1.msra.mxu0 0.0
  %2320 = vmatprep.subr.mxu0 0.0
  %2321 = vmatpush1.msra.mxu0 0.0
  %2322 = vmatprep.subr.mxu0 0.0
  %2323 = vmatpush1.msra.mxu0 0.0
  %2324 = vmatprep.subr.mxu0 0.0
  %2325 = vmatpush1.msra.mxu0 0.0
  %2326 = vmatprep.subr.mxu0 0.0
  %2327 = vmatpush1.msra.mxu0 0.0
  %2328 = vmatprep.subr.mxu0 0.0
  %2329 = vmatpush1.msra.mxu0 0.0
  %2330 = vmatprep.subr.mxu0 0.0
  %2331 = vmatpush1.msra.mxu0 0.0
  %2332 = vmatprep.subr.mxu0 0.0
  %2333 = vmatpush1.msra.mxu0 0.0
  %2334 = vmatprep.subr.mxu0 0.0
  %2335 = vmatpush1.msra.mxu0 0.0
  %2336 = vmatprep.subr.mxu0 0.0
  %2337 = vmatpush1.msra.mxu0 %v2304
  %2338 = vmatprep.subr.mxu0 0.0
  %2339 = vmatpush1.msra.mxu0 %v2303
  %2340 = vmatprep.subr.mxu0 0.0
  %2341 = vmatpush2.msra.mxu0 0.0
  %2342 = vmatprep.subr.mxu0 0.0
  %2343 = vmatpush2.msra.mxu0 0.0
  %2344 = vmatprep.subr.mxu0 0.0
  %2345 = vmatpush2.msra.mxu0 0.0
  %2346 = vmatprep.subr.mxu0 0.0
  %2347 = vmatpush2.msra.mxu0 0.0
  %2348 = vmatprep.subr.mxu0 0.0
  %2349 = vmatpush2.msra.mxu0 0.0
  %2350 = vmatprep.subr.mxu0 0.0
  %2351 = vmatpush2.msra.mxu0 0.0
  %2352 = vmatprep.subr.mxu0 0.0
  %2353 = vmatpush2.msra.mxu0 0.0
  %2354 = vmatprep.subr.mxu0 0.0
  %2355 = vmatpush2.msra.mxu0 0.0
  %2356 = vmatprep.subr.mxu0 0.0
  %2357 = vmatpush2.msra.mxu0 0.0
  %2358 = vmatprep.subr.mxu0 0.0
  %2359 = vmatpush2.msra.mxu0 0.0
  %2360 = vmatprep.subr.mxu0 0.0
  %2361 = vmatpush2.msra.mxu0 0.0
  %2362 = vmatprep.subr.mxu0 0.0
  %2363 = vmatpush2.msra.mxu0 0.0
  %2364 = vmatprep.subr.mxu0 0.0
  %2365 = vmatpush2.msra.mxu0 0.0
  %2366 = vmatprep.subr.mxu0 0.0
  %2367 = vmatpush2.msra.mxu0 0.0
  %2368 = vmatprep.subr.mxu0 0.0
  %2369 = vmatpush2.msra.mxu0 0.0
  %2370 = vmatprep.subr.mxu0 0.0
  %2371 = vmatpush2.msra.mxu0 0.0
  %2372 = vmatprep.mubr.f32.mxu0 0.0
  %2373 = vmatmul.mubr.f32.gmra.mxu0 %v2306
  %v2374 = vpop.f32.mrf.mxu0
  %v2375 = vadd.f32 0.0, %v2374
  %v2376 = vpop.f32.mrf.mxu0
  %2377 = vdwg.mxu0
  %v2379 = vsel %vm1382, %v1329, 0
  %2381 = vmatprep.subr.mxu0 0.0
  %2382 = vmatpush1.msra.mxu0 0.0
  %2383 = vmatprep.subr.mxu0 0.0
  %2384 = vmatpush1.msra.mxu0 0.0
  %2385 = vmatprep.subr.mxu0 0.0
  %2386 = vmatpush1.msra.mxu0 0.0
  %2387 = vmatprep.subr.mxu0 0.0
  %2388 = vmatpush1.msra.mxu0 0.0
  %2389 = vmatprep.subr.mxu0 0.0
  %2390 = vmatpush1.msra.mxu0 0.0
  %2391 = vmatprep.subr.mxu0 0.0
  %2392 = vmatpush1.msra.mxu0 0.0
  %2393 = vmatprep.subr.mxu0 0.0
  %2394 = vmatpush1.msra.mxu0 0.0
  %2395 = vmatprep.subr.mxu0 0.0
  %2396 = vmatpush1.msra.mxu0 0.0
  %2397 = vmatprep.subr.mxu0 0.0
  %2398 = vmatpush1.msra.mxu0 0.0
  %2399 = vmatprep.subr.mxu0 0.0
  %2400 = vmatpush1.msra.mxu0 0.0
  %2401 = vmatprep.subr.mxu0 0.0
  %2402 = vmatpush1.msra.mxu0 0.0
  %2403 = vmatprep.subr.mxu0 0.0
  %2404 = vmatpush1.msra.mxu0 0.0
  %2405 = vmatprep.subr.mxu0 0.0
  %2406 = vmatpush1.msra.mxu0 0.0
  %2407 = vmatprep.subr.mxu0 0.0
  %2408 = vmatpush1.msra.mxu0 0.0
  %2409 = vmatprep.subr.mxu0 0.0
  %2410 = vmatpush1.msra.mxu0 %v1379
  %2411 = vmatprep.subr.mxu0 0.0
  %2412 = vmatpush1.msra.mxu0 %v1378
  %2413 = vmatprep.subr.mxu0 0.0
  %2414 = vmatpush2.msra.mxu0 0.0
  %2415 = vmatprep.subr.mxu0 0.0
  %2416 = vmatpush2.msra.mxu0 0.0
  %2417 = vmatprep.subr.mxu0 0.0
  %2418 = vmatpush2.msra.mxu0 0.0
  %2419 = vmatprep.subr.mxu0 0.0
  %2420 = vmatpush2.msra.mxu0 0.0
  %2421 = vmatprep.subr.mxu0 0.0
  %2422 = vmatpush2.msra.mxu0 0.0
  %2423 = vmatprep.subr.mxu0 0.0
  %2424 = vmatpush2.msra.mxu0 0.0
  %2425 = vmatprep.subr.mxu0 0.0
  %2426 = vmatpush2.msra.mxu0 0.0
  %2427 = vmatprep.subr.mxu0 0.0
  %2428 = vmatpush2.msra.mxu0 0.0
  %2429 = vmatprep.subr.mxu0 0.0
  %2430 = vmatpush2.msra.mxu0 0.0
  %2431 = vmatprep.subr.mxu0 0.0
  %2432 = vmatpush2.msra.mxu0 0.0
  %2433 = vmatprep.subr.mxu0 0.0
  %2434 = vmatpush2.msra.mxu0 0.0
  %2435 = vmatprep.subr.mxu0 0.0
  %2436 = vmatpush2.msra.mxu0 0.0
  %2437 = vmatprep.subr.mxu0 0.0
  %2438 = vmatpush2.msra.mxu0 0.0
  %2439 = vmatprep.subr.mxu0 0.0
  %2440 = vmatpush2.msra.mxu0 0.0
  %2441 = vmatprep.subr.mxu0 0.0
  %2442 = vmatpush2.msra.mxu0 0.0
  %2443 = vmatprep.subr.mxu0 0.0
  %2444 = vmatpush2.msra.mxu0 0.0
  %2445 = vmatprep.mubr.f32.mxu0 0.0
  %2446 = vmatmul.mubr.f32.gmra.mxu0 %v2379
  %v2447 = vpop.f32.mrf.mxu0
  %v2448 = vadd.f32 %v1453, %v2447
  %v2449 = vpop.f32.mrf.mxu0
  %2450 = vdwg.mxu0
  %v2452 = vsel %vm1382, %v1333, 0
  %2454 = vmatprep.subr.mxu0 0.0
  %2455 = vmatpush1.msra.mxu0 0.0
  %2456 = vmatprep.subr.mxu0 0.0
  %2457 = vmatpush1.msra.mxu0 0.0
  %2458 = vmatprep.subr.mxu0 0.0
  %2459 = vmatpush1.msra.mxu0 0.0
  %2460 = vmatprep.subr.mxu0 0.0
  %2461 = vmatpush1.msra.mxu0 0.0
  %2462 = vmatprep.subr.mxu0 0.0
  %2463 = vmatpush1.msra.mxu0 0.0
  %2464 = vmatprep.subr.mxu0 0.0
  %2465 = vmatpush1.msra.mxu0 0.0
  %2466 = vmatprep.subr.mxu0 0.0
  %2467 = vmatpush1.msra.mxu0 0.0
  %2468 = vmatprep.subr.mxu0 0.0
  %2469 = vmatpush1.msra.mxu0 0.0
  %2470 = vmatprep.subr.mxu0 0.0
  %2471 = vmatpush1.msra.mxu0 0.0
  %2472 = vmatprep.subr.mxu0 0.0
  %2473 = vmatpush1.msra.mxu0 0.0
  %2474 = vmatprep.subr.mxu0 0.0
  %2475 = vmatpush1.msra.mxu0 0.0
  %2476 = vmatprep.subr.mxu0 0.0
  %2477 = vmatpush1.msra.mxu0 0.0
  %2478 = vmatprep.subr.mxu0 0.0
  %2479 = vmatpush1.msra.mxu0 0.0
  %2480 = vmatprep.subr.mxu0 0.0
  %2481 = vmatpush1.msra.mxu0 0.0
  %2482 = vmatprep.subr.mxu0 0.0
  %2483 = vmatpush1.msra.mxu0 %v1457
  %2484 = vmatprep.subr.mxu0 0.0
  %2485 = vmatpush1.msra.mxu0 %v1456
  %2486 = vmatprep.subr.mxu0 0.0
  %2487 = vmatpush2.msra.mxu0 0.0
  %2488 = vmatprep.subr.mxu0 0.0
  %2489 = vmatpush2.msra.mxu0 0.0
  %2490 = vmatprep.subr.mxu0 0.0
  %2491 = vmatpush2.msra.mxu0 0.0
  %2492 = vmatprep.subr.mxu0 0.0
  %2493 = vmatpush2.msra.mxu0 0.0
  %2494 = vmatprep.subr.mxu0 0.0
  %2495 = vmatpush2.msra.mxu0 0.0
  %2496 = vmatprep.subr.mxu0 0.0
  %2497 = vmatpush2.msra.mxu0 0.0
  %2498 = vmatprep.subr.mxu0 0.0
  %2499 = vmatpush2.msra.mxu0 0.0
  %2500 = vmatprep.subr.mxu0 0.0
  %2501 = vmatpush2.msra.mxu0 0.0
  %2502 = vmatprep.subr.mxu0 0.0
  %2503 = vmatpush2.msra.mxu0 0.0
  %2504 = vmatprep.subr.mxu0 0.0
  %2505 = vmatpush2.msra.mxu0 0.0
  %2506 = vmatprep.subr.mxu0 0.0
  %2507 = vmatpush2.msra.mxu0 0.0
  %2508 = vmatprep.subr.mxu0 0.0
  %2509 = vmatpush2.msra.mxu0 0.0
  %2510 = vmatprep.subr.mxu0 0.0
  %2511 = vmatpush2.msra.mxu0 0.0
  %2512 = vmatprep.subr.mxu0 0.0
  %2513 = vmatpush2.msra.mxu0 0.0
  %2514 = vmatprep.subr.mxu0 0.0
  %2515 = vmatpush2.msra.mxu0 0.0
  %2516 = vmatprep.subr.mxu0 0.0
  %2517 = vmatpush2.msra.mxu0 0.0
  %2518 = vmatprep.mubr.f32.mxu0 0.0
  %2519 = vmatmul.mubr.f32.gmra.mxu0 %v2452
  %v2520 = vpop.f32.mrf.mxu0
  %v2521 = vadd.f32 %v1530, %v2520
  %v2522 = vpop.f32.mrf.mxu0
  %2523 = vdwg.mxu0
  %v2525 = vsel %vm1382, %v1337, 0
  %2527 = vmatprep.subr.mxu0 0.0
  %2528 = vmatpush1.msra.mxu0 0.0
  %2529 = vmatprep.subr.mxu0 0.0
  %2530 = vmatpush1.msra.mxu0 0.0
  %2531 = vmatprep.subr.mxu0 0.0
  %2532 = vmatpush1.msra.mxu0 0.0
  %2533 = vmatprep.subr.mxu0 0.0
  %2534 = vmatpush1.msra.mxu0 0.0
  %2535 = vmatprep.subr.mxu0 0.0
  %2536 = vmatpush1.msra.mxu0 0.0
  %2537 = vmatprep.subr.mxu0 0.0
  %2538 = vmatpush1.msra.mxu0 0.0
  %2539 = vmatprep.subr.mxu0 0.0
  %2540 = vmatpush1.msra.mxu0 0.0
  %2541 = vmatprep.subr.mxu0 0.0
  %2542 = vmatpush1.msra.mxu0 0.0
  %2543 = vmatprep.subr.mxu0 0.0
  %2544 = vmatpush1.msra.mxu0 0.0
  %2545 = vmatprep.subr.mxu0 0.0
  %2546 = vmatpush1.msra.mxu0 0.0
  %2547 = vmatprep.subr.mxu0 0.0
  %2548 = vmatpush1.msra.mxu0 0.0
  %2549 = vmatprep.subr.mxu0 0.0
  %2550 = vmatpush1.msra.mxu0 0.0
  %2551 = vmatprep.subr.mxu0 0.0
  %2552 = vmatpush1.msra.mxu0 0.0
  %2553 = vmatprep.subr.mxu0 0.0
  %2554 = vmatpush1.msra.mxu0 0.0
  %2555 = vmatprep.subr.mxu0 0.0
  %2556 = vmatpush1.msra.mxu0 %v1534
  %2557 = vmatprep.subr.mxu0 0.0
  %2558 = vmatpush1.msra.mxu0 %v1533
  %2559 = vmatprep.subr.mxu0 0.0
  %2560 = vmatpush2.msra.mxu0 0.0
  %2561 = vmatprep.subr.mxu0 0.0
  %2562 = vmatpush2.msra.mxu0 0.0
  %2563 = vmatprep.subr.mxu0 0.0
  %2564 = vmatpush2.msra.mxu0 0.0
  %2565 = vmatprep.subr.mxu0 0.0
  %2566 = vmatpush2.msra.mxu0 0.0
  %2567 = vmatprep.subr.mxu0 0.0
  %2568 = vmatpush2.msra.mxu0 0.0
  %2569 = vmatprep.subr.mxu0 0.0
  %2570 = vmatpush2.msra.mxu0 0.0
  %2571 = vmatprep.subr.mxu0 0.0
  %2572 = vmatpush2.msra.mxu0 0.0
  %2573 = vmatprep.subr.mxu0 0.0
  %2574 = vmatpush2.msra.mxu0 0.0
  %2575 = vmatprep.subr.mxu0 0.0
  %2576 = vmatpush2.msra.mxu0 0.0
  %2577 = vmatprep.subr.mxu0 0.0
  %2578 = vmatpush2.msra.mxu0 0.0
  %2579 = vmatprep.subr.mxu0 0.0
  %2580 = vmatpush2.msra.mxu0 0.0
  %2581 = vmatprep.subr.mxu0 0.0
  %2582 = vmatpush2.msra.mxu0 0.0
  %2583 = vmatprep.subr.mxu0 0.0
  %2584 = vmatpush2.msra.mxu0 0.0
  %2585 = vmatprep.subr.mxu0 0.0
  %2586 = vmatpush2.msra.mxu0 0.0
  %2587 = vmatprep.subr.mxu0 0.0
  %2588 = vmatpush2.msra.mxu0 0.0
  %2589 = vmatprep.subr.mxu0 0.0
  %2590 = vmatpush2.msra.mxu0 0.0
  %2591 = vmatprep.mubr.f32.mxu0 0.0
  %2592 = vmatmul.mubr.f32.gmra.mxu0 %v2525
  %v2593 = vpop.f32.mrf.mxu0
  %v2594 = vadd.f32 %v1607, %v2593
  %v2595 = vpop.f32.mrf.mxu0
  %2596 = vdwg.mxu0
  %v2598 = vsel %vm1382, %v1341, 0
  %2600 = vmatprep.subr.mxu0 0.0
  %2601 = vmatpush1.msra.mxu0 0.0
  %2602 = vmatprep.subr.mxu0 0.0
  %2603 = vmatpush1.msra.mxu0 0.0
  %2604 = vmatprep.subr.mxu0 0.0
  %2605 = vmatpush1.msra.mxu0 0.0
  %2606 = vmatprep.subr.mxu0 0.0
  %2607 = vmatpush1.msra.mxu0 0.0
  %2608 = vmatprep.subr.mxu0 0.0
  %2609 = vmatpush1.msra.mxu0 0.0
  %2610 = vmatprep.subr.mxu0 0.0
  %2611 = vmatpush1.msra.mxu0 0.0
  %2612 = vmatprep.subr.mxu0 0.0
  %2613 = vmatpush1.msra.mxu0 0.0
  %2614 = vmatprep.subr.mxu0 0.0
  %2615 = vmatpush1.msra.mxu0 0.0
  %2616 = vmatprep.subr.mxu0 0.0
  %2617 = vmatpush1.msra.mxu0 0.0
  %2618 = vmatprep.subr.mxu0 0.0
  %2619 = vmatpush1.msra.mxu0 0.0
  %2620 = vmatprep.subr.mxu0 0.0
  %2621 = vmatpush1.msra.mxu0 0.0
  %2622 = vmatprep.subr.mxu0 0.0
  %2623 = vmatpush1.msra.mxu0 0.0
  %2624 = vmatprep.subr.mxu0 0.0
  %2625 = vmatpush1.msra.mxu0 0.0
  %2626 = vmatprep.subr.mxu0 0.0
  %2627 = vmatpush1.msra.mxu0 0.0
  %2628 = vmatprep.subr.mxu0 0.0
  %2629 = vmatpush1.msra.mxu0 %v1611
  %2630 = vmatprep.subr.mxu0 0.0
  %2631 = vmatpush1.msra.mxu0 %v1610
  %2632 = vmatprep.subr.mxu0 0.0
  %2633 = vmatpush2.msra.mxu0 0.0
  %2634 = vmatprep.subr.mxu0 0.0
  %2635 = vmatpush2.msra.mxu0 0.0
  %2636 = vmatprep.subr.mxu0 0.0
  %2637 = vmatpush2.msra.mxu0 0.0
  %2638 = vmatprep.subr.mxu0 0.0
  %2639 = vmatpush2.msra.mxu0 0.0
  %2640 = vmatprep.subr.mxu0 0.0
  %2641 = vmatpush2.msra.mxu0 0.0
  %2642 = vmatprep.subr.mxu0 0.0
  %2643 = vmatpush2.msra.mxu0 0.0
  %2644 = vmatprep.subr.mxu0 0.0
  %2645 = vmatpush2.msra.mxu0 0.0
  %2646 = vmatprep.subr.mxu0 0.0
  %2647 = vmatpush2.msra.mxu0 0.0
  %2648 = vmatprep.subr.mxu0 0.0
  %2649 = vmatpush2.msra.mxu0 0.0
  %2650 = vmatprep.subr.mxu0 0.0
  %2651 = vmatpush2.msra.mxu0 0.0
  %2652 = vmatprep.subr.mxu0 0.0
  %2653 = vmatpush2.msra.mxu0 0.0
  %2654 = vmatprep.subr.mxu0 0.0
  %2655 = vmatpush2.msra.mxu0 0.0
  %2656 = vmatprep.subr.mxu0 0.0
  %2657 = vmatpush2.msra.mxu0 0.0
  %2658 = vmatprep.subr.mxu0 0.0
  %2659 = vmatpush2.msra.mxu0 0.0
  %2660 = vmatprep.subr.mxu0 0.0
  %2661 = vmatpush2.msra.mxu0 0.0
  %2662 = vmatprep.subr.mxu0 0.0
  %2663 = vmatpush2.msra.mxu0 0.0
  %2664 = vmatprep.mubr.f32.mxu0 0.0
  %2665 = vmatmul.mubr.f32.gmra.mxu0 %v2598
  %v2666 = vpop.f32.mrf.mxu0
  %v2667 = vadd.f32 %v1684, %v2666
  %v2668 = vpop.f32.mrf.mxu0
  %2669 = vdwg.mxu0
  %v2671 = vsel %vm1382, %v1345, 0
  %2673 = vmatprep.subr.mxu0 0.0
  %2674 = vmatpush1.msra.mxu0 0.0
  %2675 = vmatprep.subr.mxu0 0.0
  %2676 = vmatpush1.msra.mxu0 0.0
  %2677 = vmatprep.subr.mxu0 0.0
  %2678 = vmatpush1.msra.mxu0 0.0
  %2679 = vmatprep.subr.mxu0 0.0
  %2680 = vmatpush1.msra.mxu0 0.0
  %2681 = vmatprep.subr.mxu0 0.0
  %2682 = vmatpush1.msra.mxu0 0.0
  %2683 = vmatprep.subr.mxu0 0.0
  %2684 = vmatpush1.msra.mxu0 0.0
  %2685 = vmatprep.subr.mxu0 0.0
  %2686 = vmatpush1.msra.mxu0 0.0
  %2687 = vmatprep.subr.mxu0 0.0
  %2688 = vmatpush1.msra.mxu0 0.0
  %2689 = vmatprep.subr.mxu0 0.0
  %2690 = vmatpush1.msra.mxu0 0.0
  %2691 = vmatprep.subr.mxu0 0.0
  %2692 = vmatpush1.msra.mxu0 0.0
  %2693 = vmatprep.subr.mxu0 0.0
  %2694 = vmatpush1.msra.mxu0 0.0
  %2695 = vmatprep.subr.mxu0 0.0
  %2696 = vmatpush1.msra.mxu0 0.0
  %2697 = vmatprep.subr.mxu0 0.0
  %2698 = vmatpush1.msra.mxu0 0.0
  %2699 = vmatprep.subr.mxu0 0.0
  %2700 = vmatpush1.msra.mxu0 0.0
  %2701 = vmatprep.subr.mxu0 0.0
  %2702 = vmatpush1.msra.mxu0 %v1688
  %2703 = vmatprep.subr.mxu0 0.0
  %2704 = vmatpush1.msra.mxu0 %v1687
  %2705 = vmatprep.subr.mxu0 0.0
  %2706 = vmatpush2.msra.mxu0 0.0
  %2707 = vmatprep.subr.mxu0 0.0
  %2708 = vmatpush2.msra.mxu0 0.0
  %2709 = vmatprep.subr.mxu0 0.0
  %2710 = vmatpush2.msra.mxu0 0.0
  %2711 = vmatprep.subr.mxu0 0.0
  %2712 = vmatpush2.msra.mxu0 0.0
  %2713 = vmatprep.subr.mxu0 0.0
  %2714 = vmatpush2.msra.mxu0 0.0
  %2715 = vmatprep.subr.mxu0 0.0
  %2716 = vmatpush2.msra.mxu0 0.0
  %2717 = vmatprep.subr.mxu0 0.0
  %2718 = vmatpush2.msra.mxu0 0.0
  %2719 = vmatprep.subr.mxu0 0.0
  %2720 = vmatpush2.msra.mxu0 0.0
  %2721 = vmatprep.subr.mxu0 0.0
  %2722 = vmatpush2.msra.mxu0 0.0
  %2723 = vmatprep.subr.mxu0 0.0
  %2724 = vmatpush2.msra.mxu0 0.0
  %2725 = vmatprep.subr.mxu0 0.0
  %2726 = vmatpush2.msra.mxu0 0.0
  %2727 = vmatprep.subr.mxu0 0.0
  %2728 = vmatpush2.msra.mxu0 0.0
  %2729 = vmatprep.subr.mxu0 0.0
  %2730 = vmatpush2.msra.mxu0 0.0
  %2731 = vmatprep.subr.mxu0 0.0
  %2732 = vmatpush2.msra.mxu0 0.0
  %2733 = vmatprep.subr.mxu0 0.0
  %2734 = vmatpush2.msra.mxu0 0.0
  %2735 = vmatprep.subr.mxu0 0.0
  %2736 = vmatpush2.msra.mxu0 0.0
  %2737 = vmatprep.mubr.f32.mxu0 0.0
  %2738 = vmatmul.mubr.f32.gmra.mxu0 %v2671
  %v2739 = vpop.f32.mrf.mxu0
  %v2740 = vadd.f32 %v1761, %v2739
  %v2741 = vpop.f32.mrf.mxu0
  %2742 = vdwg.mxu0
  %v2744 = vsel %vm1382, %v1349, 0
  %2746 = vmatprep.subr.mxu0 0.0
  %2747 = vmatpush1.msra.mxu0 0.0
  %2748 = vmatprep.subr.mxu0 0.0
  %2749 = vmatpush1.msra.mxu0 0.0
  %2750 = vmatprep.subr.mxu0 0.0
  %2751 = vmatpush1.msra.mxu0 0.0
  %2752 = vmatprep.subr.mxu0 0.0
  %2753 = vmatpush1.msra.mxu0 0.0
  %2754 = vmatprep.subr.mxu0 0.0
  %2755 = vmatpush1.msra.mxu0 0.0
  %2756 = vmatprep.subr.mxu0 0.0
  %2757 = vmatpush1.msra.mxu0 0.0
  %2758 = vmatprep.subr.mxu0 0.0
  %2759 = vmatpush1.msra.mxu0 0.0
  %2760 = vmatprep.subr.mxu0 0.0
  %2761 = vmatpush1.msra.mxu0 0.0
  %2762 = vmatprep.subr.mxu0 0.0
  %2763 = vmatpush1.msra.mxu0 0.0
  %2764 = vmatprep.subr.mxu0 0.0
  %2765 = vmatpush1.msra.mxu0 0.0
  %2766 = vmatprep.subr.mxu0 0.0
  %2767 = vmatpush1.msra.mxu0 0.0
  %2768 = vmatprep.subr.mxu0 0.0
  %2769 = vmatpush1.msra.mxu0 0.0
  %2770 = vmatprep.subr.mxu0 0.0
  %2771 = vmatpush1.msra.mxu0 0.0
  %2772 = vmatprep.subr.mxu0 0.0
  %2773 = vmatpush1.msra.mxu0 0.0
  %2774 = vmatprep.subr.mxu0 0.0
  %2775 = vmatpush1.msra.mxu0 %v1765
  %2776 = vmatprep.subr.mxu0 0.0
  %2777 = vmatpush1.msra.mxu0 %v1764
  %2778 = vmatprep.subr.mxu0 0.0
  %2779 = vmatpush2.msra.mxu0 0.0
  %2780 = vmatprep.subr.mxu0 0.0
  %2781 = vmatpush2.msra.mxu0 0.0
  %2782 = vmatprep.subr.mxu0 0.0
  %2783 = vmatpush2.msra.mxu0 0.0
  %2784 = vmatprep.subr.mxu0 0.0
  %2785 = vmatpush2.msra.mxu0 0.0
  %2786 = vmatprep.subr.mxu0 0.0
  %2787 = vmatpush2.msra.mxu0 0.0
  %2788 = vmatprep.subr.mxu0 0.0
  %2789 = vmatpush2.msra.mxu0 0.0
  %2790 = vmatprep.subr.mxu0 0.0
  %2791 = vmatpush2.msra.mxu0 0.0
  %2792 = vmatprep.subr.mxu0 0.0
  %2793 = vmatpush2.msra.mxu0 0.0
  %2794 = vmatprep.subr.mxu0 0.0
  %2795 = vmatpush2.msra.mxu0 0.0
  %2796 = vmatprep.subr.mxu0 0.0
  %2797 = vmatpush2.msra.mxu0 0.0
  %2798 = vmatprep.subr.mxu0 0.0
  %2799 = vmatpush2.msra.mxu0 0.0
  %2800 = vmatprep.subr.mxu0 0.0
  %2801 = vmatpush2.msra.mxu0 0.0
  %2802 = vmatprep.subr.mxu0 0.0
  %2803 = vmatpush2.msra.mxu0 0.0
  %2804 = vmatprep.subr.mxu0 0.0
  %2805 = vmatpush2.msra.mxu0 0.0
  %2806 = vmatprep.subr.mxu0 0.0
  %2807 = vmatpush2.msra.mxu0 0.0
  %2808 = vmatprep.subr.mxu0 0.0
  %2809 = vmatpush2.msra.mxu0 0.0
  %2810 = vmatprep.mubr.f32.mxu0 0.0
  %2811 = vmatmul.mubr.f32.gmra.mxu0 %v2744
  %v2812 = vpop.f32.mrf.mxu0
  %v2813 = vadd.f32 %v1838, %v2812
  %v2814 = vpop.f32.mrf.mxu0
  %2815 = vdwg.mxu0
  %v2817 = vsel %vm1382, %v1353, 0
  %2819 = vmatprep.subr.mxu0 0.0
  %2820 = vmatpush1.msra.mxu0 0.0
  %2821 = vmatprep.subr.mxu0 0.0
  %2822 = vmatpush1.msra.mxu0 0.0
  %2823 = vmatprep.subr.mxu0 0.0
  %2824 = vmatpush1.msra.mxu0 0.0
  %2825 = vmatprep.subr.mxu0 0.0
  %2826 = vmatpush1.msra.mxu0 0.0
  %2827 = vmatprep.subr.mxu0 0.0
  %2828 = vmatpush1.msra.mxu0 0.0
  %2829 = vmatprep.subr.mxu0 0.0
  %2830 = vmatpush1.msra.mxu0 0.0
  %2831 = vmatprep.subr.mxu0 0.0
  %2832 = vmatpush1.msra.mxu0 0.0
  %2833 = vmatprep.subr.mxu0 0.0
  %2834 = vmatpush1.msra.mxu0 0.0
  %2835 = vmatprep.subr.mxu0 0.0
  %2836 = vmatpush1.msra.mxu0 0.0
  %2837 = vmatprep.subr.mxu0 0.0
  %2838 = vmatpush1.msra.mxu0 0.0
  %2839 = vmatprep.subr.mxu0 0.0
  %2840 = vmatpush1.msra.mxu0 0.0
  %2841 = vmatprep.subr.mxu0 0.0
  %2842 = vmatpush1.msra.mxu0 0.0
  %2843 = vmatprep.subr.mxu0 0.0
  %2844 = vmatpush1.msra.mxu0 0.0
  %2845 = vmatprep.subr.mxu0 0.0
  %2846 = vmatpush1.msra.mxu0 0.0
  %2847 = vmatprep.subr.mxu0 0.0
  %2848 = vmatpush1.msra.mxu0 %v1842
  %2849 = vmatprep.subr.mxu0 0.0
  %2850 = vmatpush1.msra.mxu0 %v1841
  %2851 = vmatprep.subr.mxu0 0.0
  %2852 = vmatpush2.msra.mxu0 0.0
  %2853 = vmatprep.subr.mxu0 0.0
  %2854 = vmatpush2.msra.mxu0 0.0
  %2855 = vmatprep.subr.mxu0 0.0
  %2856 = vmatpush2.msra.mxu0 0.0
  %2857 = vmatprep.subr.mxu0 0.0
  %2858 = vmatpush2.msra.mxu0 0.0
  %2859 = vmatprep.subr.mxu0 0.0
  %2860 = vmatpush2.msra.mxu0 0.0
  %2861 = vmatprep.subr.mxu0 0.0
  %2862 = vmatpush2.msra.mxu0 0.0
  %2863 = vmatprep.subr.mxu0 0.0
  %2864 = vmatpush2.msra.mxu0 0.0
  %2865 = vmatprep.subr.mxu0 0.0
  %2866 = vmatpush2.msra.mxu0 0.0
  %2867 = vmatprep.subr.mxu0 0.0
  %2868 = vmatpush2.msra.mxu0 0.0
  %2869 = vmatprep.subr.mxu0 0.0
  %2870 = vmatpush2.msra.mxu0 0.0
  %2871 = vmatprep.subr.mxu0 0.0
  %2872 = vmatpush2.msra.mxu0 0.0
  %2873 = vmatprep.subr.mxu0 0.0
  %2874 = vmatpush2.msra.mxu0 0.0
  %2875 = vmatprep.subr.mxu0 0.0
  %2876 = vmatpush2.msra.mxu0 0.0
  %2877 = vmatprep.subr.mxu0 0.0
  %2878 = vmatpush2.msra.mxu0 0.0
  %2879 = vmatprep.subr.mxu0 0.0
  %2880 = vmatpush2.msra.mxu0 0.0
  %2881 = vmatprep.subr.mxu0 0.0
  %2882 = vmatpush2.msra.mxu0 0.0
  %2883 = vmatprep.mubr.f32.mxu0 0.0
  %2884 = vmatmul.mubr.f32.gmra.mxu0 %v2817
  %v2885 = vpop.f32.mrf.mxu0
  %v2886 = vadd.f32 %v1915, %v2885
  %v2887 = vpop.f32.mrf.mxu0
  %2888 = vdwg.mxu0
  %v2890 = vsel %vm1382, %v1357, 0
  %2892 = vmatprep.subr.mxu0 0.0
  %2893 = vmatpush1.msra.mxu0 0.0
  %2894 = vmatprep.subr.mxu0 0.0
  %2895 = vmatpush1.msra.mxu0 0.0
  %2896 = vmatprep.subr.mxu0 0.0
  %2897 = vmatpush1.msra.mxu0 0.0
  %2898 = vmatprep.subr.mxu0 0.0
  %2899 = vmatpush1.msra.mxu0 0.0
  %2900 = vmatprep.subr.mxu0 0.0
  %2901 = vmatpush1.msra.mxu0 0.0
  %2902 = vmatprep.subr.mxu0 0.0
  %2903 = vmatpush1.msra.mxu0 0.0
  %2904 = vmatprep.subr.mxu0 0.0
  %2905 = vmatpush1.msra.mxu0 0.0
  %2906 = vmatprep.subr.mxu0 0.0
  %2907 = vmatpush1.msra.mxu0 0.0
  %2908 = vmatprep.subr.mxu0 0.0
  %2909 = vmatpush1.msra.mxu0 0.0
  %2910 = vmatprep.subr.mxu0 0.0
  %2911 = vmatpush1.msra.mxu0 0.0
  %2912 = vmatprep.subr.mxu0 0.0
  %2913 = vmatpush1.msra.mxu0 0.0
  %2914 = vmatprep.subr.mxu0 0.0
  %2915 = vmatpush1.msra.mxu0 0.0
  %2916 = vmatprep.subr.mxu0 0.0
  %2917 = vmatpush1.msra.mxu0 0.0
  %2918 = vmatprep.subr.mxu0 0.0
  %2919 = vmatpush1.msra.mxu0 0.0
  %2920 = vmatprep.subr.mxu0 0.0
  %2921 = vmatpush1.msra.mxu0 %v1919
  %2922 = vmatprep.subr.mxu0 0.0
  %2923 = vmatpush1.msra.mxu0 %v1918
  %2924 = vmatprep.subr.mxu0 0.0
  %2925 = vmatpush2.msra.mxu0 0.0
  %2926 = vmatprep.subr.mxu0 0.0
  %2927 = vmatpush2.msra.mxu0 0.0
  %2928 = vmatprep.subr.mxu0 0.0
  %2929 = vmatpush2.msra.mxu0 0.0
  %2930 = vmatprep.subr.mxu0 0.0
  %2931 = vmatpush2.msra.mxu0 0.0
  %2932 = vmatprep.subr.mxu0 0.0
  %2933 = vmatpush2.msra.mxu0 0.0
  %2934 = vmatprep.subr.mxu0 0.0
  %2935 = vmatpush2.msra.mxu0 0.0
  %2936 = vmatprep.subr.mxu0 0.0
  %2937 = vmatpush2.msra.mxu0 0.0
  %2938 = vmatprep.subr.mxu0 0.0
  %2939 = vmatpush2.msra.mxu0 0.0
  %2940 = vmatprep.subr.mxu0 0.0
  %2941 = vmatpush2.msra.mxu0 0.0
  %2942 = vmatprep.subr.mxu0 0.0
  %2943 = vmatpush2.msra.mxu0 0.0
  %2944 = vmatprep.subr.mxu0 0.0
  %2945 = vmatpush2.msra.mxu0 0.0
  %2946 = vmatprep.subr.mxu0 0.0
  %2947 = vmatpush2.msra.mxu0 0.0
  %2948 = vmatprep.subr.mxu0 0.0
  %2949 = vmatpush2.msra.mxu0 0.0
  %2950 = vmatprep.subr.mxu0 0.0
  %2951 = vmatpush2.msra.mxu0 0.0
  %2952 = vmatprep.subr.mxu0 0.0
  %2953 = vmatpush2.msra.mxu0 0.0
  %2954 = vmatprep.subr.mxu0 0.0
  %2955 = vmatpush2.msra.mxu0 0.0
  %2956 = vmatprep.mubr.f32.mxu0 0.0
  %2957 = vmatmul.mubr.f32.gmra.mxu0 %v2890
  %v2958 = vpop.f32.mrf.mxu0
  %v2959 = vadd.f32 %v1992, %v2958
  %v2960 = vpop.f32.mrf.mxu0
  %2961 = vdwg.mxu0
  %v2963 = vsel %vm1382, %v1361, 0
  %2965 = vmatprep.subr.mxu0 0.0
  %2966 = vmatpush1.msra.mxu0 0.0
  %2967 = vmatprep.subr.mxu0 0.0
  %2968 = vmatpush1.msra.mxu0 0.0
  %2969 = vmatprep.subr.mxu0 0.0
  %2970 = vmatpush1.msra.mxu0 0.0
  %2971 = vmatprep.subr.mxu0 0.0
  %2972 = vmatpush1.msra.mxu0 0.0
  %2973 = vmatprep.subr.mxu0 0.0
  %2974 = vmatpush1.msra.mxu0 0.0
  %2975 = vmatprep.subr.mxu0 0.0
  %2976 = vmatpush1.msra.mxu0 0.0
  %2977 = vmatprep.subr.mxu0 0.0
  %2978 = vmatpush1.msra.mxu0 0.0
  %2979 = vmatprep.subr.mxu0 0.0
  %2980 = vmatpush1.msra.mxu0 0.0
  %2981 = vmatprep.subr.mxu0 0.0
  %2982 = vmatpush1.msra.mxu0 0.0
  %2983 = vmatprep.subr.mxu0 0.0
  %2984 = vmatpush1.msra.mxu0 0.0
  %2985 = vmatprep.subr.mxu0 0.0
  %2986 = vmatpush1.msra.mxu0 0.0
  %2987 = vmatprep.subr.mxu0 0.0
  %2988 = vmatpush1.msra.mxu0 0.0
  %2989 = vmatprep.subr.mxu0 0.0
  %2990 = vmatpush1.msra.mxu0 0.0
  %2991 = vmatprep.subr.mxu0 0.0
  %2992 = vmatpush1.msra.mxu0 0.0
  %2993 = vmatprep.subr.mxu0 0.0
  %2994 = vmatpush1.msra.mxu0 %v1996
  %2995 = vmatprep.subr.mxu0 0.0
  %2996 = vmatpush1.msra.mxu0 %v1995
  %2997 = vmatprep.subr.mxu0 0.0
  %2998 = vmatpush2.msra.mxu0 0.0
  %2999 = vmatprep.subr.mxu0 0.0
  %3000 = vmatpush2.msra.mxu0 0.0
  %3001 = vmatprep.subr.mxu0 0.0
  %3002 = vmatpush2.msra.mxu0 0.0
  %3003 = vmatprep.subr.mxu0 0.0
  %3004 = vmatpush2.msra.mxu0 0.0
  %3005 = vmatprep.subr.mxu0 0.0
  %3006 = vmatpush2.msra.mxu0 0.0
  %3007 = vmatprep.subr.mxu0 0.0
  %3008 = vmatpush2.msra.mxu0 0.0
  %3009 = vmatprep.subr.mxu0 0.0
  %3010 = vmatpush2.msra.mxu0 0.0
  %3011 = vmatprep.subr.mxu0 0.0
  %3012 = vmatpush2.msra.mxu0 0.0
  %3013 = vmatprep.subr.mxu0 0.0
  %3014 = vmatpush2.msra.mxu0 0.0
  %3015 = vmatprep.subr.mxu0 0.0
  %3016 = vmatpush2.msra.mxu0 0.0
  %3017 = vmatprep.subr.mxu0 0.0
  %3018 = vmatpush2.msra.mxu0 0.0
  %3019 = vmatprep.subr.mxu0 0.0
  %3020 = vmatpush2.msra.mxu0 0.0
  %3021 = vmatprep.subr.mxu0 0.0
  %3022 = vmatpush2.msra.mxu0 0.0
  %3023 = vmatprep.subr.mxu0 0.0
  %3024 = vmatpush2.msra.mxu0 0.0
  %3025 = vmatprep.subr.mxu0 0.0
  %3026 = vmatpush2.msra.mxu0 0.0
  %3027 = vmatprep.subr.mxu0 0.0
  %3028 = vmatpush2.msra.mxu0 0.0
  %3029 = vmatprep.mubr.f32.mxu0 0.0
  %3030 = vmatmul.mubr.f32.gmra.mxu0 %v2963
  %v3031 = vpop.f32.mrf.mxu0
  %v3032 = vadd.f32 %v2069, %v3031
  %v3033 = vpop.f32.mrf.mxu0
  %3034 = vdwg.mxu0
  %v3036 = vsel %vm1382, %v1365, 0
  %3038 = vmatprep.subr.mxu0 0.0
  %3039 = vmatpush1.msra.mxu0 0.0
  %3040 = vmatprep.subr.mxu0 0.0
  %3041 = vmatpush1.msra.mxu0 0.0
  %3042 = vmatprep.subr.mxu0 0.0
  %3043 = vmatpush1.msra.mxu0 0.0
  %3044 = vmatprep.subr.mxu0 0.0
  %3045 = vmatpush1.msra.mxu0 0.0
  %3046 = vmatprep.subr.mxu0 0.0
  %3047 = vmatpush1.msra.mxu0 0.0
  %3048 = vmatprep.subr.mxu0 0.0
  %3049 = vmatpush1.msra.mxu0 0.0
  %3050 = vmatprep.subr.mxu0 0.0
  %3051 = vmatpush1.msra.mxu0 0.0
  %3052 = vmatprep.subr.mxu0 0.0
  %3053 = vmatpush1.msra.mxu0 0.0
  %3054 = vmatprep.subr.mxu0 0.0
  %3055 = vmatpush1.msra.mxu0 0.0
  %3056 = vmatprep.subr.mxu0 0.0
  %3057 = vmatpush1.msra.mxu0 0.0
  %3058 = vmatprep.subr.mxu0 0.0
  %3059 = vmatpush1.msra.mxu0 0.0
  %3060 = vmatprep.subr.mxu0 0.0
  %3061 = vmatpush1.msra.mxu0 0.0
  %3062 = vmatprep.subr.mxu0 0.0
  %3063 = vmatpush1.msra.mxu0 0.0
  %3064 = vmatprep.subr.mxu0 0.0
  %3065 = vmatpush1.msra.mxu0 0.0
  %3066 = vmatprep.subr.mxu0 0.0
  %3067 = vmatpush1.msra.mxu0 %v2073
  %3068 = vmatprep.subr.mxu0 0.0
  %3069 = vmatpush1.msra.mxu0 %v2072
  %3070 = vmatprep.subr.mxu0 0.0
  %3071 = vmatpush2.msra.mxu0 0.0
  %3072 = vmatprep.subr.mxu0 0.0
  %3073 = vmatpush2.msra.mxu0 0.0
  %3074 = vmatprep.subr.mxu0 0.0
  %3075 = vmatpush2.msra.mxu0 0.0
  %3076 = vmatprep.subr.mxu0 0.0
  %3077 = vmatpush2.msra.mxu0 0.0
  %3078 = vmatprep.subr.mxu0 0.0
  %3079 = vmatpush2.msra.mxu0 0.0
  %3080 = vmatprep.subr.mxu0 0.0
  %3081 = vmatpush2.msra.mxu0 0.0
  %3082 = vmatprep.subr.mxu0 0.0
  %3083 = vmatpush2.msra.mxu0 0.0
  %3084 = vmatprep.subr.mxu0 0.0
  %3085 = vmatpush2.msra.mxu0 0.0
  %3086 = vmatprep.subr.mxu0 0.0
  %3087 = vmatpush2.msra.mxu0 0.0
  %3088 = vmatprep.subr.mxu0 0.0
  %3089 = vmatpush2.msra.mxu0 0.0
  %3090 = vmatprep.subr.mxu0 0.0
  %3091 = vmatpush2.msra.mxu0 0.0
  %3092 = vmatprep.subr.mxu0 0.0
  %3093 = vmatpush2.msra.mxu0 0.0
  %3094 = vmatprep.subr.mxu0 0.0
  %3095 = vmatpush2.msra.mxu0 0.0
  %3096 = vmatprep.subr.mxu0 0.0
  %3097 = vmatpush2.msra.mxu0 0.0
  %3098 = vmatprep.subr.mxu0 0.0
  %3099 = vmatpush2.msra.mxu0 0.0
  %3100 = vmatprep.subr.mxu0 0.0
  %3101 = vmatpush2.msra.mxu0 0.0
  %3102 = vmatprep.mubr.f32.mxu0 0.0
  %3103 = vmatmul.mubr.f32.gmra.mxu0 %v3036
  %v3104 = vpop.f32.mrf.mxu0
  %v3105 = vadd.f32 %v2146, %v3104
  %v3106 = vpop.f32.mrf.mxu0
  %3107 = vdwg.mxu0
  %v3109 = vsel %vm1382, %v1369, 0
  %3111 = vmatprep.subr.mxu0 0.0
  %3112 = vmatpush1.msra.mxu0 0.0
  %3113 = vmatprep.subr.mxu0 0.0
  %3114 = vmatpush1.msra.mxu0 0.0
  %3115 = vmatprep.subr.mxu0 0.0
  %3116 = vmatpush1.msra.mxu0 0.0
  %3117 = vmatprep.subr.mxu0 0.0
  %3118 = vmatpush1.msra.mxu0 0.0
  %3119 = vmatprep.subr.mxu0 0.0
  %3120 = vmatpush1.msra.mxu0 0.0
  %3121 = vmatprep.subr.mxu0 0.0
  %3122 = vmatpush1.msra.mxu0 0.0
  %3123 = vmatprep.subr.mxu0 0.0
  %3124 = vmatpush1.msra.mxu0 0.0
  %3125 = vmatprep.subr.mxu0 0.0
  %3126 = vmatpush1.msra.mxu0 0.0
  %3127 = vmatprep.subr.mxu0 0.0
  %3128 = vmatpush1.msra.mxu0 0.0
  %3129 = vmatprep.subr.mxu0 0.0
  %3130 = vmatpush1.msra.mxu0 0.0
  %3131 = vmatprep.subr.mxu0 0.0
  %3132 = vmatpush1.msra.mxu0 0.0
  %3133 = vmatprep.subr.mxu0 0.0
  %3134 = vmatpush1.msra.mxu0 0.0
  %3135 = vmatprep.subr.mxu0 0.0
  %3136 = vmatpush1.msra.mxu0 0.0
  %3137 = vmatprep.subr.mxu0 0.0
  %3138 = vmatpush1.msra.mxu0 0.0
  %3139 = vmatprep.subr.mxu0 0.0
  %3140 = vmatpush1.msra.mxu0 %v2150
  %3141 = vmatprep.subr.mxu0 0.0
  %3142 = vmatpush1.msra.mxu0 %v2149
  %3143 = vmatprep.subr.mxu0 0.0
  %3144 = vmatpush2.msra.mxu0 0.0
  %3145 = vmatprep.subr.mxu0 0.0
  %3146 = vmatpush2.msra.mxu0 0.0
  %3147 = vmatprep.subr.mxu0 0.0
  %3148 = vmatpush2.msra.mxu0 0.0
  %3149 = vmatprep.subr.mxu0 0.0
  %3150 = vmatpush2.msra.mxu0 0.0
  %3151 = vmatprep.subr.mxu0 0.0
  %3152 = vmatpush2.msra.mxu0 0.0
  %3153 = vmatprep.subr.mxu0 0.0
  %3154 = vmatpush2.msra.mxu0 0.0
  %3155 = vmatprep.subr.mxu0 0.0
  %3156 = vmatpush2.msra.mxu0 0.0
  %3157 = vmatprep.subr.mxu0 0.0
  %3158 = vmatpush2.msra.mxu0 0.0
  %3159 = vmatprep.subr.mxu0 0.0
  %3160 = vmatpush2.msra.mxu0 0.0
  %3161 = vmatprep.subr.mxu0 0.0
  %3162 = vmatpush2.msra.mxu0 0.0
  %3163 = vmatprep.subr.mxu0 0.0
  %3164 = vmatpush2.msra.mxu0 0.0
  %3165 = vmatprep.subr.mxu0 0.0
  %3166 = vmatpush2.msra.mxu0 0.0
  %3167 = vmatprep.subr.mxu0 0.0
  %3168 = vmatpush2.msra.mxu0 0.0
  %3169 = vmatprep.subr.mxu0 0.0
  %3170 = vmatpush2.msra.mxu0 0.0
  %3171 = vmatprep.subr.mxu0 0.0
  %3172 = vmatpush2.msra.mxu0 0.0
  %3173 = vmatprep.subr.mxu0 0.0
  %3174 = vmatpush2.msra.mxu0 0.0
  %3175 = vmatprep.mubr.f32.mxu0 0.0
  %3176 = vmatmul.mubr.f32.gmra.mxu0 %v3109
  %v3177 = vpop.f32.mrf.mxu0
  %v3178 = vadd.f32 %v2223, %v3177
  %v3179 = vpop.f32.mrf.mxu0
  %3180 = vdwg.mxu0
  %v3182 = vsel %vm1382, %v1373, 0
  %3184 = vmatprep.subr.mxu0 0.0
  %3185 = vmatpush1.msra.mxu0 0.0
  %3186 = vmatprep.subr.mxu0 0.0
  %3187 = vmatpush1.msra.mxu0 0.0
  %3188 = vmatprep.subr.mxu0 0.0
  %3189 = vmatpush1.msra.mxu0 0.0
  %3190 = vmatprep.subr.mxu0 0.0
  %3191 = vmatpush1.msra.mxu0 0.0
  %3192 = vmatprep.subr.mxu0 0.0
  %3193 = vmatpush1.msra.mxu0 0.0
  %3194 = vmatprep.subr.mxu0 0.0
  %3195 = vmatpush1.msra.mxu0 0.0
  %3196 = vmatprep.subr.mxu0 0.0
  %3197 = vmatpush1.msra.mxu0 0.0
  %3198 = vmatprep.subr.mxu0 0.0
  %3199 = vmatpush1.msra.mxu0 0.0
  %3200 = vmatprep.subr.mxu0 0.0
  %3201 = vmatpush1.msra.mxu0 0.0
  %3202 = vmatprep.subr.mxu0 0.0
  %3203 = vmatpush1.msra.mxu0 0.0
  %3204 = vmatprep.subr.mxu0 0.0
  %3205 = vmatpush1.msra.mxu0 0.0
  %3206 = vmatprep.subr.mxu0 0.0
  %3207 = vmatpush1.msra.mxu0 0.0
  %3208 = vmatprep.subr.mxu0 0.0
  %3209 = vmatpush1.msra.mxu0 0.0
  %3210 = vmatprep.subr.mxu0 0.0
  %3211 = vmatpush1.msra.mxu0 0.0
  %3212 = vmatprep.subr.mxu0 0.0
  %3213 = vmatpush1.msra.mxu0 %v2227
  %3214 = vmatprep.subr.mxu0 0.0
  %3215 = vmatpush1.msra.mxu0 %v2226
  %3216 = vmatprep.subr.mxu0 0.0
  %3217 = vmatpush2.msra.mxu0 0.0
  %3218 = vmatprep.subr.mxu0 0.0
  %3219 = vmatpush2.msra.mxu0 0.0
  %3220 = vmatprep.subr.mxu0 0.0
  %3221 = vmatpush2.msra.mxu0 0.0
  %3222 = vmatprep.subr.mxu0 0.0
  %3223 = vmatpush2.msra.mxu0 0.0
  %3224 = vmatprep.subr.mxu0 0.0
  %3225 = vmatpush2.msra.mxu0 0.0
  %3226 = vmatprep.subr.mxu0 0.0
  %3227 = vmatpush2.msra.mxu0 0.0
  %3228 = vmatprep.subr.mxu0 0.0
  %3229 = vmatpush2.msra.mxu0 0.0
  %3230 = vmatprep.subr.mxu0 0.0
  %3231 = vmatpush2.msra.mxu0 0.0
  %3232 = vmatprep.subr.mxu0 0.0
  %3233 = vmatpush2.msra.mxu0 0.0
  %3234 = vmatprep.subr.mxu0 0.0
  %3235 = vmatpush2.msra.mxu0 0.0
  %3236 = vmatprep.subr.mxu0 0.0
  %3237 = vmatpush2.msra.mxu0 0.0
  %3238 = vmatprep.subr.mxu0 0.0
  %3239 = vmatpush2.msra.mxu0 0.0
  %3240 = vmatprep.subr.mxu0 0.0
  %3241 = vmatpush2.msra.mxu0 0.0
  %3242 = vmatprep.subr.mxu0 0.0
  %3243 = vmatpush2.msra.mxu0 0.0
  %3244 = vmatprep.subr.mxu0 0.0
  %3245 = vmatpush2.msra.mxu0 0.0
  %3246 = vmatprep.subr.mxu0 0.0
  %3247 = vmatpush2.msra.mxu0 0.0
  %3248 = vmatprep.mubr.f32.mxu0 0.0
  %3249 = vmatmul.mubr.f32.gmra.mxu0 %v3182
  %v3250 = vpop.f32.mrf.mxu0
  %v3251 = vadd.f32 %v2300, %v3250
  %v3252 = vpop.f32.mrf.mxu0
  %3253 = vdwg.mxu0
  %v3254 = vadd.f32 %v2448, %v2521
  %v3255 = vadd.f32 %v2594, %v2667
  %v3256 = vadd.f32 %v2740, %v2813
  %v3257 = vadd.f32 %v2886, %v2959
  %v3258 = vadd.f32 %v3032, %v3105
  %v3259 = vadd.f32 %v3178, %v3251
  %v3260 = vadd.f32 %v3254, %v3255
  %v3261 = vadd.f32 %v3256, %v3257
  %v3262 = vadd.f32 %v3258, %v3259
  %v3263 = vadd.f32 %v3260, %v3261
  %v3264 = vadd.f32 %v3262, %v2375
  %v3265 = vadd.f32 %v3263, %v3264
  %v3266 = vld [vmem:[%s4] sm:$0x1]
  %v3268 = vlaneseq
  %v3269 = vshrl.u32 %v3268, 7
  %v3270 = vsub.s32 0, %v3269
  %v3271 = vrot.slane %v3266, %v3270
  %v3273 = vadd.f32 %v3265, %v3271
  %v3274 = vxor.u32 %v3273, 2147483648
  %v3275 = vmul.f32 %v3274, 1.442695
  %v3276 = vpow.pop %v3275
  %v3277 = vadd.f32 %v3276, 1.0
  %v3278 = vrcp.pop %v3277
  %v3279 = vmul.f32 1.0, %v3278
  %v3280 = vld [vmem:[%s5] sm:$0xff]
  %v3281 = vld [vmem:[%s5 + $0x8] sm:$0xff]
  %v3282 = vld [vmem:[%s5 + $0x10] sm:$0xff]
  %v3283 = vld [vmem:[%s5 + $0x18] sm:$0xff]
  %v3284 = vld [vmem:[%s5 + $0x20] sm:$0xff]
  %v3285 = vld [vmem:[%s5 + $0x28] sm:$0xff]
  %v3286 = vld [vmem:[%s5 + $0x30] sm:$0xff]
  %v3287 = vld [vmem:[%s5 + $0x38] sm:$0xff]
  %v3288 = vld [vmem:[%s5 + $0x40] sm:$0xff]
  %v3289 = vld [vmem:[%s5 + $0x48] sm:$0xff]
  %v3290 = vld [vmem:[%s5 + $0x50] sm:$0xff]
  %v3291 = vld [vmem:[%s5 + $0x58] sm:$0xff]
  %v3292 = vld [vmem:[%s5 + $0x60] sm:$0xff]
  %v3293 = vld [vmem:[%s5 + $0x68] sm:$0xff]
  %v3294 = vld [vmem:[%s5 + $0x70] sm:$0xff]
  %v3295 = vld [vmem:[%s6] sm:$0x1]
  %v3297 = vlaneseq
  %v3298 = vshrl.u32 %v3297, 7
  %v3299 = vsub.s32 0, %v3298
  %v3300 = vrot.slane %v3295, %v3299
  %vm3302 = vcmask 982016
  %v3304 = vsel %vm3302, %v3279, 0
  %3306 = vmatprep.subr.mxu0 0.0
  %3307 = vmatpush1.msra.mxu0 0.0
  %3308 = vmatprep.subr.mxu0 0.0
  %3309 = vmatpush1.msra.mxu0 %v3294
  %3310 = vmatprep.subr.mxu0 0.0
  %3311 = vmatpush1.msra.mxu0 %v3293
  %3312 = vmatprep.subr.mxu0 0.0
  %3313 = vmatpush1.msra.mxu0 %v3292
  %3314 = vmatprep.subr.mxu0 0.0
  %3315 = vmatpush1.msra.mxu0 %v3291
  %3316 = vmatprep.subr.mxu0 0.0
  %3317 = vmatpush1.msra.mxu0 %v3290
  %3318 = vmatprep.subr.mxu0 0.0
  %3319 = vmatpush1.msra.mxu0 %v3289
  %3320 = vmatprep.subr.mxu0 0.0
  %3321 = vmatpush1.msra.mxu0 %v3288
  %3322 = vmatprep.subr.mxu0 0.0
  %3323 = vmatpush1.msra.mxu0 %v3287
  %3324 = vmatprep.subr.mxu0 0.0
  %3325 = vmatpush1.msra.mxu0 %v3286
  %3326 = vmatprep.subr.mxu0 0.0
  %3327 = vmatpush1.msra.mxu0 %v3285
  %3328 = vmatprep.subr.mxu0 0.0
  %3329 = vmatpush1.msra.mxu0 %v3284
  %3330 = vmatprep.subr.mxu0 0.0
  %3331 = vmatpush1.msra.mxu0 %v3283
  %3332 = vmatprep.subr.mxu0 0.0
  %3333 = vmatpush1.msra.mxu0 %v3282
  %3334 = vmatprep.subr.mxu0 0.0
  %3335 = vmatpush1.msra.mxu0 %v3281
  %3336 = vmatprep.subr.mxu0 0.0
  %3337 = vmatpush1.msra.mxu0 %v3280
  %3338 = vmatprep.subr.mxu0 0.0
  %3339 = vmatpush2.msra.mxu0 0.0
  %3340 = vmatprep.subr.mxu0 0.0
  %3341 = vmatpush2.msra.mxu0 0.0
  %3342 = vmatprep.subr.mxu0 0.0
  %3343 = vmatpush2.msra.mxu0 0.0
  %3344 = vmatprep.subr.mxu0 0.0
  %3345 = vmatpush2.msra.mxu0 0.0
  %3346 = vmatprep.subr.mxu0 0.0
  %3347 = vmatpush2.msra.mxu0 0.0
  %3348 = vmatprep.subr.mxu0 0.0
  %3349 = vmatpush2.msra.mxu0 0.0
  %3350 = vmatprep.subr.mxu0 0.0
  %3351 = vmatpush2.msra.mxu0 0.0
  %3352 = vmatprep.subr.mxu0 0.0
  %3353 = vmatpush2.msra.mxu0 0.0
  %3354 = vmatprep.subr.mxu0 0.0
  %3355 = vmatpush2.msra.mxu0 0.0
  %3356 = vmatprep.subr.mxu0 0.0
  %3357 = vmatpush2.msra.mxu0 0.0
  %3358 = vmatprep.subr.mxu0 0.0
  %3359 = vmatpush2.msra.mxu0 0.0
  %3360 = vmatprep.subr.mxu0 0.0
  %3361 = vmatpush2.msra.mxu0 0.0
  %3362 = vmatprep.subr.mxu0 0.0
  %3363 = vmatpush2.msra.mxu0 0.0
  %3364 = vmatprep.subr.mxu0 0.0
  %3365 = vmatpush2.msra.mxu0 0.0
  %3366 = vmatprep.subr.mxu0 0.0
  %3367 = vmatpush2.msra.mxu0 0.0
  %3368 = vmatprep.subr.mxu0 0.0
  %3369 = vmatpush2.msra.mxu0 0.0
  %3370 = vmatprep.mubr.f32.mxu0 0.0
  %3371 = vmatmul.mubr.f32.gmra.mxu0 %v3304
  %v3372 = vpop.f32.mrf.mxu0
  %v3373 = vadd.f32 %v3300, %v3372
  %v3374 = vpop.f32.mrf.mxu0
  %3375 = vdwg.mxu0
  %v3376 = vxor.u32 %v3373, 2147483648
  %v3377 = vmul.f32 %v3376, 1.442695
  %v3378 = vpow.pop %v3377
  %v3379 = vadd.f32 %v3378, 1.0
  %v3380 = vrcp.pop %v3379
  %v3381 = vmul.f32 1.0, %v3380
  %v3382 = vld [vmem:[%s7] sm:$0xff]
  %v3383 = vld [vmem:[%s7 + $0x8] sm:$0xff]
  %v3384 = vld [vmem:[%s7 + $0x10] sm:$0xff]
  %v3385 = vld [vmem:[%s7 + $0x18] sm:$0xff]
  %v3386 = vld [vmem:[%s7 + $0x20] sm:$0xff]
  %v3387 = vld [vmem:[%s7 + $0x28] sm:$0xff]
  %v3388 = vld [vmem:[%s7 + $0x30] sm:$0xff]
  %v3389 = vld [vmem:[%s7 + $0x38] sm:$0xff]
  %v3390 = vld [vmem:[%s7 + $0x40] sm:$0xff]
  %v3391 = vld [vmem:[%s7 + $0x48] sm:$0xff]
  %v3392 = vld [vmem:[%s7 + $0x50] sm:$0xf]
  %v3393 = vld [vmem:[%s8] sm:$0x1]
  %v3395 = vlaneseq
  %v3396 = vshrl.u32 %v3395, 7
  %v3397 = vsub.s32 0, %v3396
  %v3398 = vrot.slane %v3393, %v3397
  %vm3400 = vcmask 687104
  %v3402 = vsel %vm3400, %v3381, 0
  %vm3404 = vcmask 1043456
  %v3406 = vsel %vm3404, %v3392, 0
  %3408 = vmatprep.subr.mxu0 0.0
  %3409 = vmatpush1.msra.mxu0 0.0
  %3410 = vmatprep.subr.mxu0 0.0
  %3411 = vmatpush1.msra.mxu0 0.0
  %3412 = vmatprep.subr.mxu0 0.0
  %3413 = vmatpush1.msra.mxu0 0.0
  %3414 = vmatprep.subr.mxu0 0.0
  %3415 = vmatpush1.msra.mxu0 0.0
  %3416 = vmatprep.subr.mxu0 0.0
  %3417 = vmatpush1.msra.mxu0 0.0
  %3418 = vmatprep.subr.mxu0 0.0
  %3419 = vmatpush1.msra.mxu0 %v3406
  %3420 = vmatprep.subr.mxu0 0.0
  %3421 = vmatpush1.msra.mxu0 %v3391
  %3422 = vmatprep.subr.mxu0 0.0
  %3423 = vmatpush1.msra.mxu0 %v3390
  %3424 = vmatprep.subr.mxu0 0.0
  %3425 = vmatpush1.msra.mxu0 %v3389
  %3426 = vmatprep.subr.mxu0 0.0
  %3427 = vmatpush1.msra.mxu0 %v3388
  %3428 = vmatprep.subr.mxu0 0.0
  %3429 = vmatpush1.msra.mxu0 %v3387
  %3430 = vmatprep.subr.mxu0 0.0
  %3431 = vmatpush1.msra.mxu0 %v3386
  %3432 = vmatprep.subr.mxu0 0.0
  %3433 = vmatpush1.msra.mxu0 %v3385
  %3434 = vmatprep.subr.mxu0 0.0
  %3435 = vmatpush1.msra.mxu0 %v3384
  %3436 = vmatprep.subr.mxu0 0.0
  %3437 = vmatpush1.msra.mxu0 %v3383
  %3438 = vmatprep.subr.mxu0 0.0
  %3439 = vmatpush1.msra.mxu0 %v3382
  %3440 = vmatprep.subr.mxu0 0.0
  %3441 = vmatpush2.msra.mxu0 0.0
  %3442 = vmatprep.subr.mxu0 0.0
  %3443 = vmatpush2.msra.mxu0 0.0
  %3444 = vmatprep.subr.mxu0 0.0
  %3445 = vmatpush2.msra.mxu0 0.0
  %3446 = vmatprep.subr.mxu0 0.0
  %3447 = vmatpush2.msra.mxu0 0.0
  %3448 = vmatprep.subr.mxu0 0.0
  %3449 = vmatpush2.msra.mxu0 0.0
  %3450 = vmatprep.subr.mxu0 0.0
  %3451 = vmatpush2.msra.mxu0 0.0
  %3452 = vmatprep.subr.mxu0 0.0
  %3453 = vmatpush2.msra.mxu0 0.0
  %3454 = vmatprep.subr.mxu0 0.0
  %3455 = vmatpush2.msra.mxu0 0.0
  %3456 = vmatprep.subr.mxu0 0.0
  %3457 = vmatpush2.msra.mxu0 0.0
  %3458 = vmatprep.subr.mxu0 0.0
  %3459 = vmatpush2.msra.mxu0 0.0
  %3460 = vmatprep.subr.mxu0 0.0
  %3461 = vmatpush2.msra.mxu0 0.0
  %3462 = vmatprep.subr.mxu0 0.0
  %3463 = vmatpush2.msra.mxu0 0.0
  %3464 = vmatprep.subr.mxu0 0.0
  %3465 = vmatpush2.msra.mxu0 0.0
  %3466 = vmatprep.subr.mxu0 0.0
  %3467 = vmatpush2.msra.mxu0 0.0
  %3468 = vmatprep.subr.mxu0 0.0
  %3469 = vmatpush2.msra.mxu0 0.0
  %3470 = vmatprep.subr.mxu0 0.0
  %3471 = vmatpush2.msra.mxu0 0.0
  %3472 = vmatprep.mubr.f32.mxu0 0.0
  %3473 = vmatmul.mubr.f32.gmra.mxu0 %v3402
  %v3474 = vpop.f32.mrf.mxu0
  %v3475 = vadd.f32 %v3398, %v3474
  %v3476 = vpop.f32.mrf.mxu0
  %3477 = vdwg.mxu0
  %3478 = vst [vmem:[%s9] sm:$0xff] %v3475
  // Predicated region
  $region38: #{grnn_lenet_forward.3} parent=0 // pred_check
    _
  $region39: #{grnn_lenet_forward.3} parent=0 // pred_check_branch
    %3480 = sbr.rel (0) target = $region41
  $region40: #{grnn_lenet_forward.3} parent=0 // pred_region
    _
  $region41: #{grnn_lenet_forward.3} parent=0 // pred_fallthru
    _
  // Predicated region
  $region42: #{grnn_lenet_forward.3} parent=0 // pred_check
    _
  $region43: #{grnn_lenet_forward.3} parent=0 // pred_check_branch
    %3482 = sbr.rel (0) target = $region45
  $region44: #{grnn_lenet_forward.3} parent=0 // pred_region
    _
  $region45: #{grnn_lenet_forward.3} parent=0 // pred_fallthru
    _

</llo_original>
